<compile_context>
chip_gen: v6e
topology: v6e:2x2x1
jax: 0.10.0
libtpu: 0.0.40
codegen_flags: <defaults>
</compile_context>

<pallas_src>
import functools

import jax
import jax.numpy as jnp
from jax.experimental import pallas as pl
from jax.experimental.pallas import tpu as pltpu


# --------------------------- fused model kernel ------------------------------
def _fused_lstm_kernel(*refs, n_layers, seq_len, batch_pad, hidden):
    """Fused 5-layer LSTM (wavefront schedule) + classifier.

    refs layout (positional, from pallas_call):
      [0]                    x        : (T*Bp, F)     time-major, batch-padded
      [1]                    W_ih0^T  : (F, 4H)       layer 0 input weights
      [2]                    W_hh0^T  : (H, 4H)       layer 0 recurrent weights
      [3]                    b0       : (1, 4H)       b_ih + b_hh, layer 0
      [4 + 2*(l-1) + 0]      W_cat_l  : (2H, 4H)      [W_ih; W_hh], layers 1..L-1
      [4 + 2*(l-1) + 1]      b_l      : (1, 4H)
      [4 + 2*(L-1)]          cls_w    : (H, C)
      [5 + 2*(L-1)]          cls_b    : (1, C)
      [6 + 2*(L-1)]          out      : (Bp, C)       (output)
      [7 + 2*(L-1)]          gx_scr   : (T*Bp, 4H)    VMEM scratch (layer-0 gx)
    """
    T, Bp, H, L = seq_len, batch_pad, hidden, n_layers
    G = 4 * H

    x_ref = refs[0]
    w_ih0_ref, w_hh0_ref, b0_ref = refs[1:4]
    deep_refs = refs[4:4 + 2 * (L - 1)]
    cls_w_ref = refs[4 + 2 * (L - 1)]
    cls_b_ref = refs[5 + 2 * (L - 1)]
    out_ref = refs[6 + 2 * (L - 1)]
    gx_scr = refs[7 + 2 * (L - 1)]

    # Hoisted, time-independent layer-0 input projection + fused bias:
    # one (T*Bp, F) x (F, 4H) GEMM, parked in VMEM scratch and read back as one
    # aligned (Bp, 4H) tile per timestep (keeps vreg pressure bounded in T).
    gx_scr[...] = (
        jnp.dot(x_ref[...], w_ih0_ref[...], preferred_element_type=jnp.float32)
        + b0_ref[...])

    # sigmoid(x) = 0.5*tanh(0.5*x) + 0.5  ->  a single full-width tanh per step
    # covers all four gates.  i/f/o lanes get pre-scale 0.5, the g (cell
    # candidate) lanes keep scale 1.0.  Hoisted out of the wave loop.
    lane = jax.lax.broadcasted_iota(jnp.int32, (Bp, G), 1)
    g_scale = jnp.where((lane >= 2 * H) & (lane < 3 * H),
                        jnp.float32(1.0), jnp.float32(0.5))

    h = [jnp.zeros((Bp, H), jnp.float32) for _ in range(L)]
    c = [jnp.zeros((Bp, H), jnp.float32) for _ in range(L)]

    # Wavefront: at wave s, layer l consumes layer l-1's output at t = s - l
    # (produced at wave s-1) and its own state from wave s-1, so all active
    # layers inside a wave are independent and overlap on MXU / EUP / VPU.
    for wave in range(T + L - 1):
        prev_h = list(h)                       # previous-wave value snapshot
        for l in range(L):
            t = wave - l
            if t < 0 or t >= T:
                continue
            if l == 0:
                gates = (gx_scr[t * Bp:(t + 1) * Bp, :]
                         + jnp.dot(prev_h[0], w_hh0_ref[...],
                                   preferred_element_type=jnp.float32))
            else:
                # Fused input + recurrent projection: one (Bp, 2H) x (2H, 4H)
                # matmul on the lane-concatenated [h_{l-1}(t), h_l(t-1)].
                zin = jnp.concatenate([prev_h[l - 1], prev_h[l]], axis=-1)
                gates = (jnp.dot(zin, deep_refs[2 * (l - 1)][...],
                                 preferred_element_type=jnp.float32)
                         + deep_refs[2 * (l - 1) + 1][...])

            th = jnp.tanh(gates * g_scale)     # one EUP pass for all 4 gates
            sg = 0.5 * th + 0.5                # sigmoid lanes (i, f, o)
            i_g = sg[:, 0 * H:1 * H]
            f_g = sg[:, 1 * H:2 * H]
            g_g = th[:, 2 * H:3 * H]
            o_g = sg[:, 3 * H:4 * H]

            c_new = f_g * c[l] + i_g * g_g
            h[l] = o_g * jnp.tanh(c_new)
            c[l] = c_new

    # Classifier on the last layer's final hidden state (padded rows are dead
    # and sliced off in the wrapper).
    out_ref[...] = (
        jnp.dot(h[L - 1], cls_w_ref[...], preferred_element_type=jnp.float32)
        + cls_b_ref[...])


# ------------------------------- model forward --------------------------------
@functools.partial(jax.jit, static_argnums=(2,))
def lstm_model_forward(x_bsf, params, n_hidden):
    """x_bsf: (batch, seq, n_features) — PyTorch batch_first layout."""
    B, T, F = x_bsf.shape
    H = n_hidden
    L = len(params["lstm"])
    C = params["cls_w"].shape[1]
    Bp = ((B + 7) // 8) * 8                     # pad batch to f32 sublane tile

    # Time-major, zero-pad batch to Bp, flatten rows as (t, b).
    x_tbf = jnp.transpose(x_bsf, (1, 0, 2)).astype(jnp.float32)     # (T, B, F)
    x_tbf = jnp.pad(x_tbf, ((0, 0), (0, Bp - B), (0, 0)))           # (T, Bp, F)
    x_flat = x_tbf.reshape(T * Bp, F)

    def full_spec(a):
        return pl.BlockSpec(a.shape, lambda: (0,) * a.ndim)

    w_ih0, w_hh0, b0 = params["lstm"][0]
    args = [x_flat, w_ih0, w_hh0, b0]
    for (w_ih, w_hh, b) in params["lstm"][1:]:
        # Pre-stack [W_ih; W_hh] -> (2H, 4H) for the fused per-step matmul.
        args += [jnp.concatenate([w_ih, w_hh], axis=0), b]
    args += [params["cls_w"], params["cls_b"]]
    in_specs = [full_spec(a) for a in args]

    kernel = functools.partial(_fused_lstm_kernel,
                               n_layers=L, seq_len=T, batch_pad=Bp, hidden=H)
    out_full = pl.pallas_call(
        kernel,
        out_shape=jax.ShapeDtypeStruct((Bp, C), jnp.float32),
        in_specs=in_specs,
        out_specs=pl.BlockSpec((Bp, C), lambda: (0, 0)),
        scratch_shapes=[pltpu.VMEM((T * Bp, 4 * H), jnp.float32)],   # layer-0 gx
    )(*args)
    return out_full[:B]


# ----------------------------- parameter init --------------------------------
def init_params(key, n_features, n_classes, n_hidden, n_layers):
    stdv = 1.0 / jnp.sqrt(n_hidden)
    params = {"lstm": []}
    for layer in range(n_layers):
        f_in = n_features if layer == 0 else n_hidden
        key, k1, k2, k3, k4 = jax.random.split(key, 5)
        # PyTorch stores weight_ih_l{k}: (4H, F_in), weight_hh_l{k}: (4H, H).
        # We pre-transpose to (F_in, 4H) / (H, 4H) and fuse the two biases.
        w_ih = jax.random.uniform(k1, (f_in, 4 * n_hidden), jnp.float32, -stdv, stdv)
        w_hh = jax.random.uniform(k2, (n_hidden, 4 * n_hidden), jnp.float32, -stdv, stdv)
        b_ih = jax.random.uniform(k3, (4 * n_hidden,), jnp.float32, -stdv, stdv)
        b_hh = jax.random.uniform(k4, (4 * n_hidden,), jnp.float32, -stdv, stdv)
        params["lstm"].append((w_ih, w_hh, (b_ih + b_hh).reshape(1, -1)))
    key, k1, k2 = jax.random.split(key, 3)
    lin_stdv = 1.0 / jnp.sqrt(n_hidden)
    params["cls_w"] = jax.random.uniform(k1, (n_hidden, n_classes), jnp.float32,
                                         -lin_stdv, lin_stdv)
    params["cls_b"] = jax.random.uniform(k2, (1, n_classes), jnp.float32,
                                         -lin_stdv, lin_stdv)
    return params


# ------------------------------ pure-JAX reference ----------------------------
def lstm_model_ref(x_bsf, params, n_hidden):
    x = jnp.transpose(x_bsf, (1, 0, 2)).astype(jnp.float32)
    for (w_ih, w_hh, b) in params["lstm"]:
        B = x.shape[1]

        def step(carry, x_t):
            h, c = carry
            gates = x_t @ w_ih + h @ w_hh + b[0]
            i, f, g, o = jnp.split(gates, 4, axis=-1)
            c = jax.nn.sigmoid(f) * c + jax.nn.sigmoid(i) * jnp.tanh(g)
            h = jax.nn.sigmoid(o) * jnp.tanh(c)
            return (h, c), h

        h0 = jnp.zeros((B, n_hidden), jnp.float32)
        (_, _), ys = jax.lax.scan(step, (h0, h0), x)
        x = ys
    return x[-1] @ params["cls_w"] + params["cls_b"]


# ------------------------------------ main ------------------------------------
if __name__ == "__main__":
    B, T, n_features = 2, 8, 4
    n_hidden, n_classes, n_layers = 64, 3, 5     # n_hidden=64 = module default

    key = jax.random.PRNGKey(0)
    key, kx = jax.random.split(key)
    x = jax.random.normal(kx, (B, T, n_features), jnp.float32)

    params = init_params(key, n_features, n_classes, n_hidden, n_layers)

    out = lstm_model_forward(x, params, n_hidden)
    out = jax.block_until_ready(out)

    ref = lstm_model_ref(x, params, n_hidden)
    assert out.shape == (B, n_classes)
    # Tolerance covers f32 MXU multi-pass accumulation-order differences and
    # the sigmoid-via-tanh reformulation (both well below 5e-4 at these shapes).
    assert jnp.allclose(out, ref, atol=5e-4, rtol=5e-4), "mismatch vs reference"

    print("KERNEL_OK")
</pallas_src>

<mosaic_0001>
module attributes {stable_mosaic.version = 11 : i64} {
  func.func @_fused_lstm_kernel(%arg0: memref<64x4xf32, #tpu.memory_space<vmem>>, %arg1: memref<4x256xf32, #tpu.memory_space<vmem>>, %arg2: memref<64x256xf32, #tpu.memory_space<vmem>>, %arg3: memref<1x256xf32, #tpu.memory_space<vmem>>, %arg4: memref<128x256xf32, #tpu.memory_space<vmem>>, %arg5: memref<1x256xf32, #tpu.memory_space<vmem>>, %arg6: memref<128x256xf32, #tpu.memory_space<vmem>>, %arg7: memref<1x256xf32, #tpu.memory_space<vmem>>, %arg8: memref<128x256xf32, #tpu.memory_space<vmem>>, %arg9: memref<1x256xf32, #tpu.memory_space<vmem>>, %arg10: memref<128x256xf32, #tpu.memory_space<vmem>>, %arg11: memref<1x256xf32, #tpu.memory_space<vmem>>, %arg12: memref<64x3xf32, #tpu.memory_space<vmem>>, %arg13: memref<1x3xf32, #tpu.memory_space<vmem>>, %arg14: memref<8x3xf32, #tpu.memory_space<vmem>>, %arg15: memref<64x256xf32, #tpu.memory_space<vmem>>) attributes {dimension_semantics = [], scalar_prefetch = 0 : i64, scratch_operands = 1 : i64, tpu.core_type = #tpu.core_type<tc>} {
    %c0 = arith.constant 0 : index
    %c0_0 = arith.constant 0 : index
    %0 = vector.load %arg0[%c0, %c0_0] : memref<64x4xf32, #tpu.memory_space<vmem>>, vector<64x4xf32>
    %c0_1 = arith.constant 0 : index
    %c0_2 = arith.constant 0 : index
    %1 = vector.load %arg1[%c0_1, %c0_2] : memref<4x256xf32, #tpu.memory_space<vmem>>, vector<4x256xf32>
    %cst = arith.constant dense<0.000000e+00> : vector<64x256xf32>
    %2 = tpu.matmul %0, %1, %cst {dimension_numbers = #tpu.dot_dimension_numbers<[1], [0], [0], [1], [0, 0, 1, 1], [], []>} : vector<64x4xf32>, vector<4x256xf32>, vector<64x256xf32> -> vector<64x256xf32>
    %c0_3 = arith.constant 0 : index
    %c0_4 = arith.constant 0 : index
    %3 = vector.load %arg3[%c0_3, %c0_4] : memref<1x256xf32, #tpu.memory_space<vmem>>, vector<1x256xf32>
    %4 = vector.broadcast %3 : vector<1x256xf32> to vector<64x256xf32>
    %5 = arith.addf %2, %4 : vector<64x256xf32>
    %c0_5 = arith.constant 0 : index
    %c0_6 = arith.constant 0 : index
    %6 = vector.load %arg15[%c0_5, %c0_6] : memref<64x256xf32, #tpu.memory_space<vmem>>, vector<64x256xf32>
    tpu.vector_store %arg15[%c0_5, %c0_6], %5 {strides = array<i32>} : memref<64x256xf32, #tpu.memory_space<vmem>>, vector<64x256xf32>,
    %7 = tpu.iota {dimensions = array<i32: 1>} : vector<8x256xi32>
    %c128_i32 = arith.constant 128 : i32
    %8 = vector.broadcast %c128_i32 : i32 to vector<8x256xi32>
    %9 = arith.cmpi sge, %7, %8 : vector<8x256xi32>
    %c192_i32 = arith.constant 192 : i32
    %10 = vector.broadcast %c192_i32 : i32 to vector<8x256xi32>
    %11 = arith.cmpi slt, %7, %10 : vector<8x256xi32>
    %12 = arith.andi %9, %11 : vector<8x256xi1>
    %cst_7 = arith.constant 1.000000e+00 : f32
    %cst_8 = arith.constant 5.000000e-01 : f32
    %13 = vector.broadcast %cst_7 : f32 to vector<8x256xf32>
    %14 = vector.broadcast %cst_8 : f32 to vector<8x256xf32>
    %15 = arith.select %12, %13, %14 : vector<8x256xi1>, vector<8x256xf32>
    %cst_9 = arith.constant 0.000000e+00 : f32
    %16 = vector.broadcast %cst_9 : f32 to vector<8x64xf32>
    %cst_10 = arith.constant 0.000000e+00 : f32
    %17 = vector.broadcast %cst_10 : f32 to vector<8x64xf32>
    %cst_11 = arith.constant 0.000000e+00 : f32
    %18 = vector.broadcast %cst_11 : f32 to vector<8x64xf32>
    %cst_12 = arith.constant 0.000000e+00 : f32
    %19 = vector.broadcast %cst_12 : f32 to vector<8x64xf32>
    %cst_13 = arith.constant 0.000000e+00 : f32
    %20 = vector.broadcast %cst_13 : f32 to vector<8x64xf32>
    %cst_14 = arith.constant 0.000000e+00 : f32
    %21 = vector.broadcast %cst_14 : f32 to vector<8x64xf32>
    %cst_15 = arith.constant 0.000000e+00 : f32
    %22 = vector.broadcast %cst_15 : f32 to vector<8x64xf32>
    %cst_16 = arith.constant 0.000000e+00 : f32
    %23 = vector.broadcast %cst_16 : f32 to vector<8x64xf32>
    %cst_17 = arith.constant 0.000000e+00 : f32
    %24 = vector.broadcast %cst_17 : f32 to vector<8x64xf32>
    %cst_18 = arith.constant 0.000000e+00 : f32
    %25 = vector.broadcast %cst_18 : f32 to vector<8x64xf32>
    %c0_19 = arith.constant 0 : index
    %c0_20 = arith.constant 0 : index
    %26 = vector.load %arg15[%c0_19, %c0_20] : memref<64x256xf32, #tpu.memory_space<vmem>>, vector<8x256xf32>
    %c0_21 = arith.constant 0 : index
    %c0_22 = arith.constant 0 : index
    %27 = vector.load %arg2[%c0_21, %c0_22] : memref<64x256xf32, #tpu.memory_space<vmem>>, vector<64x256xf32>
    %cst_23 = arith.constant dense<0.000000e+00> : vector<8x256xf32>
    %28 = tpu.matmul %16, %27, %cst_23 {dimension_numbers = #tpu.dot_dimension_numbers<[1], [0], [0], [1], [0, 0, 1, 1], [], []>} : vector<8x64xf32>, vector<64x256xf32>, vector<8x256xf32> -> vector<8x256xf32>
    %29 = arith.addf %26, %28 : vector<8x256xf32>
    %30 = arith.mulf %29, %15 : vector<8x256xf32>
    %31 = math.tanh %30 : vector<8x256xf32>
    %cst_24 = arith.constant 5.000000e-01 : f32
    %32 = vector.broadcast %cst_24 : f32 to vector<8x256xf32>
    %33 = arith.mulf %32, %31 : vector<8x256xf32>
    %cst_25 = arith.constant 5.000000e-01 : f32
    %34 = vector.broadcast %cst_25 : f32 to vector<8x256xf32>
    %35 = arith.addf %33, %34 : vector<8x256xf32>
    %36 = vector.extract_strided_slice %35 {offsets = [0, 0], sizes = [8, 64], strides = [1, 1]} : vector<8x256xf32> to vector<8x64xf32>
    %37 = vector.extract_strided_slice %35 {offsets = [0, 64], sizes = [8, 64], strides = [1, 1]} : vector<8x256xf32> to vector<8x64xf32>
    %38 = vector.extract_strided_slice %31 {offsets = [0, 128], sizes = [8, 64], strides = [1, 1]} : vector<8x256xf32> to vector<8x64xf32>
    %39 = vector.extract_strided_slice %35 {offsets = [0, 192], sizes = [8, 64], strides = [1, 1]} : vector<8x256xf32> to vector<8x64xf32>
    %40 = arith.mulf %37, %21 : vector<8x64xf32>
    %41 = arith.mulf %36, %38 : vector<8x64xf32>
    %42 = arith.addf %40, %41 : vector<8x64xf32>
    %43 = math.tanh %42 : vector<8x64xf32>
    %44 = arith.mulf %39, %43 : vector<8x64xf32>
    %c8 = arith.constant 8 : index
    %c0_26 = arith.constant 0 : index
    %45 = vector.load %arg15[%c8, %c0_26] : memref<64x256xf32, #tpu.memory_space<vmem>>, vector<8x256xf32>
    %c0_27 = arith.constant 0 : index
    %c0_28 = arith.constant 0 : index
    %46 = vector.load %arg2[%c0_27, %c0_28] : memref<64x256xf32, #tpu.memory_space<vmem>>, vector<64x256xf32>
    %cst_29 = arith.constant dense<0.000000e+00> : vector<8x256xf32>
    %47 = tpu.matmul %44, %46, %cst_29 {dimension_numbers = #tpu.dot_dimension_numbers<[1], [0], [0], [1], [0, 0, 1, 1], [], []>} : vector<8x64xf32>, vector<64x256xf32>, vector<8x256xf32> -> vector<8x256xf32>
    %48 = arith.addf %45, %47 : vector<8x256xf32>
    %49 = arith.mulf %48, %15 : vector<8x256xf32>
    %50 = math.tanh %49 : vector<8x256xf32>
    %cst_30 = arith.constant 5.000000e-01 : f32
    %51 = vector.broadcast %cst_30 : f32 to vector<8x256xf32>
    %52 = arith.mulf %51, %50 : vector<8x256xf32>
    %cst_31 = arith.constant 5.000000e-01 : f32
    %53 = vector.broadcast %cst_31 : f32 to vector<8x256xf32>
    %54 = arith.addf %52, %53 : vector<8x256xf32>
    %55 = vector.extract_strided_slice %54 {offsets = [0, 0], sizes = [8, 64], strides = [1, 1]} : vector<8x256xf32> to vector<8x64xf32>
    %56 = vector.extract_strided_slice %54 {offsets = [0, 64], sizes = [8, 64], strides = [1, 1]} : vector<8x256xf32> to vector<8x64xf32>
    %57 = vector.extract_strided_slice %50 {offsets = [0, 128], sizes = [8, 64], strides = [1, 1]} : vector<8x256xf32> to vector<8x64xf32>
    %58 = vector.extract_strided_slice %54 {offsets = [0, 192], sizes = [8, 64], strides = [1, 1]} : vector<8x256xf32> to vector<8x64xf32>
    %59 = arith.mulf %56, %42 : vector<8x64xf32>
    %60 = arith.mulf %55, %57 : vector<8x64xf32>
    %61 = arith.addf %59, %60 : vector<8x64xf32>
    %62 = math.tanh %61 : vector<8x64xf32>
    %63 = arith.mulf %58, %62 : vector<8x64xf32>
    %64 = tpu.concatenate %44, %17 in 1 : vector<8x64xf32>, vector<8x64xf32> -> vector<8x128xf32>
    %c0_32 = arith.constant 0 : index
    %c0_33 = arith.constant 0 : index
    %65 = vector.load %arg4[%c0_32, %c0_33] : memref<128x256xf32, #tpu.memory_space<vmem>>, vector<128x256xf32>
    %cst_34 = arith.constant dense<0.000000e+00> : vector<8x256xf32>
    %66 = tpu.matmul %64, %65, %cst_34 {dimension_numbers = #tpu.dot_dimension_numbers<[1], [0], [0], [1], [0, 0, 1, 1], [], []>} : vector<8x128xf32>, vector<128x256xf32>, vector<8x256xf32> -> vector<8x256xf32>
    %c0_35 = arith.constant 0 : index
    %c0_36 = arith.constant 0 : index
    %67 = vector.load %arg5[%c0_35, %c0_36] : memref<1x256xf32, #tpu.memory_space<vmem>>, vector<1x256xf32>
    %68 = vector.broadcast %67 : vector<1x256xf32> to vector<8x256xf32>
    %69 = arith.addf %66, %68 : vector<8x256xf32>
    %70 = arith.mulf %69, %15 : vector<8x256xf32>
    %71 = math.tanh %70 : vector<8x256xf32>
    %cst_37 = arith.constant 5.000000e-01 : f32
    %72 = vector.broadcast %cst_37 : f32 to vector<8x256xf32>
    %73 = arith.mulf %72, %71 : vector<8x256xf32>
    %cst_38 = arith.constant 5.000000e-01 : f32
    %74 = vector.broadcast %cst_38 : f32 to vector<8x256xf32>
    %75 = arith.addf %73, %74 : vector<8x256xf32>
    %76 = vector.extract_strided_slice %75 {offsets = [0, 0], sizes = [8, 64], strides = [1, 1]} : vector<8x256xf32> to vector<8x64xf32>
    %77 = vector.extract_strided_slice %75 {offsets = [0, 64], sizes = [8, 64], strides = [1, 1]} : vector<8x256xf32> to vector<8x64xf32>
    %78 = vector.extract_strided_slice %71 {offsets = [0, 128], sizes = [8, 64], strides = [1, 1]} : vector<8x256xf32> to vector<8x64xf32>
    %79 = vector.extract_strided_slice %75 {offsets = [0, 192], sizes = [8, 64], strides = [1, 1]} : vector<8x256xf32> to vector<8x64xf32>
    %80 = arith.mulf %77, %22 : vector<8x64xf32>
    %81 = arith.mulf %76, %78 : vector<8x64xf32>
    %82 = arith.addf %80, %81 : vector<8x64xf32>
    %83 = math.tanh %82 : vector<8x64xf32>
    %84 = arith.mulf %79, %83 : vector<8x64xf32>
    %c16 = arith.constant 16 : index
    %c0_39 = arith.constant 0 : index
    %85 = vector.load %arg15[%c16, %c0_39] : memref<64x256xf32, #tpu.memory_space<vmem>>, vector<8x256xf32>
    %c0_40 = arith.constant 0 : index
    %c0_41 = arith.constant 0 : index
    %86 = vector.load %arg2[%c0_40, %c0_41] : memref<64x256xf32, #tpu.memory_space<vmem>>, vector<64x256xf32>
    %cst_42 = arith.constant dense<0.000000e+00> : vector<8x256xf32>
    %87 = tpu.matmul %63, %86, %cst_42 {dimension_numbers = #tpu.dot_dimension_numbers<[1], [0], [0], [1], [0, 0, 1, 1], [], []>} : vector<8x64xf32>, vector<64x256xf32>, vector<8x256xf32> -> vector<8x256xf32>
    %88 = arith.addf %85, %87 : vector<8x256xf32>
    %89 = arith.mulf %88, %15 : vector<8x256xf32>
    %90 = math.tanh %89 : vector<8x256xf32>
    %cst_43 = arith.constant 5.000000e-01 : f32
    %91 = vector.broadcast %cst_43 : f32 to vector<8x256xf32>
    %92 = arith.mulf %91, %90 : vector<8x256xf32>
    %cst_44 = arith.constant 5.000000e-01 : f32
    %93 = vector.broadcast %cst_44 : f32 to vector<8x256xf32>
    %94 = arith.addf %92, %93 : vector<8x256xf32>
    %95 = vector.extract_strided_slice %94 {offsets = [0, 0], sizes = [8, 64], strides = [1, 1]} : vector<8x256xf32> to vector<8x64xf32>
    %96 = vector.extract_strided_slice %94 {offsets = [0, 64], sizes = [8, 64], strides = [1, 1]} : vector<8x256xf32> to vector<8x64xf32>
    %97 = vector.extract_strided_slice %90 {offsets = [0, 128], sizes = [8, 64], strides = [1, 1]} : vector<8x256xf32> to vector<8x64xf32>
    %98 = vector.extract_strided_slice %94 {offsets = [0, 192], sizes = [8, 64], strides = [1, 1]} : vector<8x256xf32> to vector<8x64xf32>
    %99 = arith.mulf %96, %61 : vector<8x64xf32>
    %100 = arith.mulf %95, %97 : vector<8x64xf32>
    %101 = arith.addf %99, %100 : vector<8x64xf32>
    %102 = math.tanh %101 : vector<8x64xf32>
    %103 = arith.mulf %98, %102 : vector<8x64xf32>
    %104 = tpu.concatenate %63, %84 in 1 : vector<8x64xf32>, vector<8x64xf32> -> vector<8x128xf32>
    %c0_45 = arith.constant 0 : index
    %c0_46 = arith.constant 0 : index
    %105 = vector.load %arg4[%c0_45, %c0_46] : memref<128x256xf32, #tpu.memory_space<vmem>>, vector<128x256xf32>
    %cst_47 = arith.constant dense<0.000000e+00> : vector<8x256xf32>
    %106 = tpu.matmul %104, %105, %cst_47 {dimension_numbers = #tpu.dot_dimension_numbers<[1], [0], [0], [1], [0, 0, 1, 1], [], []>} : vector<8x128xf32>, vector<128x256xf32>, vector<8x256xf32> -> vector<8x256xf32>
    %c0_48 = arith.constant 0 : index
    %c0_49 = arith.constant 0 : index
    %107 = vector.load %arg5[%c0_48, %c0_49] : memref<1x256xf32, #tpu.memory_space<vmem>>, vector<1x256xf32>
    %108 = vector.broadcast %107 : vector<1x256xf32> to vector<8x256xf32>
    %109 = arith.addf %106, %108 : vector<8x256xf32>
    %110 = arith.mulf %109, %15 : vector<8x256xf32>
    %111 = math.tanh %110 : vector<8x256xf32>
    %cst_50 = arith.constant 5.000000e-01 : f32
    %112 = vector.broadcast %cst_50 : f32 to vector<8x256xf32>
    %113 = arith.mulf %112, %111 : vector<8x256xf32>
    %cst_51 = arith.constant 5.000000e-01 : f32
    %114 = vector.broadcast %cst_51 : f32 to vector<8x256xf32>
    %115 = arith.addf %113, %114 : vector<8x256xf32>
    %116 = vector.extract_strided_slice %115 {offsets = [0, 0], sizes = [8, 64], strides = [1, 1]} : vector<8x256xf32> to vector<8x64xf32>
    %117 = vector.extract_strided_slice %115 {offsets = [0, 64], sizes = [8, 64], strides = [1, 1]} : vector<8x256xf32> to vector<8x64xf32>
    %118 = vector.extract_strided_slice %111 {offsets = [0, 128], sizes = [8, 64], strides = [1, 1]} : vector<8x256xf32> to vector<8x64xf32>
    %119 = vector.extract_strided_slice %115 {offsets = [0, 192], sizes = [8, 64], strides = [1, 1]} : vector<8x256xf32> to vector<8x64xf32>
    %120 = arith.mulf %117, %82 : vector<8x64xf32>
    %121 = arith.mulf %116, %118 : vector<8x64xf32>
    %122 = arith.addf %120, %121 : vector<8x64xf32>
    %123 = math.tanh %122 : vector<8x64xf32>
    %124 = arith.mulf %119, %123 : vector<8x64xf32>
    %125 = tpu.concatenate %84, %18 in 1 : vector<8x64xf32>, vector<8x64xf32> -> vector<8x128xf32>
    %c0_52 = arith.constant 0 : index
    %c0_53 = arith.constant 0 : index
    %126 = vector.load %arg6[%c0_52, %c0_53] : memref<128x256xf32, #tpu.memory_space<vmem>>, vector<128x256xf32>
    %cst_54 = arith.constant dense<0.000000e+00> : vector<8x256xf32>
    %127 = tpu.matmul %125, %126, %cst_54 {dimension_numbers = #tpu.dot_dimension_numbers<[1], [0], [0], [1], [0, 0, 1, 1], [], []>} : vector<8x128xf32>, vector<128x256xf32>, vector<8x256xf32> -> vector<8x256xf32>
    %c0_55 = arith.constant 0 : index
    %c0_56 = arith.constant 0 : index
    %128 = vector.load %arg7[%c0_55, %c0_56] : memref<1x256xf32, #tpu.memory_space<vmem>>, vector<1x256xf32>
    %129 = vector.broadcast %128 : vector<1x256xf32> to vector<8x256xf32>
    %130 = arith.addf %127, %129 : vector<8x256xf32>
    %131 = arith.mulf %130, %15 : vector<8x256xf32>
    %132 = math.tanh %131 : vector<8x256xf32>
    %cst_57 = arith.constant 5.000000e-01 : f32
    %133 = vector.broadcast %cst_57 : f32 to vector<8x256xf32>
    %134 = arith.mulf %133, %132 : vector<8x256xf32>
    %cst_58 = arith.constant 5.000000e-01 : f32
    %135 = vector.broadcast %cst_58 : f32 to vector<8x256xf32>
    %136 = arith.addf %134, %135 : vector<8x256xf32>
    %137 = vector.extract_strided_slice %136 {offsets = [0, 0], sizes = [8, 64], strides = [1, 1]} : vector<8x256xf32> to vector<8x64xf32>
    %138 = vector.extract_strided_slice %136 {offsets = [0, 64], sizes = [8, 64], strides = [1, 1]} : vector<8x256xf32> to vector<8x64xf32>
    %139 = vector.extract_strided_slice %132 {offsets = [0, 128], sizes = [8, 64], strides = [1, 1]} : vector<8x256xf32> to vector<8x64xf32>
    %140 = vector.extract_strided_slice %136 {offsets = [0, 192], sizes = [8, 64], strides = [1, 1]} : vector<8x256xf32> to vector<8x64xf32>
    %141 = arith.mulf %138, %23 : vector<8x64xf32>
    %142 = arith.mulf %137, %139 : vector<8x64xf32>
    %143 = arith.addf %141, %142 : vector<8x64xf32>
    %144 = math.tanh %143 : vector<8x64xf32>
    %145 = arith.mulf %140, %144 : vector<8x64xf32>
    %c24 = arith.constant 24 : index
    %c0_59 = arith.constant 0 : index
    %146 = vector.load %arg15[%c24, %c0_59] : memref<64x256xf32, #tpu.memory_space<vmem>>, vector<8x256xf32>
    %c0_60 = arith.constant 0 : index
    %c0_61 = arith.constant 0 : index
    %147 = vector.load %arg2[%c0_60, %c0_61] : memref<64x256xf32, #tpu.memory_space<vmem>>, vector<64x256xf32>
    %cst_62 = arith.constant dense<0.000000e+00> : vector<8x256xf32>
    %148 = tpu.matmul %103, %147, %cst_62 {dimension_numbers = #tpu.dot_dimension_numbers<[1], [0], [0], [1], [0, 0, 1, 1], [], []>} : vector<8x64xf32>, vector<64x256xf32>, vector<8x256xf32> -> vector<8x256xf32>
    %149 = arith.addf %146, %148 : vector<8x256xf32>
    %150 = arith.mulf %149, %15 : vector<8x256xf32>
    %151 = math.tanh %150 : vector<8x256xf32>
    %cst_63 = arith.constant 5.000000e-01 : f32
    %152 = vector.broadcast %cst_63 : f32 to vector<8x256xf32>
    %153 = arith.mulf %152, %151 : vector<8x256xf32>
    %cst_64 = arith.constant 5.000000e-01 : f32
    %154 = vector.broadcast %cst_64 : f32 to vector<8x256xf32>
    %155 = arith.addf %153, %154 : vector<8x256xf32>
    %156 = vector.extract_strided_slice %155 {offsets = [0, 0], sizes = [8, 64], strides = [1, 1]} : vector<8x256xf32> to vector<8x64xf32>
    %157 = vector.extract_strided_slice %155 {offsets = [0, 64], sizes = [8, 64], strides = [1, 1]} : vector<8x256xf32> to vector<8x64xf32>
    %158 = vector.extract_strided_slice %151 {offsets = [0, 128], sizes = [8, 64], strides = [1, 1]} : vector<8x256xf32> to vector<8x64xf32>
    %159 = vector.extract_strided_slice %155 {offsets = [0, 192], sizes = [8, 64], strides = [1, 1]} : vector<8x256xf32> to vector<8x64xf32>
    %160 = arith.mulf %157, %101 : vector<8x64xf32>
    %161 = arith.mulf %156, %158 : vector<8x64xf32>
    %162 = arith.addf %160, %161 : vector<8x64xf32>
    %163 = math.tanh %162 : vector<8x64xf32>
    %164 = arith.mulf %159, %163 : vector<8x64xf32>
    %165 = tpu.concatenate %103, %124 in 1 : vector<8x64xf32>, vector<8x64xf32> -> vector<8x128xf32>
    %c0_65 = arith.constant 0 : index
    %c0_66 = arith.constant 0 : index
    %166 = vector.load %arg4[%c0_65, %c0_66] : memref<128x256xf32, #tpu.memory_space<vmem>>, vector<128x256xf32>
    %cst_67 = arith.constant dense<0.000000e+00> : vector<8x256xf32>
    %167 = tpu.matmul %165, %166, %cst_67 {dimension_numbers = #tpu.dot_dimension_numbers<[1], [0], [0], [1], [0, 0, 1, 1], [], []>} : vector<8x128xf32>, vector<128x256xf32>, vector<8x256xf32> -> vector<8x256xf32>
    %c0_68 = arith.constant 0 : index
    %c0_69 = arith.constant 0 : index
    %168 = vector.load %arg5[%c0_68, %c0_69] : memref<1x256xf32, #tpu.memory_space<vmem>>, vector<1x256xf32>
    %169 = vector.broadcast %168 : vector<1x256xf32> to vector<8x256xf32>
    %170 = arith.addf %167, %169 : vector<8x256xf32>
    %171 = arith.mulf %170, %15 : vector<8x256xf32>
    %172 = math.tanh %171 : vector<8x256xf32>
    %cst_70 = arith.constant 5.000000e-01 : f32
    %173 = vector.broadcast %cst_70 : f32 to vector<8x256xf32>
    %174 = arith.mulf %173, %172 : vector<8x256xf32>
    %cst_71 = arith.constant 5.000000e-01 : f32
    %175 = vector.broadcast %cst_71 : f32 to vector<8x256xf32>
    %176 = arith.addf %174, %175 : vector<8x256xf32>
    %177 = vector.extract_strided_slice %176 {offsets = [0, 0], sizes = [8, 64], strides = [1, 1]} : vector<8x256xf32> to vector<8x64xf32>
    %178 = vector.extract_strided_slice %176 {offsets = [0, 64], sizes = [8, 64], strides = [1, 1]} : vector<8x256xf32> to vector<8x64xf32>
    %179 = vector.extract_strided_slice %172 {offsets = [0, 128], sizes = [8, 64], strides = [1, 1]} : vector<8x256xf32> to vector<8x64xf32>
    %180 = vector.extract_strided_slice %176 {offsets = [0, 192], sizes = [8, 64], strides = [1, 1]} : vector<8x256xf32> to vector<8x64xf32>
    %181 = arith.mulf %178, %122 : vector<8x64xf32>
    %182 = arith.mulf %177, %179 : vector<8x64xf32>
    %183 = arith.addf %181, %182 : vector<8x64xf32>
    %184 = math.tanh %183 : vector<8x64xf32>
    %185 = arith.mulf %180, %184 : vector<8x64xf32>
    %186 = tpu.concatenate %124, %145 in 1 : vector<8x64xf32>, vector<8x64xf32> -> vector<8x128xf32>
    %c0_72 = arith.constant 0 : index
    %c0_73 = arith.constant 0 : index
    %187 = vector.load %arg6[%c0_72, %c0_73] : memref<128x256xf32, #tpu.memory_space<vmem>>, vector<128x256xf32>
    %cst_74 = arith.constant dense<0.000000e+00> : vector<8x256xf32>
    %188 = tpu.matmul %186, %187, %cst_74 {dimension_numbers = #tpu.dot_dimension_numbers<[1], [0], [0], [1], [0, 0, 1, 1], [], []>} : vector<8x128xf32>, vector<128x256xf32>, vector<8x256xf32> -> vector<8x256xf32>
    %c0_75 = arith.constant 0 : index
    %c0_76 = arith.constant 0 : index
    %189 = vector.load %arg7[%c0_75, %c0_76] : memref<1x256xf32, #tpu.memory_space<vmem>>, vector<1x256xf32>
    %190 = vector.broadcast %189 : vector<1x256xf32> to vector<8x256xf32>
    %191 = arith.addf %188, %190 : vector<8x256xf32>
    %192 = arith.mulf %191, %15 : vector<8x256xf32>
    %193 = math.tanh %192 : vector<8x256xf32>
    %cst_77 = arith.constant 5.000000e-01 : f32
    %194 = vector.broadcast %cst_77 : f32 to vector<8x256xf32>
    %195 = arith.mulf %194, %193 : vector<8x256xf32>
    %cst_78 = arith.constant 5.000000e-01 : f32
    %196 = vector.broadcast %cst_78 : f32 to vector<8x256xf32>
    %197 = arith.addf %195, %196 : vector<8x256xf32>
    %198 = vector.extract_strided_slice %197 {offsets = [0, 0], sizes = [8, 64], strides = [1, 1]} : vector<8x256xf32> to vector<8x64xf32>
    %199 = vector.extract_strided_slice %197 {offsets = [0, 64], sizes = [8, 64], strides = [1, 1]} : vector<8x256xf32> to vector<8x64xf32>
    %200 = vector.extract_strided_slice %193 {offsets = [0, 128], sizes = [8, 64], strides = [1, 1]} : vector<8x256xf32> to vector<8x64xf32>
    %201 = vector.extract_strided_slice %197 {offsets = [0, 192], sizes = [8, 64], strides = [1, 1]} : vector<8x256xf32> to vector<8x64xf32>
    %202 = arith.mulf %199, %143 : vector<8x64xf32>
    %203 = arith.mulf %198, %200 : vector<8x64xf32>
    %204 = arith.addf %202, %203 : vector<8x64xf32>
    %205 = math.tanh %204 : vector<8x64xf32>
    %206 = arith.mulf %201, %205 : vector<8x64xf32>
    %207 = tpu.concatenate %145, %19 in 1 : vector<8x64xf32>, vector<8x64xf32> -> vector<8x128xf32>
    %c0_79 = arith.constant 0 : index
    %c0_80 = arith.constant 0 : index
    %208 = vector.load %arg8[%c0_79, %c0_80] : memref<128x256xf32, #tpu.memory_space<vmem>>, vector<128x256xf32>
    %cst_81 = arith.constant dense<0.000000e+00> : vector<8x256xf32>
    %209 = tpu.matmul %207, %208, %cst_81 {dimension_numbers = #tpu.dot_dimension_numbers<[1], [0], [0], [1], [0, 0, 1, 1], [], []>} : vector<8x128xf32>, vector<128x256xf32>, vector<8x256xf32> -> vector<8x256xf32>
    %c0_82 = arith.constant 0 : index
    %c0_83 = arith.constant 0 : index
    %210 = vector.load %arg9[%c0_82, %c0_83] : memref<1x256xf32, #tpu.memory_space<vmem>>, vector<1x256xf32>
    %211 = vector.broadcast %210 : vector<1x256xf32> to vector<8x256xf32>
    %212 = arith.addf %209, %211 : vector<8x256xf32>
    %213 = arith.mulf %212, %15 : vector<8x256xf32>
    %214 = math.tanh %213 : vector<8x256xf32>
    %cst_84 = arith.constant 5.000000e-01 : f32
    %215 = vector.broadcast %cst_84 : f32 to vector<8x256xf32>
    %216 = arith.mulf %215, %214 : vector<8x256xf32>
    %cst_85 = arith.constant 5.000000e-01 : f32
    %217 = vector.broadcast %cst_85 : f32 to vector<8x256xf32>
    %218 = arith.addf %216, %217 : vector<8x256xf32>
    %219 = vector.extract_strided_slice %218 {offsets = [0, 0], sizes = [8, 64], strides = [1, 1]} : vector<8x256xf32> to vector<8x64xf32>
    %220 = vector.extract_strided_slice %218 {offsets = [0, 64], sizes = [8, 64], strides = [1, 1]} : vector<8x256xf32> to vector<8x64xf32>
    %221 = vector.extract_strided_slice %214 {offsets = [0, 128], sizes = [8, 64], strides = [1, 1]} : vector<8x256xf32> to vector<8x64xf32>
    %222 = vector.extract_strided_slice %218 {offsets = [0, 192], sizes = [8, 64], strides = [1, 1]} : vector<8x256xf32> to vector<8x64xf32>
    %223 = arith.mulf %220, %24 : vector<8x64xf32>
    %224 = arith.mulf %219, %221 : vector<8x64xf32>
    %225 = arith.addf %223, %224 : vector<8x64xf32>
    %226 = math.tanh %225 : vector<8x64xf32>
    %227 = arith.mulf %222, %226 : vector<8x64xf32>
    %c32 = arith.constant 32 : index
    %c0_86 = arith.constant 0 : index
    %228 = vector.load %arg15[%c32, %c0_86] : memref<64x256xf32, #tpu.memory_space<vmem>>, vector<8x256xf32>
    %c0_87 = arith.constant 0 : index
    %c0_88 = arith.constant 0 : index
    %229 = vector.load %arg2[%c0_87, %c0_88] : memref<64x256xf32, #tpu.memory_space<vmem>>, vector<64x256xf32>
    %cst_89 = arith.constant dense<0.000000e+00> : vector<8x256xf32>
    %230 = tpu.matmul %164, %229, %cst_89 {dimension_numbers = #tpu.dot_dimension_numbers<[1], [0], [0], [1], [0, 0, 1, 1], [], []>} : vector<8x64xf32>, vector<64x256xf32>, vector<8x256xf32> -> vector<8x256xf32>
    %231 = arith.addf %228, %230 : vector<8x256xf32>
    %232 = arith.mulf %231, %15 : vector<8x256xf32>
    %233 = math.tanh %232 : vector<8x256xf32>
    %cst_90 = arith.constant 5.000000e-01 : f32
    %234 = vector.broadcast %cst_90 : f32 to vector<8x256xf32>
    %235 = arith.mulf %234, %233 : vector<8x256xf32>
    %cst_91 = arith.constant 5.000000e-01 : f32
    %236 = vector.broadcast %cst_91 : f32 to vector<8x256xf32>
    %237 = arith.addf %235, %236 : vector<8x256xf32>
    %238 = vector.extract_strided_slice %237 {offsets = [0, 0], sizes = [8, 64], strides = [1, 1]} : vector<8x256xf32> to vector<8x64xf32>
    %239 = vector.extract_strided_slice %237 {offsets = [0, 64], sizes = [8, 64], strides = [1, 1]} : vector<8x256xf32> to vector<8x64xf32>
    %240 = vector.extract_strided_slice %233 {offsets = [0, 128], sizes = [8, 64], strides = [1, 1]} : vector<8x256xf32> to vector<8x64xf32>
    %241 = vector.extract_strided_slice %237 {offsets = [0, 192], sizes = [8, 64], strides = [1, 1]} : vector<8x256xf32> to vector<8x64xf32>
    %242 = arith.mulf %239, %162 : vector<8x64xf32>
    %243 = arith.mulf %238, %240 : vector<8x64xf32>
    %244 = arith.addf %242, %243 : vector<8x64xf32>
    %245 = math.tanh %244 : vector<8x64xf32>
    %246 = arith.mulf %241, %245 : vector<8x64xf32>
    %247 = tpu.concatenate %164, %185 in 1 : vector<8x64xf32>, vector<8x64xf32> -> vector<8x128xf32>
    %c0_92 = arith.constant 0 : index
    %c0_93 = arith.constant 0 : index
    %248 = vector.load %arg4[%c0_92, %c0_93] : memref<128x256xf32, #tpu.memory_space<vmem>>, vector<128x256xf32>
    %cst_94 = arith.constant dense<0.000000e+00> : vector<8x256xf32>
    %249 = tpu.matmul %247, %248, %cst_94 {dimension_numbers = #tpu.dot_dimension_numbers<[1], [0], [0], [1], [0, 0, 1, 1], [], []>} : vector<8x128xf32>, vector<128x256xf32>, vector<8x256xf32> -> vector<8x256xf32>
    %c0_95 = arith.constant 0 : index
    %c0_96 = arith.constant 0 : index
    %250 = vector.load %arg5[%c0_95, %c0_96] : memref<1x256xf32, #tpu.memory_space<vmem>>, vector<1x256xf32>
    %251 = vector.broadcast %250 : vector<1x256xf32> to vector<8x256xf32>
    %252 = arith.addf %249, %251 : vector<8x256xf32>
    %253 = arith.mulf %252, %15 : vector<8x256xf32>
    %254 = math.tanh %253 : vector<8x256xf32>
    %cst_97 = arith.constant 5.000000e-01 : f32
    %255 = vector.broadcast %cst_97 : f32 to vector<8x256xf32>
    %256 = arith.mulf %255, %254 : vector<8x256xf32>
    %cst_98 = arith.constant 5.000000e-01 : f32
    %257 = vector.broadcast %cst_98 : f32 to vector<8x256xf32>
    %258 = arith.addf %256, %257 : vector<8x256xf32>
    %259 = vector.extract_strided_slice %258 {offsets = [0, 0], sizes = [8, 64], strides = [1, 1]} : vector<8x256xf32> to vector<8x64xf32>
    %260 = vector.extract_strided_slice %258 {offsets = [0, 64], sizes = [8, 64], strides = [1, 1]} : vector<8x256xf32> to vector<8x64xf32>
    %261 = vector.extract_strided_slice %254 {offsets = [0, 128], sizes = [8, 64], strides = [1, 1]} : vector<8x256xf32> to vector<8x64xf32>
    %262 = vector.extract_strided_slice %258 {offsets = [0, 192], sizes = [8, 64], strides = [1, 1]} : vector<8x256xf32> to vector<8x64xf32>
    %263 = arith.mulf %260, %183 : vector<8x64xf32>
    %264 = arith.mulf %259, %261 : vector<8x64xf32>
    %265 = arith.addf %263, %264 : vector<8x64xf32>
    %266 = math.tanh %265 : vector<8x64xf32>
    %267 = arith.mulf %262, %266 : vector<8x64xf32>
    %268 = tpu.concatenate %185, %206 in 1 : vector<8x64xf32>, vector<8x64xf32> -> vector<8x128xf32>
    %c0_99 = arith.constant 0 : index
    %c0_100 = arith.constant 0 : index
    %269 = vector.load %arg6[%c0_99, %c0_100] : memref<128x256xf32, #tpu.memory_space<vmem>>, vector<128x256xf32>
    %cst_101 = arith.constant dense<0.000000e+00> : vector<8x256xf32>
    %270 = tpu.matmul %268, %269, %cst_101 {dimension_numbers = #tpu.dot_dimension_numbers<[1], [0], [0], [1], [0, 0, 1, 1], [], []>} : vector<8x128xf32>, vector<128x256xf32>, vector<8x256xf32> -> vector<8x256xf32>
    %c0_102 = arith.constant 0 : index
    %c0_103 = arith.constant 0 : index
    %271 = vector.load %arg7[%c0_102, %c0_103] : memref<1x256xf32, #tpu.memory_space<vmem>>, vector<1x256xf32>
    %272 = vector.broadcast %271 : vector<1x256xf32> to vector<8x256xf32>
    %273 = arith.addf %270, %272 : vector<8x256xf32>
    %274 = arith.mulf %273, %15 : vector<8x256xf32>
    %275 = math.tanh %274 : vector<8x256xf32>
    %cst_104 = arith.constant 5.000000e-01 : f32
    %276 = vector.broadcast %cst_104 : f32 to vector<8x256xf32>
    %277 = arith.mulf %276, %275 : vector<8x256xf32>
    %cst_105 = arith.constant 5.000000e-01 : f32
    %278 = vector.broadcast %cst_105 : f32 to vector<8x256xf32>
    %279 = arith.addf %277, %278 : vector<8x256xf32>
    %280 = vector.extract_strided_slice %279 {offsets = [0, 0], sizes = [8, 64], strides = [1, 1]} : vector<8x256xf32> to vector<8x64xf32>
    %281 = vector.extract_strided_slice %279 {offsets = [0, 64], sizes = [8, 64], strides = [1, 1]} : vector<8x256xf32> to vector<8x64xf32>
    %282 = vector.extract_strided_slice %275 {offsets = [0, 128], sizes = [8, 64], strides = [1, 1]} : vector<8x256xf32> to vector<8x64xf32>
    %283 = vector.extract_strided_slice %279 {offsets = [0, 192], sizes = [8, 64], strides = [1, 1]} : vector<8x256xf32> to vector<8x64xf32>
    %284 = arith.mulf %281, %204 : vector<8x64xf32>
    %285 = arith.mulf %280, %282 : vector<8x64xf32>
    %286 = arith.addf %284, %285 : vector<8x64xf32>
    %287 = math.tanh %286 : vector<8x64xf32>
    %288 = arith.mulf %283, %287 : vector<8x64xf32>
    %289 = tpu.concatenate %206, %227 in 1 : vector<8x64xf32>, vector<8x64xf32> -> vector<8x128xf32>
    %c0_106 = arith.constant 0 : index
    %c0_107 = arith.constant 0 : index
    %290 = vector.load %arg8[%c0_106, %c0_107] : memref<128x256xf32, #tpu.memory_space<vmem>>, vector<128x256xf32>
    %cst_108 = arith.constant dense<0.000000e+00> : vector<8x256xf32>
    %291 = tpu.matmul %289, %290, %cst_108 {dimension_numbers = #tpu.dot_dimension_numbers<[1], [0], [0], [1], [0, 0, 1, 1], [], []>} : vector<8x128xf32>, vector<128x256xf32>, vector<8x256xf32> -> vector<8x256xf32>
    %c0_109 = arith.constant 0 : index
    %c0_110 = arith.constant 0 : index
    %292 = vector.load %arg9[%c0_109, %c0_110] : memref<1x256xf32, #tpu.memory_space<vmem>>, vector<1x256xf32>
    %293 = vector.broadcast %292 : vector<1x256xf32> to vector<8x256xf32>
    %294 = arith.addf %291, %293 : vector<8x256xf32>
    %295 = arith.mulf %294, %15 : vector<8x256xf32>
    %296 = math.tanh %295 : vector<8x256xf32>
    %cst_111 = arith.constant 5.000000e-01 : f32
    %297 = vector.broadcast %cst_111 : f32 to vector<8x256xf32>
    %298 = arith.mulf %297, %296 : vector<8x256xf32>
    %cst_112 = arith.constant 5.000000e-01 : f32
    %299 = vector.broadcast %cst_112 : f32 to vector<8x256xf32>
    %300 = arith.addf %298, %299 : vector<8x256xf32>
    %301 = vector.extract_strided_slice %300 {offsets = [0, 0], sizes = [8, 64], strides = [1, 1]} : vector<8x256xf32> to vector<8x64xf32>
    %302 = vector.extract_strided_slice %300 {offsets = [0, 64], sizes = [8, 64], strides = [1, 1]} : vector<8x256xf32> to vector<8x64xf32>
    %303 = vector.extract_strided_slice %296 {offsets = [0, 128], sizes = [8, 64], strides = [1, 1]} : vector<8x256xf32> to vector<8x64xf32>
    %304 = vector.extract_strided_slice %300 {offsets = [0, 192], sizes = [8, 64], strides = [1, 1]} : vector<8x256xf32> to vector<8x64xf32>
    %305 = arith.mulf %302, %225 : vector<8x64xf32>
    %306 = arith.mulf %301, %303 : vector<8x64xf32>
    %307 = arith.addf %305, %306 : vector<8x64xf32>
    %308 = math.tanh %307 : vector<8x64xf32>
    %309 = arith.mulf %304, %308 : vector<8x64xf32>
    %310 = tpu.concatenate %227, %20 in 1 : vector<8x64xf32>, vector<8x64xf32> -> vector<8x128xf32>
    %c0_113 = arith.constant 0 : index
    %c0_114 = arith.constant 0 : index
    %311 = vector.load %arg10[%c0_113, %c0_114] : memref<128x256xf32, #tpu.memory_space<vmem>>, vector<128x256xf32>
    %cst_115 = arith.constant dense<0.000000e+00> : vector<8x256xf32>
    %312 = tpu.matmul %310, %311, %cst_115 {dimension_numbers = #tpu.dot_dimension_numbers<[1], [0], [0], [1], [0, 0, 1, 1], [], []>} : vector<8x128xf32>, vector<128x256xf32>, vector<8x256xf32> -> vector<8x256xf32>
    %c0_116 = arith.constant 0 : index
    %c0_117 = arith.constant 0 : index
    %313 = vector.load %arg11[%c0_116, %c0_117] : memref<1x256xf32, #tpu.memory_space<vmem>>, vector<1x256xf32>
    %314 = vector.broadcast %313 : vector<1x256xf32> to vector<8x256xf32>
    %315 = arith.addf %312, %314 : vector<8x256xf32>
    %316 = arith.mulf %315, %15 : vector<8x256xf32>
    %317 = math.tanh %316 : vector<8x256xf32>
    %cst_118 = arith.constant 5.000000e-01 : f32
    %318 = vector.broadcast %cst_118 : f32 to vector<8x256xf32>
    %319 = arith.mulf %318, %317 : vector<8x256xf32>
    %cst_119 = arith.constant 5.000000e-01 : f32
    %320 = vector.broadcast %cst_119 : f32 to vector<8x256xf32>
    %321 = arith.addf %319, %320 : vector<8x256xf32>
    %322 = vector.extract_strided_slice %321 {offsets = [0, 0], sizes = [8, 64], strides = [1, 1]} : vector<8x256xf32> to vector<8x64xf32>
    %323 = vector.extract_strided_slice %321 {offsets = [0, 64], sizes = [8, 64], strides = [1, 1]} : vector<8x256xf32> to vector<8x64xf32>
    %324 = vector.extract_strided_slice %317 {offsets = [0, 128], sizes = [8, 64], strides = [1, 1]} : vector<8x256xf32> to vector<8x64xf32>
    %325 = vector.extract_strided_slice %321 {offsets = [0, 192], sizes = [8, 64], strides = [1, 1]} : vector<8x256xf32> to vector<8x64xf32>
    %326 = arith.mulf %323, %25 : vector<8x64xf32>
    %327 = arith.mulf %322, %324 : vector<8x64xf32>
    %328 = arith.addf %326, %327 : vector<8x64xf32>
    %329 = math.tanh %328 : vector<8x64xf32>
    %330 = arith.mulf %325, %329 : vector<8x64xf32>
    %c40 = arith.constant 40 : index
    %c0_120 = arith.constant 0 : index
    %331 = vector.load %arg15[%c40, %c0_120] : memref<64x256xf32, #tpu.memory_space<vmem>>, vector<8x256xf32>
    %c0_121 = arith.constant 0 : index
    %c0_122 = arith.constant 0 : index
    %332 = vector.load %arg2[%c0_121, %c0_122] : memref<64x256xf32, #tpu.memory_space<vmem>>, vector<64x256xf32>
    %cst_123 = arith.constant dense<0.000000e+00> : vector<8x256xf32>
    %333 = tpu.matmul %246, %332, %cst_123 {dimension_numbers = #tpu.dot_dimension_numbers<[1], [0], [0], [1], [0, 0, 1, 1], [], []>} : vector<8x64xf32>, vector<64x256xf32>, vector<8x256xf32> -> vector<8x256xf32>
    %334 = arith.addf %331, %333 : vector<8x256xf32>
    %335 = arith.mulf %334, %15 : vector<8x256xf32>
    %336 = math.tanh %335 : vector<8x256xf32>
    %cst_124 = arith.constant 5.000000e-01 : f32
    %337 = vector.broadcast %cst_124 : f32 to vector<8x256xf32>
    %338 = arith.mulf %337, %336 : vector<8x256xf32>
    %cst_125 = arith.constant 5.000000e-01 : f32
    %339 = vector.broadcast %cst_125 : f32 to vector<8x256xf32>
    %340 = arith.addf %338, %339 : vector<8x256xf32>
    %341 = vector.extract_strided_slice %340 {offsets = [0, 0], sizes = [8, 64], strides = [1, 1]} : vector<8x256xf32> to vector<8x64xf32>
    %342 = vector.extract_strided_slice %340 {offsets = [0, 64], sizes = [8, 64], strides = [1, 1]} : vector<8x256xf32> to vector<8x64xf32>
    %343 = vector.extract_strided_slice %336 {offsets = [0, 128], sizes = [8, 64], strides = [1, 1]} : vector<8x256xf32> to vector<8x64xf32>
    %344 = vector.extract_strided_slice %340 {offsets = [0, 192], sizes = [8, 64], strides = [1, 1]} : vector<8x256xf32> to vector<8x64xf32>
    %345 = arith.mulf %342, %244 : vector<8x64xf32>
    %346 = arith.mulf %341, %343 : vector<8x64xf32>
    %347 = arith.addf %345, %346 : vector<8x64xf32>
    %348 = math.tanh %347 : vector<8x64xf32>
    %349 = arith.mulf %344, %348 : vector<8x64xf32>
    %350 = tpu.concatenate %246, %267 in 1 : vector<8x64xf32>, vector<8x64xf32> -> vector<8x128xf32>
    %c0_126 = arith.constant 0 : index
    %c0_127 = arith.constant 0 : index
    %351 = vector.load %arg4[%c0_126, %c0_127] : memref<128x256xf32, #tpu.memory_space<vmem>>, vector<128x256xf32>
    %cst_128 = arith.constant dense<0.000000e+00> : vector<8x256xf32>
    %352 = tpu.matmul %350, %351, %cst_128 {dimension_numbers = #tpu.dot_dimension_numbers<[1], [0], [0], [1], [0, 0, 1, 1], [], []>} : vector<8x128xf32>, vector<128x256xf32>, vector<8x256xf32> -> vector<8x256xf32>
    %c0_129 = arith.constant 0 : index
    %c0_130 = arith.constant 0 : index
    %353 = vector.load %arg5[%c0_129, %c0_130] : memref<1x256xf32, #tpu.memory_space<vmem>>, vector<1x256xf32>
    %354 = vector.broadcast %353 : vector<1x256xf32> to vector<8x256xf32>
    %355 = arith.addf %352, %354 : vector<8x256xf32>
    %356 = arith.mulf %355, %15 : vector<8x256xf32>
    %357 = math.tanh %356 : vector<8x256xf32>
    %cst_131 = arith.constant 5.000000e-01 : f32
    %358 = vector.broadcast %cst_131 : f32 to vector<8x256xf32>
    %359 = arith.mulf %358, %357 : vector<8x256xf32>
    %cst_132 = arith.constant 5.000000e-01 : f32
    %360 = vector.broadcast %cst_132 : f32 to vector<8x256xf32>
    %361 = arith.addf %359, %360 : vector<8x256xf32>
    %362 = vector.extract_strided_slice %361 {offsets = [0, 0], sizes = [8, 64], strides = [1, 1]} : vector<8x256xf32> to vector<8x64xf32>
    %363 = vector.extract_strided_slice %361 {offsets = [0, 64], sizes = [8, 64], strides = [1, 1]} : vector<8x256xf32> to vector<8x64xf32>
    %364 = vector.extract_strided_slice %357 {offsets = [0, 128], sizes = [8, 64], strides = [1, 1]} : vector<8x256xf32> to vector<8x64xf32>
    %365 = vector.extract_strided_slice %361 {offsets = [0, 192], sizes = [8, 64], strides = [1, 1]} : vector<8x256xf32> to vector<8x64xf32>
    %366 = arith.mulf %363, %265 : vector<8x64xf32>
    %367 = arith.mulf %362, %364 : vector<8x64xf32>
    %368 = arith.addf %366, %367 : vector<8x64xf32>
    %369 = math.tanh %368 : vector<8x64xf32>
    %370 = arith.mulf %365, %369 : vector<8x64xf32>
    %371 = tpu.concatenate %267, %288 in 1 : vector<8x64xf32>, vector<8x64xf32> -> vector<8x128xf32>
    %c0_133 = arith.constant 0 : index
    %c0_134 = arith.constant 0 : index
    %372 = vector.load %arg6[%c0_133, %c0_134] : memref<128x256xf32, #tpu.memory_space<vmem>>, vector<128x256xf32>
    %cst_135 = arith.constant dense<0.000000e+00> : vector<8x256xf32>
    %373 = tpu.matmul %371, %372, %cst_135 {dimension_numbers = #tpu.dot_dimension_numbers<[1], [0], [0], [1], [0, 0, 1, 1], [], []>} : vector<8x128xf32>, vector<128x256xf32>, vector<8x256xf32> -> vector<8x256xf32>
    %c0_136 = arith.constant 0 : index
    %c0_137 = arith.constant 0 : index
    %374 = vector.load %arg7[%c0_136, %c0_137] : memref<1x256xf32, #tpu.memory_space<vmem>>, vector<1x256xf32>
    %375 = vector.broadcast %374 : vector<1x256xf32> to vector<8x256xf32>
    %376 = arith.addf %373, %375 : vector<8x256xf32>
    %377 = arith.mulf %376, %15 : vector<8x256xf32>
    %378 = math.tanh %377 : vector<8x256xf32>
    %cst_138 = arith.constant 5.000000e-01 : f32
    %379 = vector.broadcast %cst_138 : f32 to vector<8x256xf32>
    %380 = arith.mulf %379, %378 : vector<8x256xf32>
    %cst_139 = arith.constant 5.000000e-01 : f32
    %381 = vector.broadcast %cst_139 : f32 to vector<8x256xf32>
    %382 = arith.addf %380, %381 : vector<8x256xf32>
    %383 = vector.extract_strided_slice %382 {offsets = [0, 0], sizes = [8, 64], strides = [1, 1]} : vector<8x256xf32> to vector<8x64xf32>
    %384 = vector.extract_strided_slice %382 {offsets = [0, 64], sizes = [8, 64], strides = [1, 1]} : vector<8x256xf32> to vector<8x64xf32>
    %385 = vector.extract_strided_slice %378 {offsets = [0, 128], sizes = [8, 64], strides = [1, 1]} : vector<8x256xf32> to vector<8x64xf32>
    %386 = vector.extract_strided_slice %382 {offsets = [0, 192], sizes = [8, 64], strides = [1, 1]} : vector<8x256xf32> to vector<8x64xf32>
    %387 = arith.mulf %384, %286 : vector<8x64xf32>
    %388 = arith.mulf %383, %385 : vector<8x64xf32>
    %389 = arith.addf %387, %388 : vector<8x64xf32>
    %390 = math.tanh %389 : vector<8x64xf32>
    %391 = arith.mulf %386, %390 : vector<8x64xf32>
    %392 = tpu.concatenate %288, %309 in 1 : vector<8x64xf32>, vector<8x64xf32> -> vector<8x128xf32>
    %c0_140 = arith.constant 0 : index
    %c0_141 = arith.constant 0 : index
    %393 = vector.load %arg8[%c0_140, %c0_141] : memref<128x256xf32, #tpu.memory_space<vmem>>, vector<128x256xf32>
    %cst_142 = arith.constant dense<0.000000e+00> : vector<8x256xf32>
    %394 = tpu.matmul %392, %393, %cst_142 {dimension_numbers = #tpu.dot_dimension_numbers<[1], [0], [0], [1], [0, 0, 1, 1], [], []>} : vector<8x128xf32>, vector<128x256xf32>, vector<8x256xf32> -> vector<8x256xf32>
    %c0_143 = arith.constant 0 : index
    %c0_144 = arith.constant 0 : index
    %395 = vector.load %arg9[%c0_143, %c0_144] : memref<1x256xf32, #tpu.memory_space<vmem>>, vector<1x256xf32>
    %396 = vector.broadcast %395 : vector<1x256xf32> to vector<8x256xf32>
    %397 = arith.addf %394, %396 : vector<8x256xf32>
    %398 = arith.mulf %397, %15 : vector<8x256xf32>
    %399 = math.tanh %398 : vector<8x256xf32>
    %cst_145 = arith.constant 5.000000e-01 : f32
    %400 = vector.broadcast %cst_145 : f32 to vector<8x256xf32>
    %401 = arith.mulf %400, %399 : vector<8x256xf32>
    %cst_146 = arith.constant 5.000000e-01 : f32
    %402 = vector.broadcast %cst_146 : f32 to vector<8x256xf32>
    %403 = arith.addf %401, %402 : vector<8x256xf32>
    %404 = vector.extract_strided_slice %403 {offsets = [0, 0], sizes = [8, 64], strides = [1, 1]} : vector<8x256xf32> to vector<8x64xf32>
    %405 = vector.extract_strided_slice %403 {offsets = [0, 64], sizes = [8, 64], strides = [1, 1]} : vector<8x256xf32> to vector<8x64xf32>
    %406 = vector.extract_strided_slice %399 {offsets = [0, 128], sizes = [8, 64], strides = [1, 1]} : vector<8x256xf32> to vector<8x64xf32>
    %407 = vector.extract_strided_slice %403 {offsets = [0, 192], sizes = [8, 64], strides = [1, 1]} : vector<8x256xf32> to vector<8x64xf32>
    %408 = arith.mulf %405, %307 : vector<8x64xf32>
    %409 = arith.mulf %404, %406 : vector<8x64xf32>
    %410 = arith.addf %408, %409 : vector<8x64xf32>
    %411 = math.tanh %410 : vector<8x64xf32>
    %412 = arith.mulf %407, %411 : vector<8x64xf32>
    %413 = tpu.concatenate %309, %330 in 1 : vector<8x64xf32>, vector<8x64xf32> -> vector<8x128xf32>
    %c0_147 = arith.constant 0 : index
    %c0_148 = arith.constant 0 : index
    %414 = vector.load %arg10[%c0_147, %c0_148] : memref<128x256xf32, #tpu.memory_space<vmem>>, vector<128x256xf32>
    %cst_149 = arith.constant dense<0.000000e+00> : vector<8x256xf32>
    %415 = tpu.matmul %413, %414, %cst_149 {dimension_numbers = #tpu.dot_dimension_numbers<[1], [0], [0], [1], [0, 0, 1, 1], [], []>} : vector<8x128xf32>, vector<128x256xf32>, vector<8x256xf32> -> vector<8x256xf32>
    %c0_150 = arith.constant 0 : index
    %c0_151 = arith.constant 0 : index
    %416 = vector.load %arg11[%c0_150, %c0_151] : memref<1x256xf32, #tpu.memory_space<vmem>>, vector<1x256xf32>
    %417 = vector.broadcast %416 : vector<1x256xf32> to vector<8x256xf32>
    %418 = arith.addf %415, %417 : vector<8x256xf32>
    %419 = arith.mulf %418, %15 : vector<8x256xf32>
    %420 = math.tanh %419 : vector<8x256xf32>
    %cst_152 = arith.constant 5.000000e-01 : f32
    %421 = vector.broadcast %cst_152 : f32 to vector<8x256xf32>
    %422 = arith.mulf %421, %420 : vector<8x256xf32>
    %cst_153 = arith.constant 5.000000e-01 : f32
    %423 = vector.broadcast %cst_153 : f32 to vector<8x256xf32>
    %424 = arith.addf %422, %423 : vector<8x256xf32>
    %425 = vector.extract_strided_slice %424 {offsets = [0, 0], sizes = [8, 64], strides = [1, 1]} : vector<8x256xf32> to vector<8x64xf32>
    %426 = vector.extract_strided_slice %424 {offsets = [0, 64], sizes = [8, 64], strides = [1, 1]} : vector<8x256xf32> to vector<8x64xf32>
    %427 = vector.extract_strided_slice %420 {offsets = [0, 128], sizes = [8, 64], strides = [1, 1]} : vector<8x256xf32> to vector<8x64xf32>
    %428 = vector.extract_strided_slice %424 {offsets = [0, 192], sizes = [8, 64], strides = [1, 1]} : vector<8x256xf32> to vector<8x64xf32>
    %429 = arith.mulf %426, %328 : vector<8x64xf32>
    %430 = arith.mulf %425, %427 : vector<8x64xf32>
    %431 = arith.addf %429, %430 : vector<8x64xf32>
    %432 = math.tanh %431 : vector<8x64xf32>
    %433 = arith.mulf %428, %432 : vector<8x64xf32>
    %c48 = arith.constant 48 : index
    %c0_154 = arith.constant 0 : index
    %434 = vector.load %arg15[%c48, %c0_154] : memref<64x256xf32, #tpu.memory_space<vmem>>, vector<8x256xf32>
    %c0_155 = arith.constant 0 : index
    %c0_156 = arith.constant 0 : index
    %435 = vector.load %arg2[%c0_155, %c0_156] : memref<64x256xf32, #tpu.memory_space<vmem>>, vector<64x256xf32>
    %cst_157 = arith.constant dense<0.000000e+00> : vector<8x256xf32>
    %436 = tpu.matmul %349, %435, %cst_157 {dimension_numbers = #tpu.dot_dimension_numbers<[1], [0], [0], [1], [0, 0, 1, 1], [], []>} : vector<8x64xf32>, vector<64x256xf32>, vector<8x256xf32> -> vector<8x256xf32>
    %437 = arith.addf %434, %436 : vector<8x256xf32>
    %438 = arith.mulf %437, %15 : vector<8x256xf32>
    %439 = math.tanh %438 : vector<8x256xf32>
    %cst_158 = arith.constant 5.000000e-01 : f32
    %440 = vector.broadcast %cst_158 : f32 to vector<8x256xf32>
    %441 = arith.mulf %440, %439 : vector<8x256xf32>
    %cst_159 = arith.constant 5.000000e-01 : f32
    %442 = vector.broadcast %cst_159 : f32 to vector<8x256xf32>
    %443 = arith.addf %441, %442 : vector<8x256xf32>
    %444 = vector.extract_strided_slice %443 {offsets = [0, 0], sizes = [8, 64], strides = [1, 1]} : vector<8x256xf32> to vector<8x64xf32>
    %445 = vector.extract_strided_slice %443 {offsets = [0, 64], sizes = [8, 64], strides = [1, 1]} : vector<8x256xf32> to vector<8x64xf32>
    %446 = vector.extract_strided_slice %439 {offsets = [0, 128], sizes = [8, 64], strides = [1, 1]} : vector<8x256xf32> to vector<8x64xf32>
    %447 = vector.extract_strided_slice %443 {offsets = [0, 192], sizes = [8, 64], strides = [1, 1]} : vector<8x256xf32> to vector<8x64xf32>
    %448 = arith.mulf %445, %347 : vector<8x64xf32>
    %449 = arith.mulf %444, %446 : vector<8x64xf32>
    %450 = arith.addf %448, %449 : vector<8x64xf32>
    %451 = math.tanh %450 : vector<8x64xf32>
    %452 = arith.mulf %447, %451 : vector<8x64xf32>
    %453 = tpu.concatenate %349, %370 in 1 : vector<8x64xf32>, vector<8x64xf32> -> vector<8x128xf32>
    %c0_160 = arith.constant 0 : index
    %c0_161 = arith.constant 0 : index
    %454 = vector.load %arg4[%c0_160, %c0_161] : memref<128x256xf32, #tpu.memory_space<vmem>>, vector<128x256xf32>
    %cst_162 = arith.constant dense<0.000000e+00> : vector<8x256xf32>
    %455 = tpu.matmul %453, %454, %cst_162 {dimension_numbers = #tpu.dot_dimension_numbers<[1], [0], [0], [1], [0, 0, 1, 1], [], []>} : vector<8x128xf32>, vector<128x256xf32>, vector<8x256xf32> -> vector<8x256xf32>
    %c0_163 = arith.constant 0 : index
    %c0_164 = arith.constant 0 : index
    %456 = vector.load %arg5[%c0_163, %c0_164] : memref<1x256xf32, #tpu.memory_space<vmem>>, vector<1x256xf32>
    %457 = vector.broadcast %456 : vector<1x256xf32> to vector<8x256xf32>
    %458 = arith.addf %455, %457 : vector<8x256xf32>
    %459 = arith.mulf %458, %15 : vector<8x256xf32>
    %460 = math.tanh %459 : vector<8x256xf32>
    %cst_165 = arith.constant 5.000000e-01 : f32
    %461 = vector.broadcast %cst_165 : f32 to vector<8x256xf32>
    %462 = arith.mulf %461, %460 : vector<8x256xf32>
    %cst_166 = arith.constant 5.000000e-01 : f32
    %463 = vector.broadcast %cst_166 : f32 to vector<8x256xf32>
    %464 = arith.addf %462, %463 : vector<8x256xf32>
    %465 = vector.extract_strided_slice %464 {offsets = [0, 0], sizes = [8, 64], strides = [1, 1]} : vector<8x256xf32> to vector<8x64xf32>
    %466 = vector.extract_strided_slice %464 {offsets = [0, 64], sizes = [8, 64], strides = [1, 1]} : vector<8x256xf32> to vector<8x64xf32>
    %467 = vector.extract_strided_slice %460 {offsets = [0, 128], sizes = [8, 64], strides = [1, 1]} : vector<8x256xf32> to vector<8x64xf32>
    %468 = vector.extract_strided_slice %464 {offsets = [0, 192], sizes = [8, 64], strides = [1, 1]} : vector<8x256xf32> to vector<8x64xf32>
    %469 = arith.mulf %466, %368 : vector<8x64xf32>
    %470 = arith.mulf %465, %467 : vector<8x64xf32>
    %471 = arith.addf %469, %470 : vector<8x64xf32>
    %472 = math.tanh %471 : vector<8x64xf32>
    %473 = arith.mulf %468, %472 : vector<8x64xf32>
    %474 = tpu.concatenate %370, %391 in 1 : vector<8x64xf32>, vector<8x64xf32> -> vector<8x128xf32>
    %c0_167 = arith.constant 0 : index
    %c0_168 = arith.constant 0 : index
    %475 = vector.load %arg6[%c0_167, %c0_168] : memref<128x256xf32, #tpu.memory_space<vmem>>, vector<128x256xf32>
    %cst_169 = arith.constant dense<0.000000e+00> : vector<8x256xf32>
    %476 = tpu.matmul %474, %475, %cst_169 {dimension_numbers = #tpu.dot_dimension_numbers<[1], [0], [0], [1], [0, 0, 1, 1], [], []>} : vector<8x128xf32>, vector<128x256xf32>, vector<8x256xf32> -> vector<8x256xf32>
    %c0_170 = arith.constant 0 : index
    %c0_171 = arith.constant 0 : index
    %477 = vector.load %arg7[%c0_170, %c0_171] : memref<1x256xf32, #tpu.memory_space<vmem>>, vector<1x256xf32>
    %478 = vector.broadcast %477 : vector<1x256xf32> to vector<8x256xf32>
    %479 = arith.addf %476, %478 : vector<8x256xf32>
    %480 = arith.mulf %479, %15 : vector<8x256xf32>
    %481 = math.tanh %480 : vector<8x256xf32>
    %cst_172 = arith.constant 5.000000e-01 : f32
    %482 = vector.broadcast %cst_172 : f32 to vector<8x256xf32>
    %483 = arith.mulf %482, %481 : vector<8x256xf32>
    %cst_173 = arith.constant 5.000000e-01 : f32
    %484 = vector.broadcast %cst_173 : f32 to vector<8x256xf32>
    %485 = arith.addf %483, %484 : vector<8x256xf32>
    %486 = vector.extract_strided_slice %485 {offsets = [0, 0], sizes = [8, 64], strides = [1, 1]} : vector<8x256xf32> to vector<8x64xf32>
    %487 = vector.extract_strided_slice %485 {offsets = [0, 64], sizes = [8, 64], strides = [1, 1]} : vector<8x256xf32> to vector<8x64xf32>
    %488 = vector.extract_strided_slice %481 {offsets = [0, 128], sizes = [8, 64], strides = [1, 1]} : vector<8x256xf32> to vector<8x64xf32>
    %489 = vector.extract_strided_slice %485 {offsets = [0, 192], sizes = [8, 64], strides = [1, 1]} : vector<8x256xf32> to vector<8x64xf32>
    %490 = arith.mulf %487, %389 : vector<8x64xf32>
    %491 = arith.mulf %486, %488 : vector<8x64xf32>
    %492 = arith.addf %490, %491 : vector<8x64xf32>
    %493 = math.tanh %492 : vector<8x64xf32>
    %494 = arith.mulf %489, %493 : vector<8x64xf32>
    %495 = tpu.concatenate %391, %412 in 1 : vector<8x64xf32>, vector<8x64xf32> -> vector<8x128xf32>
    %c0_174 = arith.constant 0 : index
    %c0_175 = arith.constant 0 : index
    %496 = vector.load %arg8[%c0_174, %c0_175] : memref<128x256xf32, #tpu.memory_space<vmem>>, vector<128x256xf32>
    %cst_176 = arith.constant dense<0.000000e+00> : vector<8x256xf32>
    %497 = tpu.matmul %495, %496, %cst_176 {dimension_numbers = #tpu.dot_dimension_numbers<[1], [0], [0], [1], [0, 0, 1, 1], [], []>} : vector<8x128xf32>, vector<128x256xf32>, vector<8x256xf32> -> vector<8x256xf32>
    %c0_177 = arith.constant 0 : index
    %c0_178 = arith.constant 0 : index
    %498 = vector.load %arg9[%c0_177, %c0_178] : memref<1x256xf32, #tpu.memory_space<vmem>>, vector<1x256xf32>
    %499 = vector.broadcast %498 : vector<1x256xf32> to vector<8x256xf32>
    %500 = arith.addf %497, %499 : vector<8x256xf32>
    %501 = arith.mulf %500, %15 : vector<8x256xf32>
    %502 = math.tanh %501 : vector<8x256xf32>
    %cst_179 = arith.constant 5.000000e-01 : f32
    %503 = vector.broadcast %cst_179 : f32 to vector<8x256xf32>
    %504 = arith.mulf %503, %502 : vector<8x256xf32>
    %cst_180 = arith.constant 5.000000e-01 : f32
    %505 = vector.broadcast %cst_180 : f32 to vector<8x256xf32>
    %506 = arith.addf %504, %505 : vector<8x256xf32>
    %507 = vector.extract_strided_slice %506 {offsets = [0, 0], sizes = [8, 64], strides = [1, 1]} : vector<8x256xf32> to vector<8x64xf32>
    %508 = vector.extract_strided_slice %506 {offsets = [0, 64], sizes = [8, 64], strides = [1, 1]} : vector<8x256xf32> to vector<8x64xf32>
    %509 = vector.extract_strided_slice %502 {offsets = [0, 128], sizes = [8, 64], strides = [1, 1]} : vector<8x256xf32> to vector<8x64xf32>
    %510 = vector.extract_strided_slice %506 {offsets = [0, 192], sizes = [8, 64], strides = [1, 1]} : vector<8x256xf32> to vector<8x64xf32>
    %511 = arith.mulf %508, %410 : vector<8x64xf32>
    %512 = arith.mulf %507, %509 : vector<8x64xf32>
    %513 = arith.addf %511, %512 : vector<8x64xf32>
    %514 = math.tanh %513 : vector<8x64xf32>
    %515 = arith.mulf %510, %514 : vector<8x64xf32>
    %516 = tpu.concatenate %412, %433 in 1 : vector<8x64xf32>, vector<8x64xf32> -> vector<8x128xf32>
    %c0_181 = arith.constant 0 : index
    %c0_182 = arith.constant 0 : index
    %517 = vector.load %arg10[%c0_181, %c0_182] : memref<128x256xf32, #tpu.memory_space<vmem>>, vector<128x256xf32>
    %cst_183 = arith.constant dense<0.000000e+00> : vector<8x256xf32>
    %518 = tpu.matmul %516, %517, %cst_183 {dimension_numbers = #tpu.dot_dimension_numbers<[1], [0], [0], [1], [0, 0, 1, 1], [], []>} : vector<8x128xf32>, vector<128x256xf32>, vector<8x256xf32> -> vector<8x256xf32>
    %c0_184 = arith.constant 0 : index
    %c0_185 = arith.constant 0 : index
    %519 = vector.load %arg11[%c0_184, %c0_185] : memref<1x256xf32, #tpu.memory_space<vmem>>, vector<1x256xf32>
    %520 = vector.broadcast %519 : vector<1x256xf32> to vector<8x256xf32>
    %521 = arith.addf %518, %520 : vector<8x256xf32>
    %522 = arith.mulf %521, %15 : vector<8x256xf32>
    %523 = math.tanh %522 : vector<8x256xf32>
    %cst_186 = arith.constant 5.000000e-01 : f32
    %524 = vector.broadcast %cst_186 : f32 to vector<8x256xf32>
    %525 = arith.mulf %524, %523 : vector<8x256xf32>
    %cst_187 = arith.constant 5.000000e-01 : f32
    %526 = vector.broadcast %cst_187 : f32 to vector<8x256xf32>
    %527 = arith.addf %525, %526 : vector<8x256xf32>
    %528 = vector.extract_strided_slice %527 {offsets = [0, 0], sizes = [8, 64], strides = [1, 1]} : vector<8x256xf32> to vector<8x64xf32>
    %529 = vector.extract_strided_slice %527 {offsets = [0, 64], sizes = [8, 64], strides = [1, 1]} : vector<8x256xf32> to vector<8x64xf32>
    %530 = vector.extract_strided_slice %523 {offsets = [0, 128], sizes = [8, 64], strides = [1, 1]} : vector<8x256xf32> to vector<8x64xf32>
    %531 = vector.extract_strided_slice %527 {offsets = [0, 192], sizes = [8, 64], strides = [1, 1]} : vector<8x256xf32> to vector<8x64xf32>
    %532 = arith.mulf %529, %431 : vector<8x64xf32>
    %533 = arith.mulf %528, %530 : vector<8x64xf32>
    %534 = arith.addf %532, %533 : vector<8x64xf32>
    %535 = math.tanh %534 : vector<8x64xf32>
    %536 = arith.mulf %531, %535 : vector<8x64xf32>
    %c56 = arith.constant 56 : index
    %c0_188 = arith.constant 0 : index
    %537 = vector.load %arg15[%c56, %c0_188] : memref<64x256xf32, #tpu.memory_space<vmem>>, vector<8x256xf32>
    %c0_189 = arith.constant 0 : index
    %c0_190 = arith.constant 0 : index
    %538 = vector.load %arg2[%c0_189, %c0_190] : memref<64x256xf32, #tpu.memory_space<vmem>>, vector<64x256xf32>
    %cst_191 = arith.constant dense<0.000000e+00> : vector<8x256xf32>
    %539 = tpu.matmul %452, %538, %cst_191 {dimension_numbers = #tpu.dot_dimension_numbers<[1], [0], [0], [1], [0, 0, 1, 1], [], []>} : vector<8x64xf32>, vector<64x256xf32>, vector<8x256xf32> -> vector<8x256xf32>
    %540 = arith.addf %537, %539 : vector<8x256xf32>
    %541 = arith.mulf %540, %15 : vector<8x256xf32>
    %542 = math.tanh %541 : vector<8x256xf32>
    %cst_192 = arith.constant 5.000000e-01 : f32
    %543 = vector.broadcast %cst_192 : f32 to vector<8x256xf32>
    %544 = arith.mulf %543, %542 : vector<8x256xf32>
    %cst_193 = arith.constant 5.000000e-01 : f32
    %545 = vector.broadcast %cst_193 : f32 to vector<8x256xf32>
    %546 = arith.addf %544, %545 : vector<8x256xf32>
    %547 = vector.extract_strided_slice %546 {offsets = [0, 0], sizes = [8, 64], strides = [1, 1]} : vector<8x256xf32> to vector<8x64xf32>
    %548 = vector.extract_strided_slice %546 {offsets = [0, 64], sizes = [8, 64], strides = [1, 1]} : vector<8x256xf32> to vector<8x64xf32>
    %549 = vector.extract_strided_slice %542 {offsets = [0, 128], sizes = [8, 64], strides = [1, 1]} : vector<8x256xf32> to vector<8x64xf32>
    %550 = vector.extract_strided_slice %546 {offsets = [0, 192], sizes = [8, 64], strides = [1, 1]} : vector<8x256xf32> to vector<8x64xf32>
    %551 = arith.mulf %548, %450 : vector<8x64xf32>
    %552 = arith.mulf %547, %549 : vector<8x64xf32>
    %553 = arith.addf %551, %552 : vector<8x64xf32>
    %554 = math.tanh %553 : vector<8x64xf32>
    %555 = arith.mulf %550, %554 : vector<8x64xf32>
    %556 = tpu.concatenate %452, %473 in 1 : vector<8x64xf32>, vector<8x64xf32> -> vector<8x128xf32>
    %c0_194 = arith.constant 0 : index
    %c0_195 = arith.constant 0 : index
    %557 = vector.load %arg4[%c0_194, %c0_195] : memref<128x256xf32, #tpu.memory_space<vmem>>, vector<128x256xf32>
    %cst_196 = arith.constant dense<0.000000e+00> : vector<8x256xf32>
    %558 = tpu.matmul %556, %557, %cst_196 {dimension_numbers = #tpu.dot_dimension_numbers<[1], [0], [0], [1], [0, 0, 1, 1], [], []>} : vector<8x128xf32>, vector<128x256xf32>, vector<8x256xf32> -> vector<8x256xf32>
    %c0_197 = arith.constant 0 : index
    %c0_198 = arith.constant 0 : index
    %559 = vector.load %arg5[%c0_197, %c0_198] : memref<1x256xf32, #tpu.memory_space<vmem>>, vector<1x256xf32>
    %560 = vector.broadcast %559 : vector<1x256xf32> to vector<8x256xf32>
    %561 = arith.addf %558, %560 : vector<8x256xf32>
    %562 = arith.mulf %561, %15 : vector<8x256xf32>
    %563 = math.tanh %562 : vector<8x256xf32>
    %cst_199 = arith.constant 5.000000e-01 : f32
    %564 = vector.broadcast %cst_199 : f32 to vector<8x256xf32>
    %565 = arith.mulf %564, %563 : vector<8x256xf32>
    %cst_200 = arith.constant 5.000000e-01 : f32
    %566 = vector.broadcast %cst_200 : f32 to vector<8x256xf32>
    %567 = arith.addf %565, %566 : vector<8x256xf32>
    %568 = vector.extract_strided_slice %567 {offsets = [0, 0], sizes = [8, 64], strides = [1, 1]} : vector<8x256xf32> to vector<8x64xf32>
    %569 = vector.extract_strided_slice %567 {offsets = [0, 64], sizes = [8, 64], strides = [1, 1]} : vector<8x256xf32> to vector<8x64xf32>
    %570 = vector.extract_strided_slice %563 {offsets = [0, 128], sizes = [8, 64], strides = [1, 1]} : vector<8x256xf32> to vector<8x64xf32>
    %571 = vector.extract_strided_slice %567 {offsets = [0, 192], sizes = [8, 64], strides = [1, 1]} : vector<8x256xf32> to vector<8x64xf32>
    %572 = arith.mulf %569, %471 : vector<8x64xf32>
    %573 = arith.mulf %568, %570 : vector<8x64xf32>
    %574 = arith.addf %572, %573 : vector<8x64xf32>
    %575 = math.tanh %574 : vector<8x64xf32>
    %576 = arith.mulf %571, %575 : vector<8x64xf32>
    %577 = tpu.concatenate %473, %494 in 1 : vector<8x64xf32>, vector<8x64xf32> -> vector<8x128xf32>
    %c0_201 = arith.constant 0 : index
    %c0_202 = arith.constant 0 : index
    %578 = vector.load %arg6[%c0_201, %c0_202] : memref<128x256xf32, #tpu.memory_space<vmem>>, vector<128x256xf32>
    %cst_203 = arith.constant dense<0.000000e+00> : vector<8x256xf32>
    %579 = tpu.matmul %577, %578, %cst_203 {dimension_numbers = #tpu.dot_dimension_numbers<[1], [0], [0], [1], [0, 0, 1, 1], [], []>} : vector<8x128xf32>, vector<128x256xf32>, vector<8x256xf32> -> vector<8x256xf32>
    %c0_204 = arith.constant 0 : index
    %c0_205 = arith.constant 0 : index
    %580 = vector.load %arg7[%c0_204, %c0_205] : memref<1x256xf32, #tpu.memory_space<vmem>>, vector<1x256xf32>
    %581 = vector.broadcast %580 : vector<1x256xf32> to vector<8x256xf32>
    %582 = arith.addf %579, %581 : vector<8x256xf32>
    %583 = arith.mulf %582, %15 : vector<8x256xf32>
    %584 = math.tanh %583 : vector<8x256xf32>
    %cst_206 = arith.constant 5.000000e-01 : f32
    %585 = vector.broadcast %cst_206 : f32 to vector<8x256xf32>
    %586 = arith.mulf %585, %584 : vector<8x256xf32>
    %cst_207 = arith.constant 5.000000e-01 : f32
    %587 = vector.broadcast %cst_207 : f32 to vector<8x256xf32>
    %588 = arith.addf %586, %587 : vector<8x256xf32>
    %589 = vector.extract_strided_slice %588 {offsets = [0, 0], sizes = [8, 64], strides = [1, 1]} : vector<8x256xf32> to vector<8x64xf32>
    %590 = vector.extract_strided_slice %588 {offsets = [0, 64], sizes = [8, 64], strides = [1, 1]} : vector<8x256xf32> to vector<8x64xf32>
    %591 = vector.extract_strided_slice %584 {offsets = [0, 128], sizes = [8, 64], strides = [1, 1]} : vector<8x256xf32> to vector<8x64xf32>
    %592 = vector.extract_strided_slice %588 {offsets = [0, 192], sizes = [8, 64], strides = [1, 1]} : vector<8x256xf32> to vector<8x64xf32>
    %593 = arith.mulf %590, %492 : vector<8x64xf32>
    %594 = arith.mulf %589, %591 : vector<8x64xf32>
    %595 = arith.addf %593, %594 : vector<8x64xf32>
    %596 = math.tanh %595 : vector<8x64xf32>
    %597 = arith.mulf %592, %596 : vector<8x64xf32>
    %598 = tpu.concatenate %494, %515 in 1 : vector<8x64xf32>, vector<8x64xf32> -> vector<8x128xf32>
    %c0_208 = arith.constant 0 : index
    %c0_209 = arith.constant 0 : index
    %599 = vector.load %arg8[%c0_208, %c0_209] : memref<128x256xf32, #tpu.memory_space<vmem>>, vector<128x256xf32>
    %cst_210 = arith.constant dense<0.000000e+00> : vector<8x256xf32>
    %600 = tpu.matmul %598, %599, %cst_210 {dimension_numbers = #tpu.dot_dimension_numbers<[1], [0], [0], [1], [0, 0, 1, 1], [], []>} : vector<8x128xf32>, vector<128x256xf32>, vector<8x256xf32> -> vector<8x256xf32>
    %c0_211 = arith.constant 0 : index
    %c0_212 = arith.constant 0 : index
    %601 = vector.load %arg9[%c0_211, %c0_212] : memref<1x256xf32, #tpu.memory_space<vmem>>, vector<1x256xf32>
    %602 = vector.broadcast %601 : vector<1x256xf32> to vector<8x256xf32>
    %603 = arith.addf %600, %602 : vector<8x256xf32>
    %604 = arith.mulf %603, %15 : vector<8x256xf32>
    %605 = math.tanh %604 : vector<8x256xf32>
    %cst_213 = arith.constant 5.000000e-01 : f32
    %606 = vector.broadcast %cst_213 : f32 to vector<8x256xf32>
    %607 = arith.mulf %606, %605 : vector<8x256xf32>
    %cst_214 = arith.constant 5.000000e-01 : f32
    %608 = vector.broadcast %cst_214 : f32 to vector<8x256xf32>
    %609 = arith.addf %607, %608 : vector<8x256xf32>
    %610 = vector.extract_strided_slice %609 {offsets = [0, 0], sizes = [8, 64], strides = [1, 1]} : vector<8x256xf32> to vector<8x64xf32>
    %611 = vector.extract_strided_slice %609 {offsets = [0, 64], sizes = [8, 64], strides = [1, 1]} : vector<8x256xf32> to vector<8x64xf32>
    %612 = vector.extract_strided_slice %605 {offsets = [0, 128], sizes = [8, 64], strides = [1, 1]} : vector<8x256xf32> to vector<8x64xf32>
    %613 = vector.extract_strided_slice %609 {offsets = [0, 192], sizes = [8, 64], strides = [1, 1]} : vector<8x256xf32> to vector<8x64xf32>
    %614 = arith.mulf %611, %513 : vector<8x64xf32>
    %615 = arith.mulf %610, %612 : vector<8x64xf32>
    %616 = arith.addf %614, %615 : vector<8x64xf32>
    %617 = math.tanh %616 : vector<8x64xf32>
    %618 = arith.mulf %613, %617 : vector<8x64xf32>
    %619 = tpu.concatenate %515, %536 in 1 : vector<8x64xf32>, vector<8x64xf32> -> vector<8x128xf32>
    %c0_215 = arith.constant 0 : index
    %c0_216 = arith.constant 0 : index
    %620 = vector.load %arg10[%c0_215, %c0_216] : memref<128x256xf32, #tpu.memory_space<vmem>>, vector<128x256xf32>
    %cst_217 = arith.constant dense<0.000000e+00> : vector<8x256xf32>
    %621 = tpu.matmul %619, %620, %cst_217 {dimension_numbers = #tpu.dot_dimension_numbers<[1], [0], [0], [1], [0, 0, 1, 1], [], []>} : vector<8x128xf32>, vector<128x256xf32>, vector<8x256xf32> -> vector<8x256xf32>
    %c0_218 = arith.constant 0 : index
    %c0_219 = arith.constant 0 : index
    %622 = vector.load %arg11[%c0_218, %c0_219] : memref<1x256xf32, #tpu.memory_space<vmem>>, vector<1x256xf32>
    %623 = vector.broadcast %622 : vector<1x256xf32> to vector<8x256xf32>
    %624 = arith.addf %621, %623 : vector<8x256xf32>
    %625 = arith.mulf %624, %15 : vector<8x256xf32>
    %626 = math.tanh %625 : vector<8x256xf32>
    %cst_220 = arith.constant 5.000000e-01 : f32
    %627 = vector.broadcast %cst_220 : f32 to vector<8x256xf32>
    %628 = arith.mulf %627, %626 : vector<8x256xf32>
    %cst_221 = arith.constant 5.000000e-01 : f32
    %629 = vector.broadcast %cst_221 : f32 to vector<8x256xf32>
    %630 = arith.addf %628, %629 : vector<8x256xf32>
    %631 = vector.extract_strided_slice %630 {offsets = [0, 0], sizes = [8, 64], strides = [1, 1]} : vector<8x256xf32> to vector<8x64xf32>
    %632 = vector.extract_strided_slice %630 {offsets = [0, 64], sizes = [8, 64], strides = [1, 1]} : vector<8x256xf32> to vector<8x64xf32>
    %633 = vector.extract_strided_slice %626 {offsets = [0, 128], sizes = [8, 64], strides = [1, 1]} : vector<8x256xf32> to vector<8x64xf32>
    %634 = vector.extract_strided_slice %630 {offsets = [0, 192], sizes = [8, 64], strides = [1, 1]} : vector<8x256xf32> to vector<8x64xf32>
    %635 = arith.mulf %632, %534 : vector<8x64xf32>
    %636 = arith.mulf %631, %633 : vector<8x64xf32>
    %637 = arith.addf %635, %636 : vector<8x64xf32>
    %638 = math.tanh %637 : vector<8x64xf32>
    %639 = arith.mulf %634, %638 : vector<8x64xf32>
    %640 = tpu.concatenate %555, %576 in 1 : vector<8x64xf32>, vector<8x64xf32> -> vector<8x128xf32>
    %c0_222 = arith.constant 0 : index
    %c0_223 = arith.constant 0 : index
    %641 = vector.load %arg4[%c0_222, %c0_223] : memref<128x256xf32, #tpu.memory_space<vmem>>, vector<128x256xf32>
    %cst_224 = arith.constant dense<0.000000e+00> : vector<8x256xf32>
    %642 = tpu.matmul %640, %641, %cst_224 {dimension_numbers = #tpu.dot_dimension_numbers<[1], [0], [0], [1], [0, 0, 1, 1], [], []>} : vector<8x128xf32>, vector<128x256xf32>, vector<8x256xf32> -> vector<8x256xf32>
    %c0_225 = arith.constant 0 : index
    %c0_226 = arith.constant 0 : index
    %643 = vector.load %arg5[%c0_225, %c0_226] : memref<1x256xf32, #tpu.memory_space<vmem>>, vector<1x256xf32>
    %644 = vector.broadcast %643 : vector<1x256xf32> to vector<8x256xf32>
    %645 = arith.addf %642, %644 : vector<8x256xf32>
    %646 = arith.mulf %645, %15 : vector<8x256xf32>
    %647 = math.tanh %646 : vector<8x256xf32>
    %cst_227 = arith.constant 5.000000e-01 : f32
    %648 = vector.broadcast %cst_227 : f32 to vector<8x256xf32>
    %649 = arith.mulf %648, %647 : vector<8x256xf32>
    %cst_228 = arith.constant 5.000000e-01 : f32
    %650 = vector.broadcast %cst_228 : f32 to vector<8x256xf32>
    %651 = arith.addf %649, %650 : vector<8x256xf32>
    %652 = vector.extract_strided_slice %651 {offsets = [0, 0], sizes = [8, 64], strides = [1, 1]} : vector<8x256xf32> to vector<8x64xf32>
    %653 = vector.extract_strided_slice %651 {offsets = [0, 64], sizes = [8, 64], strides = [1, 1]} : vector<8x256xf32> to vector<8x64xf32>
    %654 = vector.extract_strided_slice %647 {offsets = [0, 128], sizes = [8, 64], strides = [1, 1]} : vector<8x256xf32> to vector<8x64xf32>
    %655 = vector.extract_strided_slice %651 {offsets = [0, 192], sizes = [8, 64], strides = [1, 1]} : vector<8x256xf32> to vector<8x64xf32>
    %656 = arith.mulf %653, %574 : vector<8x64xf32>
    %657 = arith.mulf %652, %654 : vector<8x64xf32>
    %658 = arith.addf %656, %657 : vector<8x64xf32>
    %659 = math.tanh %658 : vector<8x64xf32>
    %660 = arith.mulf %655, %659 : vector<8x64xf32>
    %661 = tpu.concatenate %576, %597 in 1 : vector<8x64xf32>, vector<8x64xf32> -> vector<8x128xf32>
    %c0_229 = arith.constant 0 : index
    %c0_230 = arith.constant 0 : index
    %662 = vector.load %arg6[%c0_229, %c0_230] : memref<128x256xf32, #tpu.memory_space<vmem>>, vector<128x256xf32>
    %cst_231 = arith.constant dense<0.000000e+00> : vector<8x256xf32>
    %663 = tpu.matmul %661, %662, %cst_231 {dimension_numbers = #tpu.dot_dimension_numbers<[1], [0], [0], [1], [0, 0, 1, 1], [], []>} : vector<8x128xf32>, vector<128x256xf32>, vector<8x256xf32> -> vector<8x256xf32>
    %c0_232 = arith.constant 0 : index
    %c0_233 = arith.constant 0 : index
    %664 = vector.load %arg7[%c0_232, %c0_233] : memref<1x256xf32, #tpu.memory_space<vmem>>, vector<1x256xf32>
    %665 = vector.broadcast %664 : vector<1x256xf32> to vector<8x256xf32>
    %666 = arith.addf %663, %665 : vector<8x256xf32>
    %667 = arith.mulf %666, %15 : vector<8x256xf32>
    %668 = math.tanh %667 : vector<8x256xf32>
    %cst_234 = arith.constant 5.000000e-01 : f32
    %669 = vector.broadcast %cst_234 : f32 to vector<8x256xf32>
    %670 = arith.mulf %669, %668 : vector<8x256xf32>
    %cst_235 = arith.constant 5.000000e-01 : f32
    %671 = vector.broadcast %cst_235 : f32 to vector<8x256xf32>
    %672 = arith.addf %670, %671 : vector<8x256xf32>
    %673 = vector.extract_strided_slice %672 {offsets = [0, 0], sizes = [8, 64], strides = [1, 1]} : vector<8x256xf32> to vector<8x64xf32>
    %674 = vector.extract_strided_slice %672 {offsets = [0, 64], sizes = [8, 64], strides = [1, 1]} : vector<8x256xf32> to vector<8x64xf32>
    %675 = vector.extract_strided_slice %668 {offsets = [0, 128], sizes = [8, 64], strides = [1, 1]} : vector<8x256xf32> to vector<8x64xf32>
    %676 = vector.extract_strided_slice %672 {offsets = [0, 192], sizes = [8, 64], strides = [1, 1]} : vector<8x256xf32> to vector<8x64xf32>
    %677 = arith.mulf %674, %595 : vector<8x64xf32>
    %678 = arith.mulf %673, %675 : vector<8x64xf32>
    %679 = arith.addf %677, %678 : vector<8x64xf32>
    %680 = math.tanh %679 : vector<8x64xf32>
    %681 = arith.mulf %676, %680 : vector<8x64xf32>
    %682 = tpu.concatenate %597, %618 in 1 : vector<8x64xf32>, vector<8x64xf32> -> vector<8x128xf32>
    %c0_236 = arith.constant 0 : index
    %c0_237 = arith.constant 0 : index
    %683 = vector.load %arg8[%c0_236, %c0_237] : memref<128x256xf32, #tpu.memory_space<vmem>>, vector<128x256xf32>
    %cst_238 = arith.constant dense<0.000000e+00> : vector<8x256xf32>
    %684 = tpu.matmul %682, %683, %cst_238 {dimension_numbers = #tpu.dot_dimension_numbers<[1], [0], [0], [1], [0, 0, 1, 1], [], []>} : vector<8x128xf32>, vector<128x256xf32>, vector<8x256xf32> -> vector<8x256xf32>
    %c0_239 = arith.constant 0 : index
    %c0_240 = arith.constant 0 : index
    %685 = vector.load %arg9[%c0_239, %c0_240] : memref<1x256xf32, #tpu.memory_space<vmem>>, vector<1x256xf32>
    %686 = vector.broadcast %685 : vector<1x256xf32> to vector<8x256xf32>
    %687 = arith.addf %684, %686 : vector<8x256xf32>
    %688 = arith.mulf %687, %15 : vector<8x256xf32>
    %689 = math.tanh %688 : vector<8x256xf32>
    %cst_241 = arith.constant 5.000000e-01 : f32
    %690 = vector.broadcast %cst_241 : f32 to vector<8x256xf32>
    %691 = arith.mulf %690, %689 : vector<8x256xf32>
    %cst_242 = arith.constant 5.000000e-01 : f32
    %692 = vector.broadcast %cst_242 : f32 to vector<8x256xf32>
    %693 = arith.addf %691, %692 : vector<8x256xf32>
    %694 = vector.extract_strided_slice %693 {offsets = [0, 0], sizes = [8, 64], strides = [1, 1]} : vector<8x256xf32> to vector<8x64xf32>
    %695 = vector.extract_strided_slice %693 {offsets = [0, 64], sizes = [8, 64], strides = [1, 1]} : vector<8x256xf32> to vector<8x64xf32>
    %696 = vector.extract_strided_slice %689 {offsets = [0, 128], sizes = [8, 64], strides = [1, 1]} : vector<8x256xf32> to vector<8x64xf32>
    %697 = vector.extract_strided_slice %693 {offsets = [0, 192], sizes = [8, 64], strides = [1, 1]} : vector<8x256xf32> to vector<8x64xf32>
    %698 = arith.mulf %695, %616 : vector<8x64xf32>
    %699 = arith.mulf %694, %696 : vector<8x64xf32>
    %700 = arith.addf %698, %699 : vector<8x64xf32>
    %701 = math.tanh %700 : vector<8x64xf32>
    %702 = arith.mulf %697, %701 : vector<8x64xf32>
    %703 = tpu.concatenate %618, %639 in 1 : vector<8x64xf32>, vector<8x64xf32> -> vector<8x128xf32>
    %c0_243 = arith.constant 0 : index
    %c0_244 = arith.constant 0 : index
    %704 = vector.load %arg10[%c0_243, %c0_244] : memref<128x256xf32, #tpu.memory_space<vmem>>, vector<128x256xf32>
    %cst_245 = arith.constant dense<0.000000e+00> : vector<8x256xf32>
    %705 = tpu.matmul %703, %704, %cst_245 {dimension_numbers = #tpu.dot_dimension_numbers<[1], [0], [0], [1], [0, 0, 1, 1], [], []>} : vector<8x128xf32>, vector<128x256xf32>, vector<8x256xf32> -> vector<8x256xf32>
    %c0_246 = arith.constant 0 : index
    %c0_247 = arith.constant 0 : index
    %706 = vector.load %arg11[%c0_246, %c0_247] : memref<1x256xf32, #tpu.memory_space<vmem>>, vector<1x256xf32>
    %707 = vector.broadcast %706 : vector<1x256xf32> to vector<8x256xf32>
    %708 = arith.addf %705, %707 : vector<8x256xf32>
    %709 = arith.mulf %708, %15 : vector<8x256xf32>
    %710 = math.tanh %709 : vector<8x256xf32>
    %cst_248 = arith.constant 5.000000e-01 : f32
    %711 = vector.broadcast %cst_248 : f32 to vector<8x256xf32>
    %712 = arith.mulf %711, %710 : vector<8x256xf32>
    %cst_249 = arith.constant 5.000000e-01 : f32
    %713 = vector.broadcast %cst_249 : f32 to vector<8x256xf32>
    %714 = arith.addf %712, %713 : vector<8x256xf32>
    %715 = vector.extract_strided_slice %714 {offsets = [0, 0], sizes = [8, 64], strides = [1, 1]} : vector<8x256xf32> to vector<8x64xf32>
    %716 = vector.extract_strided_slice %714 {offsets = [0, 64], sizes = [8, 64], strides = [1, 1]} : vector<8x256xf32> to vector<8x64xf32>
    %717 = vector.extract_strided_slice %710 {offsets = [0, 128], sizes = [8, 64], strides = [1, 1]} : vector<8x256xf32> to vector<8x64xf32>
    %718 = vector.extract_strided_slice %714 {offsets = [0, 192], sizes = [8, 64], strides = [1, 1]} : vector<8x256xf32> to vector<8x64xf32>
    %719 = arith.mulf %716, %637 : vector<8x64xf32>
    %720 = arith.mulf %715, %717 : vector<8x64xf32>
    %721 = arith.addf %719, %720 : vector<8x64xf32>
    %722 = math.tanh %721 : vector<8x64xf32>
    %723 = arith.mulf %718, %722 : vector<8x64xf32>
    %724 = tpu.concatenate %660, %681 in 1 : vector<8x64xf32>, vector<8x64xf32> -> vector<8x128xf32>
    %c0_250 = arith.constant 0 : index
    %c0_251 = arith.constant 0 : index
    %725 = vector.load %arg6[%c0_250, %c0_251] : memref<128x256xf32, #tpu.memory_space<vmem>>, vector<128x256xf32>
    %cst_252 = arith.constant dense<0.000000e+00> : vector<8x256xf32>
    %726 = tpu.matmul %724, %725, %cst_252 {dimension_numbers = #tpu.dot_dimension_numbers<[1], [0], [0], [1], [0, 0, 1, 1], [], []>} : vector<8x128xf32>, vector<128x256xf32>, vector<8x256xf32> -> vector<8x256xf32>
    %c0_253 = arith.constant 0 : index
    %c0_254 = arith.constant 0 : index
    %727 = vector.load %arg7[%c0_253, %c0_254] : memref<1x256xf32, #tpu.memory_space<vmem>>, vector<1x256xf32>
    %728 = vector.broadcast %727 : vector<1x256xf32> to vector<8x256xf32>
    %729 = arith.addf %726, %728 : vector<8x256xf32>
    %730 = arith.mulf %729, %15 : vector<8x256xf32>
    %731 = math.tanh %730 : vector<8x256xf32>
    %cst_255 = arith.constant 5.000000e-01 : f32
    %732 = vector.broadcast %cst_255 : f32 to vector<8x256xf32>
    %733 = arith.mulf %732, %731 : vector<8x256xf32>
    %cst_256 = arith.constant 5.000000e-01 : f32
    %734 = vector.broadcast %cst_256 : f32 to vector<8x256xf32>
    %735 = arith.addf %733, %734 : vector<8x256xf32>
    %736 = vector.extract_strided_slice %735 {offsets = [0, 0], sizes = [8, 64], strides = [1, 1]} : vector<8x256xf32> to vector<8x64xf32>
    %737 = vector.extract_strided_slice %735 {offsets = [0, 64], sizes = [8, 64], strides = [1, 1]} : vector<8x256xf32> to vector<8x64xf32>
    %738 = vector.extract_strided_slice %731 {offsets = [0, 128], sizes = [8, 64], strides = [1, 1]} : vector<8x256xf32> to vector<8x64xf32>
    %739 = vector.extract_strided_slice %735 {offsets = [0, 192], sizes = [8, 64], strides = [1, 1]} : vector<8x256xf32> to vector<8x64xf32>
    %740 = arith.mulf %737, %679 : vector<8x64xf32>
    %741 = arith.mulf %736, %738 : vector<8x64xf32>
    %742 = arith.addf %740, %741 : vector<8x64xf32>
    %743 = math.tanh %742 : vector<8x64xf32>
    %744 = arith.mulf %739, %743 : vector<8x64xf32>
    %745 = tpu.concatenate %681, %702 in 1 : vector<8x64xf32>, vector<8x64xf32> -> vector<8x128xf32>
    %c0_257 = arith.constant 0 : index
    %c0_258 = arith.constant 0 : index
    %746 = vector.load %arg8[%c0_257, %c0_258] : memref<128x256xf32, #tpu.memory_space<vmem>>, vector<128x256xf32>
    %cst_259 = arith.constant dense<0.000000e+00> : vector<8x256xf32>
    %747 = tpu.matmul %745, %746, %cst_259 {dimension_numbers = #tpu.dot_dimension_numbers<[1], [0], [0], [1], [0, 0, 1, 1], [], []>} : vector<8x128xf32>, vector<128x256xf32>, vector<8x256xf32> -> vector<8x256xf32>
    %c0_260 = arith.constant 0 : index
    %c0_261 = arith.constant 0 : index
    %748 = vector.load %arg9[%c0_260, %c0_261] : memref<1x256xf32, #tpu.memory_space<vmem>>, vector<1x256xf32>
    %749 = vector.broadcast %748 : vector<1x256xf32> to vector<8x256xf32>
    %750 = arith.addf %747, %749 : vector<8x256xf32>
    %751 = arith.mulf %750, %15 : vector<8x256xf32>
    %752 = math.tanh %751 : vector<8x256xf32>
    %cst_262 = arith.constant 5.000000e-01 : f32
    %753 = vector.broadcast %cst_262 : f32 to vector<8x256xf32>
    %754 = arith.mulf %753, %752 : vector<8x256xf32>
    %cst_263 = arith.constant 5.000000e-01 : f32
    %755 = vector.broadcast %cst_263 : f32 to vector<8x256xf32>
    %756 = arith.addf %754, %755 : vector<8x256xf32>
    %757 = vector.extract_strided_slice %756 {offsets = [0, 0], sizes = [8, 64], strides = [1, 1]} : vector<8x256xf32> to vector<8x64xf32>
    %758 = vector.extract_strided_slice %756 {offsets = [0, 64], sizes = [8, 64], strides = [1, 1]} : vector<8x256xf32> to vector<8x64xf32>
    %759 = vector.extract_strided_slice %752 {offsets = [0, 128], sizes = [8, 64], strides = [1, 1]} : vector<8x256xf32> to vector<8x64xf32>
    %760 = vector.extract_strided_slice %756 {offsets = [0, 192], sizes = [8, 64], strides = [1, 1]} : vector<8x256xf32> to vector<8x64xf32>
    %761 = arith.mulf %758, %700 : vector<8x64xf32>
    %762 = arith.mulf %757, %759 : vector<8x64xf32>
    %763 = arith.addf %761, %762 : vector<8x64xf32>
    %764 = math.tanh %763 : vector<8x64xf32>
    %765 = arith.mulf %760, %764 : vector<8x64xf32>
    %766 = tpu.concatenate %702, %723 in 1 : vector<8x64xf32>, vector<8x64xf32> -> vector<8x128xf32>
    %c0_264 = arith.constant 0 : index
    %c0_265 = arith.constant 0 : index
    %767 = vector.load %arg10[%c0_264, %c0_265] : memref<128x256xf32, #tpu.memory_space<vmem>>, vector<128x256xf32>
    %cst_266 = arith.constant dense<0.000000e+00> : vector<8x256xf32>
    %768 = tpu.matmul %766, %767, %cst_266 {dimension_numbers = #tpu.dot_dimension_numbers<[1], [0], [0], [1], [0, 0, 1, 1], [], []>} : vector<8x128xf32>, vector<128x256xf32>, vector<8x256xf32> -> vector<8x256xf32>
    %c0_267 = arith.constant 0 : index
    %c0_268 = arith.constant 0 : index
    %769 = vector.load %arg11[%c0_267, %c0_268] : memref<1x256xf32, #tpu.memory_space<vmem>>, vector<1x256xf32>
    %770 = vector.broadcast %769 : vector<1x256xf32> to vector<8x256xf32>
    %771 = arith.addf %768, %770 : vector<8x256xf32>
    %772 = arith.mulf %771, %15 : vector<8x256xf32>
    %773 = math.tanh %772 : vector<8x256xf32>
    %cst_269 = arith.constant 5.000000e-01 : f32
    %774 = vector.broadcast %cst_269 : f32 to vector<8x256xf32>
    %775 = arith.mulf %774, %773 : vector<8x256xf32>
    %cst_270 = arith.constant 5.000000e-01 : f32
    %776 = vector.broadcast %cst_270 : f32 to vector<8x256xf32>
    %777 = arith.addf %775, %776 : vector<8x256xf32>
    %778 = vector.extract_strided_slice %777 {offsets = [0, 0], sizes = [8, 64], strides = [1, 1]} : vector<8x256xf32> to vector<8x64xf32>
    %779 = vector.extract_strided_slice %777 {offsets = [0, 64], sizes = [8, 64], strides = [1, 1]} : vector<8x256xf32> to vector<8x64xf32>
    %780 = vector.extract_strided_slice %773 {offsets = [0, 128], sizes = [8, 64], strides = [1, 1]} : vector<8x256xf32> to vector<8x64xf32>
    %781 = vector.extract_strided_slice %777 {offsets = [0, 192], sizes = [8, 64], strides = [1, 1]} : vector<8x256xf32> to vector<8x64xf32>
    %782 = arith.mulf %779, %721 : vector<8x64xf32>
    %783 = arith.mulf %778, %780 : vector<8x64xf32>
    %784 = arith.addf %782, %783 : vector<8x64xf32>
    %785 = math.tanh %784 : vector<8x64xf32>
    %786 = arith.mulf %781, %785 : vector<8x64xf32>
    %787 = tpu.concatenate %744, %765 in 1 : vector<8x64xf32>, vector<8x64xf32> -> vector<8x128xf32>
    %c0_271 = arith.constant 0 : index
    %c0_272 = arith.constant 0 : index
    %788 = vector.load %arg8[%c0_271, %c0_272] : memref<128x256xf32, #tpu.memory_space<vmem>>, vector<128x256xf32>
    %cst_273 = arith.constant dense<0.000000e+00> : vector<8x256xf32>
    %789 = tpu.matmul %787, %788, %cst_273 {dimension_numbers = #tpu.dot_dimension_numbers<[1], [0], [0], [1], [0, 0, 1, 1], [], []>} : vector<8x128xf32>, vector<128x256xf32>, vector<8x256xf32> -> vector<8x256xf32>
    %c0_274 = arith.constant 0 : index
    %c0_275 = arith.constant 0 : index
    %790 = vector.load %arg9[%c0_274, %c0_275] : memref<1x256xf32, #tpu.memory_space<vmem>>, vector<1x256xf32>
    %791 = vector.broadcast %790 : vector<1x256xf32> to vector<8x256xf32>
    %792 = arith.addf %789, %791 : vector<8x256xf32>
    %793 = arith.mulf %792, %15 : vector<8x256xf32>
    %794 = math.tanh %793 : vector<8x256xf32>
    %cst_276 = arith.constant 5.000000e-01 : f32
    %795 = vector.broadcast %cst_276 : f32 to vector<8x256xf32>
    %796 = arith.mulf %795, %794 : vector<8x256xf32>
    %cst_277 = arith.constant 5.000000e-01 : f32
    %797 = vector.broadcast %cst_277 : f32 to vector<8x256xf32>
    %798 = arith.addf %796, %797 : vector<8x256xf32>
    %799 = vector.extract_strided_slice %798 {offsets = [0, 0], sizes = [8, 64], strides = [1, 1]} : vector<8x256xf32> to vector<8x64xf32>
    %800 = vector.extract_strided_slice %798 {offsets = [0, 64], sizes = [8, 64], strides = [1, 1]} : vector<8x256xf32> to vector<8x64xf32>
    %801 = vector.extract_strided_slice %794 {offsets = [0, 128], sizes = [8, 64], strides = [1, 1]} : vector<8x256xf32> to vector<8x64xf32>
    %802 = vector.extract_strided_slice %798 {offsets = [0, 192], sizes = [8, 64], strides = [1, 1]} : vector<8x256xf32> to vector<8x64xf32>
    %803 = arith.mulf %800, %763 : vector<8x64xf32>
    %804 = arith.mulf %799, %801 : vector<8x64xf32>
    %805 = arith.addf %803, %804 : vector<8x64xf32>
    %806 = math.tanh %805 : vector<8x64xf32>
    %807 = arith.mulf %802, %806 : vector<8x64xf32>
    %808 = tpu.concatenate %765, %786 in 1 : vector<8x64xf32>, vector<8x64xf32> -> vector<8x128xf32>
    %c0_278 = arith.constant 0 : index
    %c0_279 = arith.constant 0 : index
    %809 = vector.load %arg10[%c0_278, %c0_279] : memref<128x256xf32, #tpu.memory_space<vmem>>, vector<128x256xf32>
    %cst_280 = arith.constant dense<0.000000e+00> : vector<8x256xf32>
    %810 = tpu.matmul %808, %809, %cst_280 {dimension_numbers = #tpu.dot_dimension_numbers<[1], [0], [0], [1], [0, 0, 1, 1], [], []>} : vector<8x128xf32>, vector<128x256xf32>, vector<8x256xf32> -> vector<8x256xf32>
    %c0_281 = arith.constant 0 : index
    %c0_282 = arith.constant 0 : index
    %811 = vector.load %arg11[%c0_281, %c0_282] : memref<1x256xf32, #tpu.memory_space<vmem>>, vector<1x256xf32>
    %812 = vector.broadcast %811 : vector<1x256xf32> to vector<8x256xf32>
    %813 = arith.addf %810, %812 : vector<8x256xf32>
    %814 = arith.mulf %813, %15 : vector<8x256xf32>
    %815 = math.tanh %814 : vector<8x256xf32>
    %cst_283 = arith.constant 5.000000e-01 : f32
    %816 = vector.broadcast %cst_283 : f32 to vector<8x256xf32>
    %817 = arith.mulf %816, %815 : vector<8x256xf32>
    %cst_284 = arith.constant 5.000000e-01 : f32
    %818 = vector.broadcast %cst_284 : f32 to vector<8x256xf32>
    %819 = arith.addf %817, %818 : vector<8x256xf32>
    %820 = vector.extract_strided_slice %819 {offsets = [0, 0], sizes = [8, 64], strides = [1, 1]} : vector<8x256xf32> to vector<8x64xf32>
    %821 = vector.extract_strided_slice %819 {offsets = [0, 64], sizes = [8, 64], strides = [1, 1]} : vector<8x256xf32> to vector<8x64xf32>
    %822 = vector.extract_strided_slice %815 {offsets = [0, 128], sizes = [8, 64], strides = [1, 1]} : vector<8x256xf32> to vector<8x64xf32>
    %823 = vector.extract_strided_slice %819 {offsets = [0, 192], sizes = [8, 64], strides = [1, 1]} : vector<8x256xf32> to vector<8x64xf32>
    %824 = arith.mulf %821, %784 : vector<8x64xf32>
    %825 = arith.mulf %820, %822 : vector<8x64xf32>
    %826 = arith.addf %824, %825 : vector<8x64xf32>
    %827 = math.tanh %826 : vector<8x64xf32>
    %828 = arith.mulf %823, %827 : vector<8x64xf32>
    %829 = tpu.concatenate %807, %828 in 1 : vector<8x64xf32>, vector<8x64xf32> -> vector<8x128xf32>
    %c0_285 = arith.constant 0 : index
    %c0_286 = arith.constant 0 : index
    %830 = vector.load %arg10[%c0_285, %c0_286] : memref<128x256xf32, #tpu.memory_space<vmem>>, vector<128x256xf32>
    %cst_287 = arith.constant dense<0.000000e+00> : vector<8x256xf32>
    %831 = tpu.matmul %829, %830, %cst_287 {dimension_numbers = #tpu.dot_dimension_numbers<[1], [0], [0], [1], [0, 0, 1, 1], [], []>} : vector<8x128xf32>, vector<128x256xf32>, vector<8x256xf32> -> vector<8x256xf32>
    %c0_288 = arith.constant 0 : index
    %c0_289 = arith.constant 0 : index
    %832 = vector.load %arg11[%c0_288, %c0_289] : memref<1x256xf32, #tpu.memory_space<vmem>>, vector<1x256xf32>
    %833 = vector.broadcast %832 : vector<1x256xf32> to vector<8x256xf32>
    %834 = arith.addf %831, %833 : vector<8x256xf32>
    %835 = arith.mulf %834, %15 : vector<8x256xf32>
    %836 = math.tanh %835 : vector<8x256xf32>
    %cst_290 = arith.constant 5.000000e-01 : f32
    %837 = vector.broadcast %cst_290 : f32 to vector<8x256xf32>
    %838 = arith.mulf %837, %836 : vector<8x256xf32>
    %cst_291 = arith.constant 5.000000e-01 : f32
    %839 = vector.broadcast %cst_291 : f32 to vector<8x256xf32>
    %840 = arith.addf %838, %839 : vector<8x256xf32>
    %841 = vector.extract_strided_slice %840 {offsets = [0, 0], sizes = [8, 64], strides = [1, 1]} : vector<8x256xf32> to vector<8x64xf32>
    %842 = vector.extract_strided_slice %840 {offsets = [0, 64], sizes = [8, 64], strides = [1, 1]} : vector<8x256xf32> to vector<8x64xf32>
    %843 = vector.extract_strided_slice %836 {offsets = [0, 128], sizes = [8, 64], strides = [1, 1]} : vector<8x256xf32> to vector<8x64xf32>
    %844 = vector.extract_strided_slice %840 {offsets = [0, 192], sizes = [8, 64], strides = [1, 1]} : vector<8x256xf32> to vector<8x64xf32>
    %845 = arith.mulf %842, %826 : vector<8x64xf32>
    %846 = arith.mulf %841, %843 : vector<8x64xf32>
    %847 = arith.addf %845, %846 : vector<8x64xf32>
    %848 = math.tanh %847 : vector<8x64xf32>
    %849 = arith.mulf %844, %848 : vector<8x64xf32>
    %c0_292 = arith.constant 0 : index
    %c0_293 = arith.constant 0 : index
    %850 = vector.load %arg12[%c0_292, %c0_293] : memref<64x3xf32, #tpu.memory_space<vmem>>, vector<64x3xf32>
    %cst_294 = arith.constant dense<0.000000e+00> : vector<8x3xf32>
    %851 = tpu.matmul %849, %850, %cst_294 {dimension_numbers = #tpu.dot_dimension_numbers<[1], [0], [0], [1], [0, 0, 1, 1], [], []>} : vector<8x64xf32>, vector<64x3xf32>, vector<8x3xf32> -> vector<8x3xf32>
    %c0_295 = arith.constant 0 : index
    %c0_296 = arith.constant 0 : index
    %852 = vector.load %arg13[%c0_295, %c0_296] : memref<1x3xf32, #tpu.memory_space<vmem>>, vector<1x3xf32>
    %853 = vector.broadcast %852 : vector<1x3xf32> to vector<8x3xf32>
    %854 = arith.addf %851, %853 : vector<8x3xf32>
    %c0_297 = arith.constant 0 : index
    %c0_298 = arith.constant 0 : index
    %855 = vector.load %arg14[%c0_297, %c0_298] : memref<8x3xf32, #tpu.memory_space<vmem>>, vector<8x3xf32>
    tpu.vector_store %arg14[%c0_297, %c0_298], %854 {strides = array<i32>} : memref<8x3xf32, #tpu.memory_space<vmem>>, vector<8x3xf32>,
    return
  }
}

</mosaic_0001>

<llo_original>
// kernel: lstm_model_forward.1
$region0: #{lstm_model_forward.1}
  #allocation0 [shape = 'u32[]', space=smem, size = 0x4, offset = 0x4, fixed_abs, tag = 'smem constant byte address 0x4 - core index']
  #allocation1 [shape = 'u32[144,128]{1,0:T(1,128)}', space=vmem, size = 0x12000, scoped, tag = 'internal scratch']
  #allocation2 [shape = 'f32[64,256]{1,0:T(8,128)}', space=vmem, size = 0x10000, scoped, tag = 'scratch operand']
  %s0 = inlined_call_operand.vmem [shape: f32[64,4], index: 0, kind: input, shape index: {}]
  %s1 = inlined_call_operand.vmem [shape: f32[4,256], index: 1, kind: input, shape index: {}]
  %s2 = inlined_call_operand.vmem [shape: f32[64,256], index: 2, kind: input, shape index: {}]
  %s3 = inlined_call_operand.vmem [shape: f32[1,256], index: 3, kind: input, shape index: {}]
  %s4 = inlined_call_operand.vmem [shape: f32[128,256], index: 4, kind: input, shape index: {}]
  %s5 = inlined_call_operand.vmem [shape: f32[1,256], index: 5, kind: input, shape index: {}]
  %s6 = inlined_call_operand.vmem [shape: f32[128,256], index: 6, kind: input, shape index: {}]
  %s7 = inlined_call_operand.vmem [shape: f32[1,256], index: 7, kind: input, shape index: {}]
  %s8 = inlined_call_operand.vmem [shape: f32[128,256], index: 8, kind: input, shape index: {}]
  %s9 = inlined_call_operand.vmem [shape: f32[1,256], index: 9, kind: input, shape index: {}]
  %s10 = inlined_call_operand.vmem [shape: f32[128,256], index: 10, kind: input, shape index: {}]
  %s11 = inlined_call_operand.vmem [shape: f32[1,256], index: 11, kind: input, shape index: {}]
  %s12 = inlined_call_operand.vmem [shape: f32[64,3], index: 12, kind: input, shape index: {}]
  %s13 = inlined_call_operand.vmem [shape: f32[1,3], index: 13, kind: input, shape index: {}]
  %s14 = inlined_call_operand.vmem [shape: f32[8,3], index: 14, kind: output, shape index: {}]
  %s15 = sld [smem:[#allocation0]]
  $region66: #{lstm_model_forward.1} parent=0
    _
  %s17 = ssub.s32 1, %s15
  %s18 = scalar_select 0, %s17, %s15
  // Predicated region
  $region2: #{lstm_model_forward.1} parent=0 // pred_check
    _
  $region3: #{lstm_model_forward.1} parent=0 // pred_check_branch
    %20 = sbr.rel (0) target = $region5
  $region4: #{lstm_model_forward.1} parent=0 // pred_region
    _
  $region5: #{lstm_model_forward.1} parent=0 // pred_fallthru
    _
  // Predicated region
  $region6: #{lstm_model_forward.1} parent=0 // pred_check
    _
  $region7: #{lstm_model_forward.1} parent=0 // pred_check_branch
    %22 = sbr.rel (0) target = $region9
  $region8: #{lstm_model_forward.1} parent=0 // pred_region
    _
  $region9: #{lstm_model_forward.1} parent=0 // pred_fallthru
    _
  // Predicated region
  $region10: #{lstm_model_forward.1} parent=0 // pred_check
    _
  $region11: #{lstm_model_forward.1} parent=0 // pred_check_branch
    %24 = sbr.rel (0) target = $region13
  $region12: #{lstm_model_forward.1} parent=0 // pred_region
    _
  $region13: #{lstm_model_forward.1} parent=0 // pred_fallthru
    _
  // Predicated region
  $region14: #{lstm_model_forward.1} parent=0 // pred_check
    _
  $region15: #{lstm_model_forward.1} parent=0 // pred_check_branch
    %26 = sbr.rel (0) target = $region17
  $region16: #{lstm_model_forward.1} parent=0 // pred_region
    _
  $region17: #{lstm_model_forward.1} parent=0 // pred_fallthru
    _
  // Predicated region
  $region18: #{lstm_model_forward.1} parent=0 // pred_check
    _
  $region19: #{lstm_model_forward.1} parent=0 // pred_check_branch
    %28 = sbr.rel (0) target = $region21
  $region20: #{lstm_model_forward.1} parent=0 // pred_region
    _
  $region21: #{lstm_model_forward.1} parent=0 // pred_fallthru
    _
  // Predicated region
  $region22: #{lstm_model_forward.1} parent=0 // pred_check
    _
  $region23: #{lstm_model_forward.1} parent=0 // pred_check_branch
    %30 = sbr.rel (0) target = $region25
  $region24: #{lstm_model_forward.1} parent=0 // pred_region
    _
  $region25: #{lstm_model_forward.1} parent=0 // pred_fallthru
    _
  // Predicated region
  $region26: #{lstm_model_forward.1} parent=0 // pred_check
    _
  $region27: #{lstm_model_forward.1} parent=0 // pred_check_branch
    %32 = sbr.rel (0) target = $region29
  $region28: #{lstm_model_forward.1} parent=0 // pred_region
    _
  $region29: #{lstm_model_forward.1} parent=0 // pred_fallthru
    _
  // Predicated region
  $region30: #{lstm_model_forward.1} parent=0 // pred_check
    _
  $region31: #{lstm_model_forward.1} parent=0 // pred_check_branch
    %34 = sbr.rel (0) target = $region33
  $region32: #{lstm_model_forward.1} parent=0 // pred_region
    _
  $region33: #{lstm_model_forward.1} parent=0 // pred_fallthru
    _
  // Predicated region
  $region34: #{lstm_model_forward.1} parent=0 // pred_check
    _
  $region35: #{lstm_model_forward.1} parent=0 // pred_check_branch
    %36 = sbr.rel (0) target = $region37
  $region36: #{lstm_model_forward.1} parent=0 // pred_region
    _
  $region37: #{lstm_model_forward.1} parent=0 // pred_fallthru
    _
  // Predicated region
  $region38: #{lstm_model_forward.1} parent=0 // pred_check
    _
  $region39: #{lstm_model_forward.1} parent=0 // pred_check_branch
    %38 = sbr.rel (0) target = $region41
  $region40: #{lstm_model_forward.1} parent=0 // pred_region
    _
  $region41: #{lstm_model_forward.1} parent=0 // pred_fallthru
    _
  // Predicated region
  $region42: #{lstm_model_forward.1} parent=0 // pred_check
    _
  $region43: #{lstm_model_forward.1} parent=0 // pred_check_branch
    %40 = sbr.rel (0) target = $region45
  $region44: #{lstm_model_forward.1} parent=0 // pred_region
    _
  $region45: #{lstm_model_forward.1} parent=0 // pred_fallthru
    _
  // Predicated region
  $region46: #{lstm_model_forward.1} parent=0 // pred_check
    _
  $region47: #{lstm_model_forward.1} parent=0 // pred_check_branch
    %42 = sbr.rel (0) target = $region49
  $region48: #{lstm_model_forward.1} parent=0 // pred_region
    _
  $region49: #{lstm_model_forward.1} parent=0 // pred_fallthru
    _
  // Predicated region
  $region50: #{lstm_model_forward.1} parent=0 // pred_check
    _
  $region51: #{lstm_model_forward.1} parent=0 // pred_check_branch
    %44 = sbr.rel (0) target = $region53
  $region52: #{lstm_model_forward.1} parent=0 // pred_region
    _
  $region53: #{lstm_model_forward.1} parent=0 // pred_fallthru
    _
  // Predicated region
  $region54: #{lstm_model_forward.1} parent=0 // pred_check
    _
  $region55: #{lstm_model_forward.1} parent=0 // pred_check_branch
    %46 = sbr.rel (0) target = $region57
  $region56: #{lstm_model_forward.1} parent=0 // pred_region
    _
  $region57: #{lstm_model_forward.1} parent=0 // pred_fallthru
    _
  %v47 = vld [vmem:[%s0] sm:$0xff]
  %v48 = vld [vmem:[%s0 + $0x8] sm:$0xff]
  %v49 = vld [vmem:[%s0 + $0x10] sm:$0xff]
  %v50 = vld [vmem:[%s0 + $0x18] sm:$0xff]
  %v51 = vld [vmem:[%s0 + $0x20] sm:$0xff]
  %v52 = vld [vmem:[%s0 + $0x28] sm:$0xff]
  %v53 = vld [vmem:[%s0 + $0x30] sm:$0xff]
  %v54 = vld [vmem:[%s0 + $0x38] sm:$0xff]
  %v55 = vld [vmem:[%s1] sm:$0xff]
  %v56 = vld [vmem:[%s3] sm:$0x3]
  %v58 = vlaneseq
  %v59 = vshrl.u32 %v58, 7
  %v60 = vsub.s32 0, %v59
  %v61 = vrot.slane %v56, %v60
  %v62 = vlaneseq
  %v63 = vshrl.u32 %v62, 7
  %v64 = vsub.s32 1, %v63
  %v65 = vrot.slane %v56, %v64
  %v69 = vcombine.high %v55, %v55
  %vm70 = vcmask 31744
  %v72 = vsel %vm70, %v47, 0
  %v75 = vsel %vm70, %v48, 0
  %v78 = vsel %vm70, %v49, 0
  %v81 = vsel %vm70, %v50, 0
  %v84 = vsel %vm70, %v51, 0
  %v87 = vsel %vm70, %v52, 0
  %v90 = vsel %vm70, %v53, 0
  %v93 = vsel %vm70, %v54, 0
  %vm95 = vcmask 1043456
  %v96 = vsel %vm95, %v55, 0
  %v98 = vsel %vm95, %v69, 0
  %100 = vmatprep.subr.mxu0 0.0
  %101 = vmatpush1.msra.mxu0 0.0
  %102 = vmatprep.subr.mxu0 0.0
  %103 = vmatpush1.msra.mxu0 0.0
  %104 = vmatprep.subr.mxu0 0.0
  %105 = vmatpush1.msra.mxu0 0.0
  %106 = vmatprep.subr.mxu0 0.0
  %107 = vmatpush1.msra.mxu0 0.0
  %108 = vmatprep.subr.mxu0 0.0
  %109 = vmatpush1.msra.mxu0 0.0
  %110 = vmatprep.subr.mxu0 0.0
  %111 = vmatpush1.msra.mxu0 0.0
  %112 = vmatprep.subr.mxu0 0.0
  %113 = vmatpush1.msra.mxu0 0.0
  %114 = vmatprep.subr.mxu0 0.0
  %115 = vmatpush1.msra.mxu0 0.0
  %116 = vmatprep.subr.mxu0 0.0
  %117 = vmatpush1.msra.mxu0 0.0
  %118 = vmatprep.subr.mxu0 0.0
  %119 = vmatpush1.msra.mxu0 0.0
  %120 = vmatprep.subr.mxu0 0.0
  %121 = vmatpush1.msra.mxu0 0.0
  %122 = vmatprep.subr.mxu0 0.0
  %123 = vmatpush1.msra.mxu0 0.0
  %124 = vmatprep.subr.mxu0 0.0
  %125 = vmatpush1.msra.mxu0 0.0
  %126 = vmatprep.subr.mxu0 0.0
  %127 = vmatpush1.msra.mxu0 0.0
  %128 = vmatprep.subr.mxu0 0.0
  %129 = vmatpush1.msra.mxu0 0.0
  %130 = vmatprep.subr.mxu0 %v98
  %131 = vmatpush1.msra.mxu0 %v96
  %132 = vmatprep.subr.mxu0 0.0
  %133 = vmatpush2.msra.mxu0 0.0
  %134 = vmatprep.subr.mxu0 0.0
  %135 = vmatpush2.msra.mxu0 0.0
  %136 = vmatprep.subr.mxu0 0.0
  %137 = vmatpush2.msra.mxu0 0.0
  %138 = vmatprep.subr.mxu0 0.0
  %139 = vmatpush2.msra.mxu0 0.0
  %140 = vmatprep.subr.mxu0 0.0
  %141 = vmatpush2.msra.mxu0 0.0
  %142 = vmatprep.subr.mxu0 0.0
  %143 = vmatpush2.msra.mxu0 0.0
  %144 = vmatprep.subr.mxu0 0.0
  %145 = vmatpush2.msra.mxu0 0.0
  %146 = vmatprep.subr.mxu0 0.0
  %147 = vmatpush2.msra.mxu0 0.0
  %148 = vmatprep.subr.mxu0 0.0
  %149 = vmatpush2.msra.mxu0 0.0
  %150 = vmatprep.subr.mxu0 0.0
  %151 = vmatpush2.msra.mxu0 0.0
  %152 = vmatprep.subr.mxu0 0.0
  %153 = vmatpush2.msra.mxu0 0.0
  %154 = vmatprep.subr.mxu0 0.0
  %155 = vmatpush2.msra.mxu0 0.0
  %156 = vmatprep.subr.mxu0 0.0
  %157 = vmatpush2.msra.mxu0 0.0
  %158 = vmatprep.subr.mxu0 0.0
  %159 = vmatpush2.msra.mxu0 0.0
  %160 = vmatprep.subr.mxu0 0.0
  %161 = vmatpush2.msra.mxu0 0.0
  %162 = vmatprep.subr.mxu0 0.0
  %163 = vmatpush2.msra.mxu0 0.0
  %164 = vmatprep.mubr.f32.mxu0 0.0
  %165 = vmatmul.mubr.f32.gmra.mxu0 %v72
  %v166 = vpop.f32.mrf.mxu0
  %v167 = vadd.f32 %v61, %v166
  %v168 = vpop.f32.mrf.mxu0
  %v169 = vadd.f32 %v65, %v168
  %170 = vmatprep.mubr.f32.mxu0 0.0
  %171 = vmatmul.mubr.f32.gmra.mxu0 %v75
  %v172 = vpop.f32.mrf.mxu0
  %v173 = vadd.f32 %v61, %v172
  %v174 = vpop.f32.mrf.mxu0
  %v175 = vadd.f32 %v65, %v174
  %176 = vmatprep.mubr.f32.mxu0 0.0
  %177 = vmatmul.mubr.f32.gmra.mxu0 %v78
  %v178 = vpop.f32.mrf.mxu0
  %v179 = vadd.f32 %v61, %v178
  %v180 = vpop.f32.mrf.mxu0
  %v181 = vadd.f32 %v65, %v180
  %182 = vmatprep.mubr.f32.mxu0 0.0
  %183 = vmatmul.mubr.f32.gmra.mxu0 %v81
  %v184 = vpop.f32.mrf.mxu0
  %v185 = vadd.f32 %v61, %v184
  %v186 = vpop.f32.mrf.mxu0
  %v187 = vadd.f32 %v65, %v186
  %188 = vmatprep.mubr.f32.mxu0 0.0
  %189 = vmatmul.mubr.f32.gmra.mxu0 %v84
  %v190 = vpop.f32.mrf.mxu0
  %v191 = vadd.f32 %v61, %v190
  %v192 = vpop.f32.mrf.mxu0
  %v193 = vadd.f32 %v65, %v192
  %194 = vmatprep.mubr.f32.mxu0 0.0
  %195 = vmatmul.mubr.f32.gmra.mxu0 %v87
  %v196 = vpop.f32.mrf.mxu0
  %v197 = vadd.f32 %v61, %v196
  %v198 = vpop.f32.mrf.mxu0
  %v199 = vadd.f32 %v65, %v198
  %200 = vmatprep.mubr.f32.mxu0 0.0
  %201 = vmatmul.mubr.f32.gmra.mxu0 %v90
  %v202 = vpop.f32.mrf.mxu0
  %v203 = vadd.f32 %v61, %v202
  %v204 = vpop.f32.mrf.mxu0
  %v205 = vadd.f32 %v65, %v204
  %206 = vmatprep.mubr.f32.mxu0 0.0
  %207 = vmatmul.mubr.f32.gmra.mxu0 %v93
  %v208 = vpop.f32.mrf.mxu0
  %v209 = vadd.f32 %v61, %v208
  %v210 = vpop.f32.mrf.mxu0
  %v211 = vadd.f32 %v65, %v210
  %212 = vdwg.mxu0
  %213 = vst [vmem:[#allocation2] sm:$0xff] %v167
  %214 = vst [vmem:[#allocation2 + $0x8] sm:$0xff] %v169
  %215 = vst [vmem:[#allocation2 + $0x10] sm:$0xff] %v173
  %216 = vst [vmem:[#allocation2 + $0x18] sm:$0xff] %v175
  %217 = vst [vmem:[#allocation2 + $0x20] sm:$0xff] %v179
  %218 = vst [vmem:[#allocation2 + $0x28] sm:$0xff] %v181
  %219 = vst [vmem:[#allocation2 + $0x30] sm:$0xff] %v185
  %220 = vst [vmem:[#allocation2 + $0x38] sm:$0xff] %v187
  %221 = vst [vmem:[#allocation2 + $0x40] sm:$0xff] %v191
  %222 = vst [vmem:[#allocation2 + $0x48] sm:$0xff] %v193
  %223 = vst [vmem:[#allocation2 + $0x50] sm:$0xff] %v197
  %224 = vst [vmem:[#allocation2 + $0x58] sm:$0xff] %v199
  %225 = vst [vmem:[#allocation2 + $0x60] sm:$0xff] %v203
  %226 = vst [vmem:[#allocation2 + $0x68] sm:$0xff] %v205
  %227 = vst [vmem:[#allocation2 + $0x70] sm:$0xff] %v209
  %228 = vst [vmem:[#allocation2 + $0x78] sm:$0xff] %v211
  %v229 = vlaneseq
  %v230 = vand.u32 %v229, 127
  %v231 = vadd.s32 %v230, 128
  %vm232 = vcmp.ge.s32.totalorder %v230, 128
  %vm233 = vcmp.ge.s32.totalorder %v231, 128
  %vm234 = vcmp.lt.s32.totalorder %v230, 192
  %vm235 = vcmp.lt.s32.totalorder %v231, 192
  %vm236 = vmand %vm232, %vm234
  %vm237 = vmand %vm233, %vm235
  %v238 = vsel %vm236, 1.0, 0.5
  %v239 = vsel %vm237, 1.0, 0.5
  %v240 = vld [vmem:[#allocation2] sm:$0xff]
  %v241 = vld [vmem:[#allocation2 + $0x8] sm:$0xff]
  %v242 = vld [vmem:[%s2] sm:$0xff]
  %v243 = vld [vmem:[%s2 + $0x8] sm:$0xff]
  %v244 = vld [vmem:[%s2 + $0x10] sm:$0xff]
  %v245 = vld [vmem:[%s2 + $0x18] sm:$0xff]
  %v246 = vld [vmem:[%s2 + $0x20] sm:$0xff]
  %v247 = vld [vmem:[%s2 + $0x28] sm:$0xff]
  %v248 = vld [vmem:[%s2 + $0x30] sm:$0xff]
  %v249 = vld [vmem:[%s2 + $0x38] sm:$0xff]
  %v250 = vld [vmem:[%s2 + $0x40] sm:$0xff]
  %v251 = vld [vmem:[%s2 + $0x48] sm:$0xff]
  %v252 = vld [vmem:[%s2 + $0x50] sm:$0xff]
  %v253 = vld [vmem:[%s2 + $0x58] sm:$0xff]
  %v254 = vld [vmem:[%s2 + $0x60] sm:$0xff]
  %v255 = vld [vmem:[%s2 + $0x68] sm:$0xff]
  %v256 = vld [vmem:[%s2 + $0x70] sm:$0xff]
  %v257 = vld [vmem:[%s2 + $0x78] sm:$0xff]
  %vm258 = vcmask 523264
  %v260 = vsel %vm258, 0.0, 0
  %262 = vmatprep.subr.mxu0 0.0
  %263 = vmatpush1.msra.mxu0 0.0
  %264 = vmatprep.subr.mxu0 0.0
  %265 = vmatpush1.msra.mxu0 0.0
  %266 = vmatprep.subr.mxu0 0.0
  %267 = vmatpush1.msra.mxu0 0.0
  %268 = vmatprep.subr.mxu0 0.0
  %269 = vmatpush1.msra.mxu0 0.0
  %270 = vmatprep.subr.mxu0 0.0
  %271 = vmatpush1.msra.mxu0 0.0
  %272 = vmatprep.subr.mxu0 0.0
  %273 = vmatpush1.msra.mxu0 0.0
  %274 = vmatprep.subr.mxu0 0.0
  %275 = vmatpush1.msra.mxu0 0.0
  %276 = vmatprep.subr.mxu0 0.0
  %277 = vmatpush1.msra.mxu0 0.0
  %278 = vmatprep.subr.mxu0 %v257
  %279 = vmatpush1.msra.mxu0 %v256
  %280 = vmatprep.subr.mxu0 %v255
  %281 = vmatpush1.msra.mxu0 %v254
  %282 = vmatprep.subr.mxu0 %v253
  %283 = vmatpush1.msra.mxu0 %v252
  %284 = vmatprep.subr.mxu0 %v251
  %285 = vmatpush1.msra.mxu0 %v250
  %286 = vmatprep.subr.mxu0 %v249
  %287 = vmatpush1.msra.mxu0 %v248
  %288 = vmatprep.subr.mxu0 %v247
  %289 = vmatpush1.msra.mxu0 %v246
  %290 = vmatprep.subr.mxu0 %v245
  %291 = vmatpush1.msra.mxu0 %v244
  %292 = vmatprep.subr.mxu0 %v243
  %293 = vmatpush1.msra.mxu0 %v242
  %294 = vmatprep.subr.mxu0 0.0
  %295 = vmatpush2.msra.mxu0 0.0
  %296 = vmatprep.subr.mxu0 0.0
  %297 = vmatpush2.msra.mxu0 0.0
  %298 = vmatprep.subr.mxu0 0.0
  %299 = vmatpush2.msra.mxu0 0.0
  %300 = vmatprep.subr.mxu0 0.0
  %301 = vmatpush2.msra.mxu0 0.0
  %302 = vmatprep.subr.mxu0 0.0
  %303 = vmatpush2.msra.mxu0 0.0
  %304 = vmatprep.subr.mxu0 0.0
  %305 = vmatpush2.msra.mxu0 0.0
  %306 = vmatprep.subr.mxu0 0.0
  %307 = vmatpush2.msra.mxu0 0.0
  %308 = vmatprep.subr.mxu0 0.0
  %309 = vmatpush2.msra.mxu0 0.0
  %310 = vmatprep.subr.mxu0 0.0
  %311 = vmatpush2.msra.mxu0 0.0
  %312 = vmatprep.subr.mxu0 0.0
  %313 = vmatpush2.msra.mxu0 0.0
  %314 = vmatprep.subr.mxu0 0.0
  %315 = vmatpush2.msra.mxu0 0.0
  %316 = vmatprep.subr.mxu0 0.0
  %317 = vmatpush2.msra.mxu0 0.0
  %318 = vmatprep.subr.mxu0 0.0
  %319 = vmatpush2.msra.mxu0 0.0
  %320 = vmatprep.subr.mxu0 0.0
  %321 = vmatpush2.msra.mxu0 0.0
  %322 = vmatprep.subr.mxu0 0.0
  %323 = vmatpush2.msra.mxu0 0.0
  %324 = vmatprep.subr.mxu0 0.0
  %325 = vmatpush2.msra.mxu0 0.0
  %326 = vmatprep.mubr.f32.mxu0 0.0
  %327 = vmatmul.mubr.f32.gmra.mxu0 %v260
  %v328 = vpop.f32.mrf.mxu0
  %v329 = vadd.f32 0.0, %v328
  %v330 = vpop.f32.mrf.mxu0
  %v331 = vadd.f32 0.0, %v330
  %332 = vdwg.mxu0
  %v333 = vadd.f32 %v240, %v329
  %v334 = vadd.f32 %v241, %v331
  %v335 = vmul.f32 %v333, %v238
  %v336 = vmul.f32 %v334, %v239
  %v337 = vtanh.pop %v335
  %v338 = vtanh.pop %v336
  %v339 = vmul.f32 %v337, 0.5
  %v340 = vmul.f32 %v338, 0.5
  %v341 = vadd.f32 %v339, 0.5
  %v342 = vadd.f32 %v340, 0.5
  %v343 = vmul.f32 %v341, 0.0
  %v344 = vmul.f32 %v341, %v338
  %346 = vrot.lane.b32.xlu0 %v344, 64
  %v347 = vpop.permute.xlu0 %346
  %v349 = vadd.f32 %v343, %v347
  %v350 = vtanh.pop %v349
  %v351 = vmul.f32 %v342, %v350
  %v352 = vld [vmem:[#allocation2 + $0x10] sm:$0xff]
  %v353 = vld [vmem:[#allocation2 + $0x18] sm:$0xff]
  %355 = vrot.lane.b32.xlu0 %v351, 64
  %v356 = vpop.permute.xlu0 %355
  %v357 = vsel %vm258, %v356, 0
  %359 = vmatprep.subr.mxu0 0.0
  %360 = vmatpush1.msra.mxu0 0.0
  %361 = vmatprep.subr.mxu0 0.0
  %362 = vmatpush1.msra.mxu0 0.0
  %363 = vmatprep.subr.mxu0 0.0
  %364 = vmatpush1.msra.mxu0 0.0
  %365 = vmatprep.subr.mxu0 0.0
  %366 = vmatpush1.msra.mxu0 0.0
  %367 = vmatprep.subr.mxu0 0.0
  %368 = vmatpush1.msra.mxu0 0.0
  %369 = vmatprep.subr.mxu0 0.0
  %370 = vmatpush1.msra.mxu0 0.0
  %371 = vmatprep.subr.mxu0 0.0
  %372 = vmatpush1.msra.mxu0 0.0
  %373 = vmatprep.subr.mxu0 0.0
  %374 = vmatpush1.msra.mxu0 0.0
  %375 = vmatprep.subr.mxu0 %v257
  %376 = vmatpush1.msra.mxu0 %v256
  %377 = vmatprep.subr.mxu0 %v255
  %378 = vmatpush1.msra.mxu0 %v254
  %379 = vmatprep.subr.mxu0 %v253
  %380 = vmatpush1.msra.mxu0 %v252
  %381 = vmatprep.subr.mxu0 %v251
  %382 = vmatpush1.msra.mxu0 %v250
  %383 = vmatprep.subr.mxu0 %v249
  %384 = vmatpush1.msra.mxu0 %v248
  %385 = vmatprep.subr.mxu0 %v247
  %386 = vmatpush1.msra.mxu0 %v246
  %387 = vmatprep.subr.mxu0 %v245
  %388 = vmatpush1.msra.mxu0 %v244
  %389 = vmatprep.subr.mxu0 %v243
  %390 = vmatpush1.msra.mxu0 %v242
  %391 = vmatprep.subr.mxu0 0.0
  %392 = vmatpush2.msra.mxu0 0.0
  %393 = vmatprep.subr.mxu0 0.0
  %394 = vmatpush2.msra.mxu0 0.0
  %395 = vmatprep.subr.mxu0 0.0
  %396 = vmatpush2.msra.mxu0 0.0
  %397 = vmatprep.subr.mxu0 0.0
  %398 = vmatpush2.msra.mxu0 0.0
  %399 = vmatprep.subr.mxu0 0.0
  %400 = vmatpush2.msra.mxu0 0.0
  %401 = vmatprep.subr.mxu0 0.0
  %402 = vmatpush2.msra.mxu0 0.0
  %403 = vmatprep.subr.mxu0 0.0
  %404 = vmatpush2.msra.mxu0 0.0
  %405 = vmatprep.subr.mxu0 0.0
  %406 = vmatpush2.msra.mxu0 0.0
  %407 = vmatprep.subr.mxu0 0.0
  %408 = vmatpush2.msra.mxu0 0.0
  %409 = vmatprep.subr.mxu0 0.0
  %410 = vmatpush2.msra.mxu0 0.0
  %411 = vmatprep.subr.mxu0 0.0
  %412 = vmatpush2.msra.mxu0 0.0
  %413 = vmatprep.subr.mxu0 0.0
  %414 = vmatpush2.msra.mxu0 0.0
  %415 = vmatprep.subr.mxu0 0.0
  %416 = vmatpush2.msra.mxu0 0.0
  %417 = vmatprep.subr.mxu0 0.0
  %418 = vmatpush2.msra.mxu0 0.0
  %419 = vmatprep.subr.mxu0 0.0
  %420 = vmatpush2.msra.mxu0 0.0
  %421 = vmatprep.subr.mxu0 0.0
  %422 = vmatpush2.msra.mxu0 0.0
  %423 = vmatprep.mubr.f32.mxu0 0.0
  %424 = vmatmul.mubr.f32.gmra.mxu0 %v357
  %v425 = vpop.f32.mrf.mxu0
  %v426 = vadd.f32 0.0, %v425
  %v427 = vpop.f32.mrf.mxu0
  %v428 = vadd.f32 0.0, %v427
  %429 = vdwg.mxu0
  %v430 = vadd.f32 %v352, %v426
  %v431 = vadd.f32 %v353, %v428
  %v432 = vmul.f32 %v430, %v238
  %v433 = vmul.f32 %v431, %v239
  %v434 = vtanh.pop %v432
  %v435 = vtanh.pop %v433
  %v436 = vmul.f32 %v434, 0.5
  %v437 = vmul.f32 %v435, 0.5
  %v438 = vadd.f32 %v436, 0.5
  %v439 = vadd.f32 %v437, 0.5
  %v440 = vmul.f32 %v438, %v349
  %v441 = vmul.f32 %v438, %v435
  %443 = vrot.lane.b32.xlu0 %v441, 64
  %v444 = vpop.permute.xlu0 %443
  %v446 = vadd.f32 %v440, %v444
  %v447 = vtanh.pop %v446
  %v448 = vmul.f32 %v439, %v447
  %v450 = vsel %vm258, %v356, 0.0
  %v451 = vld [vmem:[%s4] sm:$0xff]
  %v452 = vld [vmem:[%s4 + $0x8] sm:$0xff]
  %v453 = vld [vmem:[%s4 + $0x10] sm:$0xff]
  %v454 = vld [vmem:[%s4 + $0x18] sm:$0xff]
  %v455 = vld [vmem:[%s4 + $0x20] sm:$0xff]
  %v456 = vld [vmem:[%s4 + $0x28] sm:$0xff]
  %v457 = vld [vmem:[%s4 + $0x30] sm:$0xff]
  %v458 = vld [vmem:[%s4 + $0x38] sm:$0xff]
  %v459 = vld [vmem:[%s4 + $0x40] sm:$0xff]
  %v460 = vld [vmem:[%s4 + $0x48] sm:$0xff]
  %v461 = vld [vmem:[%s4 + $0x50] sm:$0xff]
  %v462 = vld [vmem:[%s4 + $0x58] sm:$0xff]
  %v463 = vld [vmem:[%s4 + $0x60] sm:$0xff]
  %v464 = vld [vmem:[%s4 + $0x68] sm:$0xff]
  %v465 = vld [vmem:[%s4 + $0x70] sm:$0xff]
  %v466 = vld [vmem:[%s4 + $0x78] sm:$0xff]
  %v467 = vld [vmem:[%s4 + $0x80] sm:$0xff]
  %v468 = vld [vmem:[%s4 + $0x88] sm:$0xff]
  %v469 = vld [vmem:[%s4 + $0x90] sm:$0xff]
  %v470 = vld [vmem:[%s4 + $0x98] sm:$0xff]
  %v471 = vld [vmem:[%s4 + $0xa0] sm:$0xff]
  %v472 = vld [vmem:[%s4 + $0xa8] sm:$0xff]
  %v473 = vld [vmem:[%s4 + $0xb0] sm:$0xff]
  %v474 = vld [vmem:[%s4 + $0xb8] sm:$0xff]
  %v475 = vld [vmem:[%s4 + $0xc0] sm:$0xff]
  %v476 = vld [vmem:[%s4 + $0xc8] sm:$0xff]
  %v477 = vld [vmem:[%s4 + $0xd0] sm:$0xff]
  %v478 = vld [vmem:[%s4 + $0xd8] sm:$0xff]
  %v479 = vld [vmem:[%s4 + $0xe0] sm:$0xff]
  %v480 = vld [vmem:[%s4 + $0xe8] sm:$0xff]
  %v481 = vld [vmem:[%s4 + $0xf0] sm:$0xff]
  %v482 = vld [vmem:[%s4 + $0xf8] sm:$0xff]
  %v483 = vld [vmem:[%s5] sm:$0x3]
  %v485 = vlaneseq
  %v486 = vshrl.u32 %v485, 7
  %v487 = vsub.s32 0, %v486
  %v488 = vrot.slane %v483, %v487
  %v489 = vlaneseq
  %v490 = vshrl.u32 %v489, 7
  %v491 = vsub.s32 1, %v490
  %v492 = vrot.slane %v483, %v491
  %495 = vmatprep.subr.mxu0 %v482
  %496 = vmatpush1.msra.mxu0 %v481
  %497 = vmatprep.subr.mxu0 %v480
  %498 = vmatpush1.msra.mxu0 %v479
  %499 = vmatprep.subr.mxu0 %v478
  %500 = vmatpush1.msra.mxu0 %v477
  %501 = vmatprep.subr.mxu0 %v476
  %502 = vmatpush1.msra.mxu0 %v475
  %503 = vmatprep.subr.mxu0 %v474
  %504 = vmatpush1.msra.mxu0 %v473
  %505 = vmatprep.subr.mxu0 %v472
  %506 = vmatpush1.msra.mxu0 %v471
  %507 = vmatprep.subr.mxu0 %v470
  %508 = vmatpush1.msra.mxu0 %v469
  %509 = vmatprep.subr.mxu0 %v468
  %510 = vmatpush1.msra.mxu0 %v467
  %511 = vmatprep.subr.mxu0 %v466
  %512 = vmatpush1.msra.mxu0 %v465
  %513 = vmatprep.subr.mxu0 %v464
  %514 = vmatpush1.msra.mxu0 %v463
  %515 = vmatprep.subr.mxu0 %v462
  %516 = vmatpush1.msra.mxu0 %v461
  %517 = vmatprep.subr.mxu0 %v460
  %518 = vmatpush1.msra.mxu0 %v459
  %519 = vmatprep.subr.mxu0 %v458
  %520 = vmatpush1.msra.mxu0 %v457
  %521 = vmatprep.subr.mxu0 %v456
  %522 = vmatpush1.msra.mxu0 %v455
  %523 = vmatprep.subr.mxu0 %v454
  %524 = vmatpush1.msra.mxu0 %v453
  %525 = vmatprep.subr.mxu0 %v452
  %526 = vmatpush1.msra.mxu0 %v451
  %527 = vmatprep.subr.mxu0 0.0
  %528 = vmatpush2.msra.mxu0 0.0
  %529 = vmatprep.subr.mxu0 0.0
  %530 = vmatpush2.msra.mxu0 0.0
  %531 = vmatprep.subr.mxu0 0.0
  %532 = vmatpush2.msra.mxu0 0.0
  %533 = vmatprep.subr.mxu0 0.0
  %534 = vmatpush2.msra.mxu0 0.0
  %535 = vmatprep.subr.mxu0 0.0
  %536 = vmatpush2.msra.mxu0 0.0
  %537 = vmatprep.subr.mxu0 0.0
  %538 = vmatpush2.msra.mxu0 0.0
  %539 = vmatprep.subr.mxu0 0.0
  %540 = vmatpush2.msra.mxu0 0.0
  %541 = vmatprep.subr.mxu0 0.0
  %542 = vmatpush2.msra.mxu0 0.0
  %543 = vmatprep.subr.mxu0 0.0
  %544 = vmatpush2.msra.mxu0 0.0
  %545 = vmatprep.subr.mxu0 0.0
  %546 = vmatpush2.msra.mxu0 0.0
  %547 = vmatprep.subr.mxu0 0.0
  %548 = vmatpush2.msra.mxu0 0.0
  %549 = vmatprep.subr.mxu0 0.0
  %550 = vmatpush2.msra.mxu0 0.0
  %551 = vmatprep.subr.mxu0 0.0
  %552 = vmatpush2.msra.mxu0 0.0
  %553 = vmatprep.subr.mxu0 0.0
  %554 = vmatpush2.msra.mxu0 0.0
  %555 = vmatprep.subr.mxu0 0.0
  %556 = vmatpush2.msra.mxu0 0.0
  %557 = vmatprep.subr.mxu0 0.0
  %558 = vmatpush2.msra.mxu0 0.0
  %559 = vmatprep.mubr.f32.mxu0 0.0
  %560 = vmatmul.mubr.f32.gmra.mxu0 %v450
  %v561 = vpop.f32.mrf.mxu0
  %v562 = vadd.f32 %v488, %v561
  %v563 = vpop.f32.mrf.mxu0
  %v564 = vadd.f32 %v492, %v563
  %565 = vdwg.mxu0
  %v566 = vmul.f32 %v562, %v238
  %v567 = vmul.f32 %v564, %v239
  %v568 = vtanh.pop %v566
  %v569 = vtanh.pop %v567
  %v570 = vmul.f32 %v568, 0.5
  %v571 = vmul.f32 %v569, 0.5
  %v572 = vadd.f32 %v570, 0.5
  %v573 = vadd.f32 %v571, 0.5
  %v574 = vmul.f32 %v572, 0.0
  %v575 = vmul.f32 %v572, %v569
  %577 = vrot.lane.b32.xlu0 %v575, 64
  %v578 = vpop.permute.xlu0 %577
  %v580 = vadd.f32 %v574, %v578
  %v581 = vtanh.pop %v580
  %v582 = vmul.f32 %v573, %v581
  %v583 = vld [vmem:[#allocation2 + $0x20] sm:$0xff]
  %v584 = vld [vmem:[#allocation2 + $0x28] sm:$0xff]
  %586 = vrot.lane.b32.xlu0 %v448, 64
  %v587 = vpop.permute.xlu0 %586
  %v588 = vsel %vm258, %v587, 0
  %590 = vmatprep.subr.mxu0 0.0
  %591 = vmatpush1.msra.mxu0 0.0
  %592 = vmatprep.subr.mxu0 0.0
  %593 = vmatpush1.msra.mxu0 0.0
  %594 = vmatprep.subr.mxu0 0.0
  %595 = vmatpush1.msra.mxu0 0.0
  %596 = vmatprep.subr.mxu0 0.0
  %597 = vmatpush1.msra.mxu0 0.0
  %598 = vmatprep.subr.mxu0 0.0
  %599 = vmatpush1.msra.mxu0 0.0
  %600 = vmatprep.subr.mxu0 0.0
  %601 = vmatpush1.msra.mxu0 0.0
  %602 = vmatprep.subr.mxu0 0.0
  %603 = vmatpush1.msra.mxu0 0.0
  %604 = vmatprep.subr.mxu0 0.0
  %605 = vmatpush1.msra.mxu0 0.0
  %606 = vmatprep.subr.mxu0 %v257
  %607 = vmatpush1.msra.mxu0 %v256
  %608 = vmatprep.subr.mxu0 %v255
  %609 = vmatpush1.msra.mxu0 %v254
  %610 = vmatprep.subr.mxu0 %v253
  %611 = vmatpush1.msra.mxu0 %v252
  %612 = vmatprep.subr.mxu0 %v251
  %613 = vmatpush1.msra.mxu0 %v250
  %614 = vmatprep.subr.mxu0 %v249
  %615 = vmatpush1.msra.mxu0 %v248
  %616 = vmatprep.subr.mxu0 %v247
  %617 = vmatpush1.msra.mxu0 %v246
  %618 = vmatprep.subr.mxu0 %v245
  %619 = vmatpush1.msra.mxu0 %v244
  %620 = vmatprep.subr.mxu0 %v243
  %621 = vmatpush1.msra.mxu0 %v242
  %622 = vmatprep.subr.mxu0 0.0
  %623 = vmatpush2.msra.mxu0 0.0
  %624 = vmatprep.subr.mxu0 0.0
  %625 = vmatpush2.msra.mxu0 0.0
  %626 = vmatprep.subr.mxu0 0.0
  %627 = vmatpush2.msra.mxu0 0.0
  %628 = vmatprep.subr.mxu0 0.0
  %629 = vmatpush2.msra.mxu0 0.0
  %630 = vmatprep.subr.mxu0 0.0
  %631 = vmatpush2.msra.mxu0 0.0
  %632 = vmatprep.subr.mxu0 0.0
  %633 = vmatpush2.msra.mxu0 0.0
  %634 = vmatprep.subr.mxu0 0.0
  %635 = vmatpush2.msra.mxu0 0.0
  %636 = vmatprep.subr.mxu0 0.0
  %637 = vmatpush2.msra.mxu0 0.0
  %638 = vmatprep.subr.mxu0 0.0
  %639 = vmatpush2.msra.mxu0 0.0
  %640 = vmatprep.subr.mxu0 0.0
  %641 = vmatpush2.msra.mxu0 0.0
  %642 = vmatprep.subr.mxu0 0.0
  %643 = vmatpush2.msra.mxu0 0.0
  %644 = vmatprep.subr.mxu0 0.0
  %645 = vmatpush2.msra.mxu0 0.0
  %646 = vmatprep.subr.mxu0 0.0
  %647 = vmatpush2.msra.mxu0 0.0
  %648 = vmatprep.subr.mxu0 0.0
  %649 = vmatpush2.msra.mxu0 0.0
  %650 = vmatprep.subr.mxu0 0.0
  %651 = vmatpush2.msra.mxu0 0.0
  %652 = vmatprep.subr.mxu0 0.0
  %653 = vmatpush2.msra.mxu0 0.0
  %654 = vmatprep.mubr.f32.mxu0 0.0
  %655 = vmatmul.mubr.f32.gmra.mxu0 %v588
  %v656 = vpop.f32.mrf.mxu0
  %v657 = vadd.f32 0.0, %v656
  %v658 = vpop.f32.mrf.mxu0
  %v659 = vadd.f32 0.0, %v658
  %660 = vdwg.mxu0
  %v661 = vadd.f32 %v583, %v657
  %v662 = vadd.f32 %v584, %v659
  %v663 = vmul.f32 %v661, %v238
  %v664 = vmul.f32 %v662, %v239
  %v665 = vtanh.pop %v663
  %v666 = vtanh.pop %v664
  %v667 = vmul.f32 %v665, 0.5
  %v668 = vmul.f32 %v666, 0.5
  %v669 = vadd.f32 %v667, 0.5
  %v670 = vadd.f32 %v668, 0.5
  %v671 = vmul.f32 %v669, %v446
  %v672 = vmul.f32 %v669, %v666
  %674 = vrot.lane.b32.xlu0 %v672, 64
  %v675 = vpop.permute.xlu0 %674
  %v677 = vadd.f32 %v671, %v675
  %v678 = vtanh.pop %v677
  %v679 = vmul.f32 %v670, %v678
  %v681 = vsel %vm258, %v587, %v582
  %682 = vmatprep.subr.mxu0 %v482
  %683 = vmatpush1.msra.mxu0 %v481
  %684 = vmatprep.subr.mxu0 %v480
  %685 = vmatpush1.msra.mxu0 %v479
  %686 = vmatprep.subr.mxu0 %v478
  %687 = vmatpush1.msra.mxu0 %v477
  %688 = vmatprep.subr.mxu0 %v476
  %689 = vmatpush1.msra.mxu0 %v475
  %690 = vmatprep.subr.mxu0 %v474
  %691 = vmatpush1.msra.mxu0 %v473
  %692 = vmatprep.subr.mxu0 %v472
  %693 = vmatpush1.msra.mxu0 %v471
  %694 = vmatprep.subr.mxu0 %v470
  %695 = vmatpush1.msra.mxu0 %v469
  %696 = vmatprep.subr.mxu0 %v468
  %697 = vmatpush1.msra.mxu0 %v467
  %698 = vmatprep.subr.mxu0 %v466
  %699 = vmatpush1.msra.mxu0 %v465
  %700 = vmatprep.subr.mxu0 %v464
  %701 = vmatpush1.msra.mxu0 %v463
  %702 = vmatprep.subr.mxu0 %v462
  %703 = vmatpush1.msra.mxu0 %v461
  %704 = vmatprep.subr.mxu0 %v460
  %705 = vmatpush1.msra.mxu0 %v459
  %706 = vmatprep.subr.mxu0 %v458
  %707 = vmatpush1.msra.mxu0 %v457
  %708 = vmatprep.subr.mxu0 %v456
  %709 = vmatpush1.msra.mxu0 %v455
  %710 = vmatprep.subr.mxu0 %v454
  %711 = vmatpush1.msra.mxu0 %v453
  %712 = vmatprep.subr.mxu0 %v452
  %713 = vmatpush1.msra.mxu0 %v451
  %714 = vmatprep.subr.mxu0 0.0
  %715 = vmatpush2.msra.mxu0 0.0
  %716 = vmatprep.subr.mxu0 0.0
  %717 = vmatpush2.msra.mxu0 0.0
  %718 = vmatprep.subr.mxu0 0.0
  %719 = vmatpush2.msra.mxu0 0.0
  %720 = vmatprep.subr.mxu0 0.0
  %721 = vmatpush2.msra.mxu0 0.0
  %722 = vmatprep.subr.mxu0 0.0
  %723 = vmatpush2.msra.mxu0 0.0
  %724 = vmatprep.subr.mxu0 0.0
  %725 = vmatpush2.msra.mxu0 0.0
  %726 = vmatprep.subr.mxu0 0.0
  %727 = vmatpush2.msra.mxu0 0.0
  %728 = vmatprep.subr.mxu0 0.0
  %729 = vmatpush2.msra.mxu0 0.0
  %730 = vmatprep.subr.mxu0 0.0
  %731 = vmatpush2.msra.mxu0 0.0
  %732 = vmatprep.subr.mxu0 0.0
  %733 = vmatpush2.msra.mxu0 0.0
  %734 = vmatprep.subr.mxu0 0.0
  %735 = vmatpush2.msra.mxu0 0.0
  %736 = vmatprep.subr.mxu0 0.0
  %737 = vmatpush2.msra.mxu0 0.0
  %738 = vmatprep.subr.mxu0 0.0
  %739 = vmatpush2.msra.mxu0 0.0
  %740 = vmatprep.subr.mxu0 0.0
  %741 = vmatpush2.msra.mxu0 0.0
  %742 = vmatprep.subr.mxu0 0.0
  %743 = vmatpush2.msra.mxu0 0.0
  %744 = vmatprep.subr.mxu0 0.0
  %745 = vmatpush2.msra.mxu0 0.0
  %746 = vmatprep.mubr.f32.mxu0 0.0
  %747 = vmatmul.mubr.f32.gmra.mxu0 %v681
  %v748 = vpop.f32.mrf.mxu0
  %v749 = vadd.f32 %v488, %v748
  %v750 = vpop.f32.mrf.mxu0
  %v751 = vadd.f32 %v492, %v750
  %752 = vdwg.mxu0
  %v753 = vmul.f32 %v749, %v238
  %v754 = vmul.f32 %v751, %v239
  %v755 = vtanh.pop %v753
  %v756 = vtanh.pop %v754
  %v757 = vmul.f32 %v755, 0.5
  %v758 = vmul.f32 %v756, 0.5
  %v759 = vadd.f32 %v757, 0.5
  %v760 = vadd.f32 %v758, 0.5
  %v761 = vmul.f32 %v759, %v580
  %v762 = vmul.f32 %v759, %v756
  %764 = vrot.lane.b32.xlu0 %v762, 64
  %v765 = vpop.permute.xlu0 %764
  %v767 = vadd.f32 %v761, %v765
  %v768 = vtanh.pop %v767
  %v769 = vmul.f32 %v760, %v768
  %771 = vrot.lane.b32.xlu0 %v582, 64
  %v772 = vpop.permute.xlu0 %771
  %v774 = vsel %vm258, %v772, 0.0
  %v775 = vld [vmem:[%s6] sm:$0xff]
  %v776 = vld [vmem:[%s6 + $0x8] sm:$0xff]
  %v777 = vld [vmem:[%s6 + $0x10] sm:$0xff]
  %v778 = vld [vmem:[%s6 + $0x18] sm:$0xff]
  %v779 = vld [vmem:[%s6 + $0x20] sm:$0xff]
  %v780 = vld [vmem:[%s6 + $0x28] sm:$0xff]
  %v781 = vld [vmem:[%s6 + $0x30] sm:$0xff]
  %v782 = vld [vmem:[%s6 + $0x38] sm:$0xff]
  %v783 = vld [vmem:[%s6 + $0x40] sm:$0xff]
  %v784 = vld [vmem:[%s6 + $0x48] sm:$0xff]
  %v785 = vld [vmem:[%s6 + $0x50] sm:$0xff]
  %v786 = vld [vmem:[%s6 + $0x58] sm:$0xff]
  %v787 = vld [vmem:[%s6 + $0x60] sm:$0xff]
  %v788 = vld [vmem:[%s6 + $0x68] sm:$0xff]
  %v789 = vld [vmem:[%s6 + $0x70] sm:$0xff]
  %v790 = vld [vmem:[%s6 + $0x78] sm:$0xff]
  %v791 = vld [vmem:[%s6 + $0x80] sm:$0xff]
  %v792 = vld [vmem:[%s6 + $0x88] sm:$0xff]
  %v793 = vld [vmem:[%s6 + $0x90] sm:$0xff]
  %v794 = vld [vmem:[%s6 + $0x98] sm:$0xff]
  %v795 = vld [vmem:[%s6 + $0xa0] sm:$0xff]
  %v796 = vld [vmem:[%s6 + $0xa8] sm:$0xff]
  %v797 = vld [vmem:[%s6 + $0xb0] sm:$0xff]
  %v798 = vld [vmem:[%s6 + $0xb8] sm:$0xff]
  %v799 = vld [vmem:[%s6 + $0xc0] sm:$0xff]
  %v800 = vld [vmem:[%s6 + $0xc8] sm:$0xff]
  %v801 = vld [vmem:[%s6 + $0xd0] sm:$0xff]
  %v802 = vld [vmem:[%s6 + $0xd8] sm:$0xff]
  %v803 = vld [vmem:[%s6 + $0xe0] sm:$0xff]
  %v804 = vld [vmem:[%s6 + $0xe8] sm:$0xff]
  %v805 = vld [vmem:[%s6 + $0xf0] sm:$0xff]
  %v806 = vld [vmem:[%s6 + $0xf8] sm:$0xff]
  %v807 = vld [vmem:[%s7] sm:$0x3]
  %v809 = vlaneseq
  %v810 = vshrl.u32 %v809, 7
  %v811 = vsub.s32 0, %v810
  %v812 = vrot.slane %v807, %v811
  %v813 = vlaneseq
  %v814 = vshrl.u32 %v813, 7
  %v815 = vsub.s32 1, %v814
  %v816 = vrot.slane %v807, %v815
  %819 = vmatprep.subr.mxu0 %v806
  %820 = vmatpush1.msra.mxu0 %v805
  %821 = vmatprep.subr.mxu0 %v804
  %822 = vmatpush1.msra.mxu0 %v803
  %823 = vmatprep.subr.mxu0 %v802
  %824 = vmatpush1.msra.mxu0 %v801
  %825 = vmatprep.subr.mxu0 %v800
  %826 = vmatpush1.msra.mxu0 %v799
  %827 = vmatprep.subr.mxu0 %v798
  %828 = vmatpush1.msra.mxu0 %v797
  %829 = vmatprep.subr.mxu0 %v796
  %830 = vmatpush1.msra.mxu0 %v795
  %831 = vmatprep.subr.mxu0 %v794
  %832 = vmatpush1.msra.mxu0 %v793
  %833 = vmatprep.subr.mxu0 %v792
  %834 = vmatpush1.msra.mxu0 %v791
  %835 = vmatprep.subr.mxu0 %v790
  %836 = vmatpush1.msra.mxu0 %v789
  %837 = vmatprep.subr.mxu0 %v788
  %838 = vmatpush1.msra.mxu0 %v787
  %839 = vmatprep.subr.mxu0 %v786
  %840 = vmatpush1.msra.mxu0 %v785
  %841 = vmatprep.subr.mxu0 %v784
  %842 = vmatpush1.msra.mxu0 %v783
  %843 = vmatprep.subr.mxu0 %v782
  %844 = vmatpush1.msra.mxu0 %v781
  %845 = vmatprep.subr.mxu0 %v780
  %846 = vmatpush1.msra.mxu0 %v779
  %847 = vmatprep.subr.mxu0 %v778
  %848 = vmatpush1.msra.mxu0 %v777
  %849 = vmatprep.subr.mxu0 %v776
  %850 = vmatpush1.msra.mxu0 %v775
  %851 = vmatprep.subr.mxu0 0.0
  %852 = vmatpush2.msra.mxu0 0.0
  %853 = vmatprep.subr.mxu0 0.0
  %854 = vmatpush2.msra.mxu0 0.0
  %855 = vmatprep.subr.mxu0 0.0
  %856 = vmatpush2.msra.mxu0 0.0
  %857 = vmatprep.subr.mxu0 0.0
  %858 = vmatpush2.msra.mxu0 0.0
  %859 = vmatprep.subr.mxu0 0.0
  %860 = vmatpush2.msra.mxu0 0.0
  %861 = vmatprep.subr.mxu0 0.0
  %862 = vmatpush2.msra.mxu0 0.0
  %863 = vmatprep.subr.mxu0 0.0
  %864 = vmatpush2.msra.mxu0 0.0
  %865 = vmatprep.subr.mxu0 0.0
  %866 = vmatpush2.msra.mxu0 0.0
  %867 = vmatprep.subr.mxu0 0.0
  %868 = vmatpush2.msra.mxu0 0.0
  %869 = vmatprep.subr.mxu0 0.0
  %870 = vmatpush2.msra.mxu0 0.0
  %871 = vmatprep.subr.mxu0 0.0
  %872 = vmatpush2.msra.mxu0 0.0
  %873 = vmatprep.subr.mxu0 0.0
  %874 = vmatpush2.msra.mxu0 0.0
  %875 = vmatprep.subr.mxu0 0.0
  %876 = vmatpush2.msra.mxu0 0.0
  %877 = vmatprep.subr.mxu0 0.0
  %878 = vmatpush2.msra.mxu0 0.0
  %879 = vmatprep.subr.mxu0 0.0
  %880 = vmatpush2.msra.mxu0 0.0
  %881 = vmatprep.subr.mxu0 0.0
  %882 = vmatpush2.msra.mxu0 0.0
  %883 = vmatprep.mubr.f32.mxu0 0.0
  %884 = vmatmul.mubr.f32.gmra.mxu0 %v774
  %v885 = vpop.f32.mrf.mxu0
  %v886 = vadd.f32 %v812, %v885
  %v887 = vpop.f32.mrf.mxu0
  %v888 = vadd.f32 %v816, %v887
  %889 = vdwg.mxu0
  %v890 = vmul.f32 %v886, %v238
  %v891 = vmul.f32 %v888, %v239
  %v892 = vtanh.pop %v890
  %v893 = vtanh.pop %v891
  %v894 = vmul.f32 %v892, 0.5
  %v895 = vmul.f32 %v893, 0.5
  %v896 = vadd.f32 %v894, 0.5
  %v897 = vadd.f32 %v895, 0.5
  %v898 = vmul.f32 %v896, 0.0
  %v899 = vmul.f32 %v896, %v893
  %901 = vrot.lane.b32.xlu0 %v899, 64
  %v902 = vpop.permute.xlu0 %901
  %v904 = vadd.f32 %v898, %v902
  %v905 = vtanh.pop %v904
  %v906 = vmul.f32 %v897, %v905
  %v907 = vld [vmem:[#allocation2 + $0x30] sm:$0xff]
  %v908 = vld [vmem:[#allocation2 + $0x38] sm:$0xff]
  %910 = vrot.lane.b32.xlu0 %v679, 64
  %v911 = vpop.permute.xlu0 %910
  %v912 = vsel %vm258, %v911, 0
  %914 = vmatprep.subr.mxu0 0.0
  %915 = vmatpush1.msra.mxu0 0.0
  %916 = vmatprep.subr.mxu0 0.0
  %917 = vmatpush1.msra.mxu0 0.0
  %918 = vmatprep.subr.mxu0 0.0
  %919 = vmatpush1.msra.mxu0 0.0
  %920 = vmatprep.subr.mxu0 0.0
  %921 = vmatpush1.msra.mxu0 0.0
  %922 = vmatprep.subr.mxu0 0.0
  %923 = vmatpush1.msra.mxu0 0.0
  %924 = vmatprep.subr.mxu0 0.0
  %925 = vmatpush1.msra.mxu0 0.0
  %926 = vmatprep.subr.mxu0 0.0
  %927 = vmatpush1.msra.mxu0 0.0
  %928 = vmatprep.subr.mxu0 0.0
  %929 = vmatpush1.msra.mxu0 0.0
  %930 = vmatprep.subr.mxu0 %v257
  %931 = vmatpush1.msra.mxu0 %v256
  %932 = vmatprep.subr.mxu0 %v255
  %933 = vmatpush1.msra.mxu0 %v254
  %934 = vmatprep.subr.mxu0 %v253
  %935 = vmatpush1.msra.mxu0 %v252
  %936 = vmatprep.subr.mxu0 %v251
  %937 = vmatpush1.msra.mxu0 %v250
  %938 = vmatprep.subr.mxu0 %v249
  %939 = vmatpush1.msra.mxu0 %v248
  %940 = vmatprep.subr.mxu0 %v247
  %941 = vmatpush1.msra.mxu0 %v246
  %942 = vmatprep.subr.mxu0 %v245
  %943 = vmatpush1.msra.mxu0 %v244
  %944 = vmatprep.subr.mxu0 %v243
  %945 = vmatpush1.msra.mxu0 %v242
  %946 = vmatprep.subr.mxu0 0.0
  %947 = vmatpush2.msra.mxu0 0.0
  %948 = vmatprep.subr.mxu0 0.0
  %949 = vmatpush2.msra.mxu0 0.0
  %950 = vmatprep.subr.mxu0 0.0
  %951 = vmatpush2.msra.mxu0 0.0
  %952 = vmatprep.subr.mxu0 0.0
  %953 = vmatpush2.msra.mxu0 0.0
  %954 = vmatprep.subr.mxu0 0.0
  %955 = vmatpush2.msra.mxu0 0.0
  %956 = vmatprep.subr.mxu0 0.0
  %957 = vmatpush2.msra.mxu0 0.0
  %958 = vmatprep.subr.mxu0 0.0
  %959 = vmatpush2.msra.mxu0 0.0
  %960 = vmatprep.subr.mxu0 0.0
  %961 = vmatpush2.msra.mxu0 0.0
  %962 = vmatprep.subr.mxu0 0.0
  %963 = vmatpush2.msra.mxu0 0.0
  %964 = vmatprep.subr.mxu0 0.0
  %965 = vmatpush2.msra.mxu0 0.0
  %966 = vmatprep.subr.mxu0 0.0
  %967 = vmatpush2.msra.mxu0 0.0
  %968 = vmatprep.subr.mxu0 0.0
  %969 = vmatpush2.msra.mxu0 0.0
  %970 = vmatprep.subr.mxu0 0.0
  %971 = vmatpush2.msra.mxu0 0.0
  %972 = vmatprep.subr.mxu0 0.0
  %973 = vmatpush2.msra.mxu0 0.0
  %974 = vmatprep.subr.mxu0 0.0
  %975 = vmatpush2.msra.mxu0 0.0
  %976 = vmatprep.subr.mxu0 0.0
  %977 = vmatpush2.msra.mxu0 0.0
  %978 = vmatprep.mubr.f32.mxu0 0.0
  %979 = vmatmul.mubr.f32.gmra.mxu0 %v912
  %v980 = vpop.f32.mrf.mxu0
  %v981 = vadd.f32 0.0, %v980
  %v982 = vpop.f32.mrf.mxu0
  %v983 = vadd.f32 0.0, %v982
  %984 = vdwg.mxu0
  %v985 = vadd.f32 %v907, %v981
  %v986 = vadd.f32 %v908, %v983
  %v987 = vmul.f32 %v985, %v238
  %v988 = vmul.f32 %v986, %v239
  %v989 = vtanh.pop %v987
  %v990 = vtanh.pop %v988
  %v991 = vmul.f32 %v989, 0.5
  %v992 = vmul.f32 %v990, 0.5
  %v993 = vadd.f32 %v991, 0.5
  %v994 = vadd.f32 %v992, 0.5
  %v995 = vmul.f32 %v993, %v677
  %v996 = vmul.f32 %v993, %v990
  %998 = vrot.lane.b32.xlu0 %v996, 64
  %v999 = vpop.permute.xlu0 %998
  %v1001 = vadd.f32 %v995, %v999
  %v1002 = vtanh.pop %v1001
  %v1003 = vmul.f32 %v994, %v1002
  %v1005 = vsel %vm258, %v911, %v769
  %1006 = vmatprep.subr.mxu0 %v482
  %1007 = vmatpush1.msra.mxu0 %v481
  %1008 = vmatprep.subr.mxu0 %v480
  %1009 = vmatpush1.msra.mxu0 %v479
  %1010 = vmatprep.subr.mxu0 %v478
  %1011 = vmatpush1.msra.mxu0 %v477
  %1012 = vmatprep.subr.mxu0 %v476
  %1013 = vmatpush1.msra.mxu0 %v475
  %1014 = vmatprep.subr.mxu0 %v474
  %1015 = vmatpush1.msra.mxu0 %v473
  %1016 = vmatprep.subr.mxu0 %v472
  %1017 = vmatpush1.msra.mxu0 %v471
  %1018 = vmatprep.subr.mxu0 %v470
  %1019 = vmatpush1.msra.mxu0 %v469
  %1020 = vmatprep.subr.mxu0 %v468
  %1021 = vmatpush1.msra.mxu0 %v467
  %1022 = vmatprep.subr.mxu0 %v466
  %1023 = vmatpush1.msra.mxu0 %v465
  %1024 = vmatprep.subr.mxu0 %v464
  %1025 = vmatpush1.msra.mxu0 %v463
  %1026 = vmatprep.subr.mxu0 %v462
  %1027 = vmatpush1.msra.mxu0 %v461
  %1028 = vmatprep.subr.mxu0 %v460
  %1029 = vmatpush1.msra.mxu0 %v459
  %1030 = vmatprep.subr.mxu0 %v458
  %1031 = vmatpush1.msra.mxu0 %v457
  %1032 = vmatprep.subr.mxu0 %v456
  %1033 = vmatpush1.msra.mxu0 %v455
  %1034 = vmatprep.subr.mxu0 %v454
  %1035 = vmatpush1.msra.mxu0 %v453
  %1036 = vmatprep.subr.mxu0 %v452
  %1037 = vmatpush1.msra.mxu0 %v451
  %1038 = vmatprep.subr.mxu0 0.0
  %1039 = vmatpush2.msra.mxu0 0.0
  %1040 = vmatprep.subr.mxu0 0.0
  %1041 = vmatpush2.msra.mxu0 0.0
  %1042 = vmatprep.subr.mxu0 0.0
  %1043 = vmatpush2.msra.mxu0 0.0
  %1044 = vmatprep.subr.mxu0 0.0
  %1045 = vmatpush2.msra.mxu0 0.0
  %1046 = vmatprep.subr.mxu0 0.0
  %1047 = vmatpush2.msra.mxu0 0.0
  %1048 = vmatprep.subr.mxu0 0.0
  %1049 = vmatpush2.msra.mxu0 0.0
  %1050 = vmatprep.subr.mxu0 0.0
  %1051 = vmatpush2.msra.mxu0 0.0
  %1052 = vmatprep.subr.mxu0 0.0
  %1053 = vmatpush2.msra.mxu0 0.0
  %1054 = vmatprep.subr.mxu0 0.0
  %1055 = vmatpush2.msra.mxu0 0.0
  %1056 = vmatprep.subr.mxu0 0.0
  %1057 = vmatpush2.msra.mxu0 0.0
  %1058 = vmatprep.subr.mxu0 0.0
  %1059 = vmatpush2.msra.mxu0 0.0
  %1060 = vmatprep.subr.mxu0 0.0
  %1061 = vmatpush2.msra.mxu0 0.0
  %1062 = vmatprep.subr.mxu0 0.0
  %1063 = vmatpush2.msra.mxu0 0.0
  %1064 = vmatprep.subr.mxu0 0.0
  %1065 = vmatpush2.msra.mxu0 0.0
  %1066 = vmatprep.subr.mxu0 0.0
  %1067 = vmatpush2.msra.mxu0 0.0
  %1068 = vmatprep.subr.mxu0 0.0
  %1069 = vmatpush2.msra.mxu0 0.0
  %1070 = vmatprep.mubr.f32.mxu0 0.0
  %1071 = vmatmul.mubr.f32.gmra.mxu0 %v1005
  %v1072 = vpop.f32.mrf.mxu0
  %v1073 = vadd.f32 %v488, %v1072
  %v1074 = vpop.f32.mrf.mxu0
  %v1075 = vadd.f32 %v492, %v1074
  %1076 = vdwg.mxu0
  %v1077 = vmul.f32 %v1073, %v238
  %v1078 = vmul.f32 %v1075, %v239
  %v1079 = vtanh.pop %v1077
  %v1080 = vtanh.pop %v1078
  %v1081 = vmul.f32 %v1079, 0.5
  %v1082 = vmul.f32 %v1080, 0.5
  %v1083 = vadd.f32 %v1081, 0.5
  %v1084 = vadd.f32 %v1082, 0.5
  %v1085 = vmul.f32 %v1083, %v767
  %v1086 = vmul.f32 %v1083, %v1080
  %1088 = vrot.lane.b32.xlu0 %v1086, 64
  %v1089 = vpop.permute.xlu0 %1088
  %v1091 = vadd.f32 %v1085, %v1089
  %v1092 = vtanh.pop %v1091
  %v1093 = vmul.f32 %v1084, %v1092
  %1095 = vrot.lane.b32.xlu0 %v769, 64
  %v1096 = vpop.permute.xlu0 %1095
  %v1098 = vsel %vm258, %v1096, %v906
  %1099 = vmatprep.subr.mxu0 %v806
  %1100 = vmatpush1.msra.mxu0 %v805
  %1101 = vmatprep.subr.mxu0 %v804
  %1102 = vmatpush1.msra.mxu0 %v803
  %1103 = vmatprep.subr.mxu0 %v802
  %1104 = vmatpush1.msra.mxu0 %v801
  %1105 = vmatprep.subr.mxu0 %v800
  %1106 = vmatpush1.msra.mxu0 %v799
  %1107 = vmatprep.subr.mxu0 %v798
  %1108 = vmatpush1.msra.mxu0 %v797
  %1109 = vmatprep.subr.mxu0 %v796
  %1110 = vmatpush1.msra.mxu0 %v795
  %1111 = vmatprep.subr.mxu0 %v794
  %1112 = vmatpush1.msra.mxu0 %v793
  %1113 = vmatprep.subr.mxu0 %v792
  %1114 = vmatpush1.msra.mxu0 %v791
  %1115 = vmatprep.subr.mxu0 %v790
  %1116 = vmatpush1.msra.mxu0 %v789
  %1117 = vmatprep.subr.mxu0 %v788
  %1118 = vmatpush1.msra.mxu0 %v787
  %1119 = vmatprep.subr.mxu0 %v786
  %1120 = vmatpush1.msra.mxu0 %v785
  %1121 = vmatprep.subr.mxu0 %v784
  %1122 = vmatpush1.msra.mxu0 %v783
  %1123 = vmatprep.subr.mxu0 %v782
  %1124 = vmatpush1.msra.mxu0 %v781
  %1125 = vmatprep.subr.mxu0 %v780
  %1126 = vmatpush1.msra.mxu0 %v779
  %1127 = vmatprep.subr.mxu0 %v778
  %1128 = vmatpush1.msra.mxu0 %v777
  %1129 = vmatprep.subr.mxu0 %v776
  %1130 = vmatpush1.msra.mxu0 %v775
  %1131 = vmatprep.subr.mxu0 0.0
  %1132 = vmatpush2.msra.mxu0 0.0
  %1133 = vmatprep.subr.mxu0 0.0
  %1134 = vmatpush2.msra.mxu0 0.0
  %1135 = vmatprep.subr.mxu0 0.0
  %1136 = vmatpush2.msra.mxu0 0.0
  %1137 = vmatprep.subr.mxu0 0.0
  %1138 = vmatpush2.msra.mxu0 0.0
  %1139 = vmatprep.subr.mxu0 0.0
  %1140 = vmatpush2.msra.mxu0 0.0
  %1141 = vmatprep.subr.mxu0 0.0
  %1142 = vmatpush2.msra.mxu0 0.0
  %1143 = vmatprep.subr.mxu0 0.0
  %1144 = vmatpush2.msra.mxu0 0.0
  %1145 = vmatprep.subr.mxu0 0.0
  %1146 = vmatpush2.msra.mxu0 0.0
  %1147 = vmatprep.subr.mxu0 0.0
  %1148 = vmatpush2.msra.mxu0 0.0
  %1149 = vmatprep.subr.mxu0 0.0
  %1150 = vmatpush2.msra.mxu0 0.0
  %1151 = vmatprep.subr.mxu0 0.0
  %1152 = vmatpush2.msra.mxu0 0.0
  %1153 = vmatprep.subr.mxu0 0.0
  %1154 = vmatpush2.msra.mxu0 0.0
  %1155 = vmatprep.subr.mxu0 0.0
  %1156 = vmatpush2.msra.mxu0 0.0
  %1157 = vmatprep.subr.mxu0 0.0
  %1158 = vmatpush2.msra.mxu0 0.0
  %1159 = vmatprep.subr.mxu0 0.0
  %1160 = vmatpush2.msra.mxu0 0.0
  %1161 = vmatprep.subr.mxu0 0.0
  %1162 = vmatpush2.msra.mxu0 0.0
  %1163 = vmatprep.mubr.f32.mxu0 0.0
  %1164 = vmatmul.mubr.f32.gmra.mxu0 %v1098
  %v1165 = vpop.f32.mrf.mxu0
  %v1166 = vadd.f32 %v812, %v1165
  %v1167 = vpop.f32.mrf.mxu0
  %v1168 = vadd.f32 %v816, %v1167
  %1169 = vdwg.mxu0
  %v1170 = vmul.f32 %v1166, %v238
  %v1171 = vmul.f32 %v1168, %v239
  %v1172 = vtanh.pop %v1170
  %v1173 = vtanh.pop %v1171
  %v1174 = vmul.f32 %v1172, 0.5
  %v1175 = vmul.f32 %v1173, 0.5
  %v1176 = vadd.f32 %v1174, 0.5
  %v1177 = vadd.f32 %v1175, 0.5
  %v1178 = vmul.f32 %v1176, %v904
  %v1179 = vmul.f32 %v1176, %v1173
  %1181 = vrot.lane.b32.xlu0 %v1179, 64
  %v1182 = vpop.permute.xlu0 %1181
  %v1184 = vadd.f32 %v1178, %v1182
  %v1185 = vtanh.pop %v1184
  %v1186 = vmul.f32 %v1177, %v1185
  %1188 = vrot.lane.b32.xlu0 %v906, 64
  %v1189 = vpop.permute.xlu0 %1188
  %v1191 = vsel %vm258, %v1189, 0.0
  %v1192 = vld [vmem:[%s8] sm:$0xff]
  %v1193 = vld [vmem:[%s8 + $0x8] sm:$0xff]
  %v1194 = vld [vmem:[%s8 + $0x10] sm:$0xff]
  %v1195 = vld [vmem:[%s8 + $0x18] sm:$0xff]
  %v1196 = vld [vmem:[%s8 + $0x20] sm:$0xff]
  %v1197 = vld [vmem:[%s8 + $0x28] sm:$0xff]
  %v1198 = vld [vmem:[%s8 + $0x30] sm:$0xff]
  %v1199 = vld [vmem:[%s8 + $0x38] sm:$0xff]
  %v1200 = vld [vmem:[%s8 + $0x40] sm:$0xff]
  %v1201 = vld [vmem:[%s8 + $0x48] sm:$0xff]
  %v1202 = vld [vmem:[%s8 + $0x50] sm:$0xff]
  %v1203 = vld [vmem:[%s8 + $0x58] sm:$0xff]
  %v1204 = vld [vmem:[%s8 + $0x60] sm:$0xff]
  %v1205 = vld [vmem:[%s8 + $0x68] sm:$0xff]
  %v1206 = vld [vmem:[%s8 + $0x70] sm:$0xff]
  %v1207 = vld [vmem:[%s8 + $0x78] sm:$0xff]
  %v1208 = vld [vmem:[%s8 + $0x80] sm:$0xff]
  %v1209 = vld [vmem:[%s8 + $0x88] sm:$0xff]
  %v1210 = vld [vmem:[%s8 + $0x90] sm:$0xff]
  %v1211 = vld [vmem:[%s8 + $0x98] sm:$0xff]
  %v1212 = vld [vmem:[%s8 + $0xa0] sm:$0xff]
  %v1213 = vld [vmem:[%s8 + $0xa8] sm:$0xff]
  %v1214 = vld [vmem:[%s8 + $0xb0] sm:$0xff]
  %v1215 = vld [vmem:[%s8 + $0xb8] sm:$0xff]
  %v1216 = vld [vmem:[%s8 + $0xc0] sm:$0xff]
  %v1217 = vld [vmem:[%s8 + $0xc8] sm:$0xff]
  %v1218 = vld [vmem:[%s8 + $0xd0] sm:$0xff]
  %v1219 = vld [vmem:[%s8 + $0xd8] sm:$0xff]
  %v1220 = vld [vmem:[%s8 + $0xe0] sm:$0xff]
  %v1221 = vld [vmem:[%s8 + $0xe8] sm:$0xff]
  %v1222 = vld [vmem:[%s8 + $0xf0] sm:$0xff]
  %v1223 = vld [vmem:[%s8 + $0xf8] sm:$0xff]
  %v1224 = vld [vmem:[%s9] sm:$0x3]
  %v1226 = vlaneseq
  %v1227 = vshrl.u32 %v1226, 7
  %v1228 = vsub.s32 0, %v1227
  %v1229 = vrot.slane %v1224, %v1228
  %v1230 = vlaneseq
  %v1231 = vshrl.u32 %v1230, 7
  %v1232 = vsub.s32 1, %v1231
  %v1233 = vrot.slane %v1224, %v1232
  %1236 = vmatprep.subr.mxu0 %v1223
  %1237 = vmatpush1.msra.mxu0 %v1222
  %1238 = vmatprep.subr.mxu0 %v1221
  %1239 = vmatpush1.msra.mxu0 %v1220
  %1240 = vmatprep.subr.mxu0 %v1219
  %1241 = vmatpush1.msra.mxu0 %v1218
  %1242 = vmatprep.subr.mxu0 %v1217
  %1243 = vmatpush1.msra.mxu0 %v1216
  %1244 = vmatprep.subr.mxu0 %v1215
  %1245 = vmatpush1.msra.mxu0 %v1214
  %1246 = vmatprep.subr.mxu0 %v1213
  %1247 = vmatpush1.msra.mxu0 %v1212
  %1248 = vmatprep.subr.mxu0 %v1211
  %1249 = vmatpush1.msra.mxu0 %v1210
  %1250 = vmatprep.subr.mxu0 %v1209
  %1251 = vmatpush1.msra.mxu0 %v1208
  %1252 = vmatprep.subr.mxu0 %v1207
  %1253 = vmatpush1.msra.mxu0 %v1206
  %1254 = vmatprep.subr.mxu0 %v1205
  %1255 = vmatpush1.msra.mxu0 %v1204
  %1256 = vmatprep.subr.mxu0 %v1203
  %1257 = vmatpush1.msra.mxu0 %v1202
  %1258 = vmatprep.subr.mxu0 %v1201
  %1259 = vmatpush1.msra.mxu0 %v1200
  %1260 = vmatprep.subr.mxu0 %v1199
  %1261 = vmatpush1.msra.mxu0 %v1198
  %1262 = vmatprep.subr.mxu0 %v1197
  %1263 = vmatpush1.msra.mxu0 %v1196
  %1264 = vmatprep.subr.mxu0 %v1195
  %1265 = vmatpush1.msra.mxu0 %v1194
  %1266 = vmatprep.subr.mxu0 %v1193
  %1267 = vmatpush1.msra.mxu0 %v1192
  %1268 = vmatprep.subr.mxu0 0.0
  %1269 = vmatpush2.msra.mxu0 0.0
  %1270 = vmatprep.subr.mxu0 0.0
  %1271 = vmatpush2.msra.mxu0 0.0
  %1272 = vmatprep.subr.mxu0 0.0
  %1273 = vmatpush2.msra.mxu0 0.0
  %1274 = vmatprep.subr.mxu0 0.0
  %1275 = vmatpush2.msra.mxu0 0.0
  %1276 = vmatprep.subr.mxu0 0.0
  %1277 = vmatpush2.msra.mxu0 0.0
  %1278 = vmatprep.subr.mxu0 0.0
  %1279 = vmatpush2.msra.mxu0 0.0
  %1280 = vmatprep.subr.mxu0 0.0
  %1281 = vmatpush2.msra.mxu0 0.0
  %1282 = vmatprep.subr.mxu0 0.0
  %1283 = vmatpush2.msra.mxu0 0.0
  %1284 = vmatprep.subr.mxu0 0.0
  %1285 = vmatpush2.msra.mxu0 0.0
  %1286 = vmatprep.subr.mxu0 0.0
  %1287 = vmatpush2.msra.mxu0 0.0
  %1288 = vmatprep.subr.mxu0 0.0
  %1289 = vmatpush2.msra.mxu0 0.0
  %1290 = vmatprep.subr.mxu0 0.0
  %1291 = vmatpush2.msra.mxu0 0.0
  %1292 = vmatprep.subr.mxu0 0.0
  %1293 = vmatpush2.msra.mxu0 0.0
  %1294 = vmatprep.subr.mxu0 0.0
  %1295 = vmatpush2.msra.mxu0 0.0
  %1296 = vmatprep.subr.mxu0 0.0
  %1297 = vmatpush2.msra.mxu0 0.0
  %1298 = vmatprep.subr.mxu0 0.0
  %1299 = vmatpush2.msra.mxu0 0.0
  %1300 = vmatprep.mubr.f32.mxu0 0.0
  %1301 = vmatmul.mubr.f32.gmra.mxu0 %v1191
  %v1302 = vpop.f32.mrf.mxu0
  %v1303 = vadd.f32 %v1229, %v1302
  %v1304 = vpop.f32.mrf.mxu0
  %v1305 = vadd.f32 %v1233, %v1304
  %1306 = vdwg.mxu0
  %v1307 = vmul.f32 %v1303, %v238
  %v1308 = vmul.f32 %v1305, %v239
  %v1309 = vtanh.pop %v1307
  %v1310 = vtanh.pop %v1308
  %v1311 = vmul.f32 %v1309, 0.5
  %v1312 = vmul.f32 %v1310, 0.5
  %v1313 = vadd.f32 %v1311, 0.5
  %v1314 = vadd.f32 %v1312, 0.5
  %v1315 = vmul.f32 %v1313, 0.0
  %v1316 = vmul.f32 %v1313, %v1310
  %1318 = vrot.lane.b32.xlu0 %v1316, 64
  %v1319 = vpop.permute.xlu0 %1318
  %v1321 = vadd.f32 %v1315, %v1319
  %v1322 = vtanh.pop %v1321
  %v1323 = vmul.f32 %v1314, %v1322
  %v1324 = vld [vmem:[#allocation2 + $0x40] sm:$0xff]
  %v1325 = vld [vmem:[#allocation2 + $0x48] sm:$0xff]
  %1327 = vrot.lane.b32.xlu0 %v1003, 64
  %v1328 = vpop.permute.xlu0 %1327
  %v1329 = vsel %vm258, %v1328, 0
  %1331 = vmatprep.subr.mxu0 0.0
  %1332 = vmatpush1.msra.mxu0 0.0
  %1333 = vmatprep.subr.mxu0 0.0
  %1334 = vmatpush1.msra.mxu0 0.0
  %1335 = vmatprep.subr.mxu0 0.0
  %1336 = vmatpush1.msra.mxu0 0.0
  %1337 = vmatprep.subr.mxu0 0.0
  %1338 = vmatpush1.msra.mxu0 0.0
  %1339 = vmatprep.subr.mxu0 0.0
  %1340 = vmatpush1.msra.mxu0 0.0
  %1341 = vmatprep.subr.mxu0 0.0
  %1342 = vmatpush1.msra.mxu0 0.0
  %1343 = vmatprep.subr.mxu0 0.0
  %1344 = vmatpush1.msra.mxu0 0.0
  %1345 = vmatprep.subr.mxu0 0.0
  %1346 = vmatpush1.msra.mxu0 0.0
  %1347 = vmatprep.subr.mxu0 %v257
  %1348 = vmatpush1.msra.mxu0 %v256
  %1349 = vmatprep.subr.mxu0 %v255
  %1350 = vmatpush1.msra.mxu0 %v254
  %1351 = vmatprep.subr.mxu0 %v253
  %1352 = vmatpush1.msra.mxu0 %v252
  %1353 = vmatprep.subr.mxu0 %v251
  %1354 = vmatpush1.msra.mxu0 %v250
  %1355 = vmatprep.subr.mxu0 %v249
  %1356 = vmatpush1.msra.mxu0 %v248
  %1357 = vmatprep.subr.mxu0 %v247
  %1358 = vmatpush1.msra.mxu0 %v246
  %1359 = vmatprep.subr.mxu0 %v245
  %1360 = vmatpush1.msra.mxu0 %v244
  %1361 = vmatprep.subr.mxu0 %v243
  %1362 = vmatpush1.msra.mxu0 %v242
  %1363 = vmatprep.subr.mxu0 0.0
  %1364 = vmatpush2.msra.mxu0 0.0
  %1365 = vmatprep.subr.mxu0 0.0
  %1366 = vmatpush2.msra.mxu0 0.0
  %1367 = vmatprep.subr.mxu0 0.0
  %1368 = vmatpush2.msra.mxu0 0.0
  %1369 = vmatprep.subr.mxu0 0.0
  %1370 = vmatpush2.msra.mxu0 0.0
  %1371 = vmatprep.subr.mxu0 0.0
  %1372 = vmatpush2.msra.mxu0 0.0
  %1373 = vmatprep.subr.mxu0 0.0
  %1374 = vmatpush2.msra.mxu0 0.0
  %1375 = vmatprep.subr.mxu0 0.0
  %1376 = vmatpush2.msra.mxu0 0.0
  %1377 = vmatprep.subr.mxu0 0.0
  %1378 = vmatpush2.msra.mxu0 0.0
  %1379 = vmatprep.subr.mxu0 0.0
  %1380 = vmatpush2.msra.mxu0 0.0
  %1381 = vmatprep.subr.mxu0 0.0
  %1382 = vmatpush2.msra.mxu0 0.0
  %1383 = vmatprep.subr.mxu0 0.0
  %1384 = vmatpush2.msra.mxu0 0.0
  %1385 = vmatprep.subr.mxu0 0.0
  %1386 = vmatpush2.msra.mxu0 0.0
  %1387 = vmatprep.subr.mxu0 0.0
  %1388 = vmatpush2.msra.mxu0 0.0
  %1389 = vmatprep.subr.mxu0 0.0
  %1390 = vmatpush2.msra.mxu0 0.0
  %1391 = vmatprep.subr.mxu0 0.0
  %1392 = vmatpush2.msra.mxu0 0.0
  %1393 = vmatprep.subr.mxu0 0.0
  %1394 = vmatpush2.msra.mxu0 0.0
  %1395 = vmatprep.mubr.f32.mxu0 0.0
  %1396 = vmatmul.mubr.f32.gmra.mxu0 %v1329
  %v1397 = vpop.f32.mrf.mxu0
  %v1398 = vadd.f32 0.0, %v1397
  %v1399 = vpop.f32.mrf.mxu0
  %v1400 = vadd.f32 0.0, %v1399
  %1401 = vdwg.mxu0
  %v1402 = vadd.f32 %v1324, %v1398
  %v1403 = vadd.f32 %v1325, %v1400
  %v1404 = vmul.f32 %v1402, %v238
  %v1405 = vmul.f32 %v1403, %v239
  %v1406 = vtanh.pop %v1404
  %v1407 = vtanh.pop %v1405
  %v1408 = vmul.f32 %v1406, 0.5
  %v1409 = vmul.f32 %v1407, 0.5
  %v1410 = vadd.f32 %v1408, 0.5
  %v1411 = vadd.f32 %v1409, 0.5
  %v1412 = vmul.f32 %v1410, %v1001
  %v1413 = vmul.f32 %v1410, %v1407
  %1415 = vrot.lane.b32.xlu0 %v1413, 64
  %v1416 = vpop.permute.xlu0 %1415
  %v1418 = vadd.f32 %v1412, %v1416
  %v1419 = vtanh.pop %v1418
  %v1420 = vmul.f32 %v1411, %v1419
  %v1422 = vsel %vm258, %v1328, %v1093
  %1423 = vmatprep.subr.mxu0 %v482
  %1424 = vmatpush1.msra.mxu0 %v481
  %1425 = vmatprep.subr.mxu0 %v480
  %1426 = vmatpush1.msra.mxu0 %v479
  %1427 = vmatprep.subr.mxu0 %v478
  %1428 = vmatpush1.msra.mxu0 %v477
  %1429 = vmatprep.subr.mxu0 %v476
  %1430 = vmatpush1.msra.mxu0 %v475
  %1431 = vmatprep.subr.mxu0 %v474
  %1432 = vmatpush1.msra.mxu0 %v473
  %1433 = vmatprep.subr.mxu0 %v472
  %1434 = vmatpush1.msra.mxu0 %v471
  %1435 = vmatprep.subr.mxu0 %v470
  %1436 = vmatpush1.msra.mxu0 %v469
  %1437 = vmatprep.subr.mxu0 %v468
  %1438 = vmatpush1.msra.mxu0 %v467
  %1439 = vmatprep.subr.mxu0 %v466
  %1440 = vmatpush1.msra.mxu0 %v465
  %1441 = vmatprep.subr.mxu0 %v464
  %1442 = vmatpush1.msra.mxu0 %v463
  %1443 = vmatprep.subr.mxu0 %v462
  %1444 = vmatpush1.msra.mxu0 %v461
  %1445 = vmatprep.subr.mxu0 %v460
  %1446 = vmatpush1.msra.mxu0 %v459
  %1447 = vmatprep.subr.mxu0 %v458
  %1448 = vmatpush1.msra.mxu0 %v457
  %1449 = vmatprep.subr.mxu0 %v456
  %1450 = vmatpush1.msra.mxu0 %v455
  %1451 = vmatprep.subr.mxu0 %v454
  %1452 = vmatpush1.msra.mxu0 %v453
  %1453 = vmatprep.subr.mxu0 %v452
  %1454 = vmatpush1.msra.mxu0 %v451
  %1455 = vmatprep.subr.mxu0 0.0
  %1456 = vmatpush2.msra.mxu0 0.0
  %1457 = vmatprep.subr.mxu0 0.0
  %1458 = vmatpush2.msra.mxu0 0.0
  %1459 = vmatprep.subr.mxu0 0.0
  %1460 = vmatpush2.msra.mxu0 0.0
  %1461 = vmatprep.subr.mxu0 0.0
  %1462 = vmatpush2.msra.mxu0 0.0
  %1463 = vmatprep.subr.mxu0 0.0
  %1464 = vmatpush2.msra.mxu0 0.0
  %1465 = vmatprep.subr.mxu0 0.0
  %1466 = vmatpush2.msra.mxu0 0.0
  %1467 = vmatprep.subr.mxu0 0.0
  %1468 = vmatpush2.msra.mxu0 0.0
  %1469 = vmatprep.subr.mxu0 0.0
  %1470 = vmatpush2.msra.mxu0 0.0
  %1471 = vmatprep.subr.mxu0 0.0
  %1472 = vmatpush2.msra.mxu0 0.0
  %1473 = vmatprep.subr.mxu0 0.0
  %1474 = vmatpush2.msra.mxu0 0.0
  %1475 = vmatprep.subr.mxu0 0.0
  %1476 = vmatpush2.msra.mxu0 0.0
  %1477 = vmatprep.subr.mxu0 0.0
  %1478 = vmatpush2.msra.mxu0 0.0
  %1479 = vmatprep.subr.mxu0 0.0
  %1480 = vmatpush2.msra.mxu0 0.0
  %1481 = vmatprep.subr.mxu0 0.0
  %1482 = vmatpush2.msra.mxu0 0.0
  %1483 = vmatprep.subr.mxu0 0.0
  %1484 = vmatpush2.msra.mxu0 0.0
  %1485 = vmatprep.subr.mxu0 0.0
  %1486 = vmatpush2.msra.mxu0 0.0
  %1487 = vmatprep.mubr.f32.mxu0 0.0
  %1488 = vmatmul.mubr.f32.gmra.mxu0 %v1422
  %v1489 = vpop.f32.mrf.mxu0
  %v1490 = vadd.f32 %v488, %v1489
  %v1491 = vpop.f32.mrf.mxu0
  %v1492 = vadd.f32 %v492, %v1491
  %1493 = vdwg.mxu0
  %v1494 = vmul.f32 %v1490, %v238
  %v1495 = vmul.f32 %v1492, %v239
  %v1496 = vtanh.pop %v1494
  %v1497 = vtanh.pop %v1495
  %v1498 = vmul.f32 %v1496, 0.5
  %v1499 = vmul.f32 %v1497, 0.5
  %v1500 = vadd.f32 %v1498, 0.5
  %v1501 = vadd.f32 %v1499, 0.5
  %v1502 = vmul.f32 %v1500, %v1091
  %v1503 = vmul.f32 %v1500, %v1497
  %1505 = vrot.lane.b32.xlu0 %v1503, 64
  %v1506 = vpop.permute.xlu0 %1505
  %v1508 = vadd.f32 %v1502, %v1506
  %v1509 = vtanh.pop %v1508
  %v1510 = vmul.f32 %v1501, %v1509
  %1512 = vrot.lane.b32.xlu0 %v1093, 64
  %v1513 = vpop.permute.xlu0 %1512
  %v1515 = vsel %vm258, %v1513, %v1186
  %1516 = vmatprep.subr.mxu0 %v806
  %1517 = vmatpush1.msra.mxu0 %v805
  %1518 = vmatprep.subr.mxu0 %v804
  %1519 = vmatpush1.msra.mxu0 %v803
  %1520 = vmatprep.subr.mxu0 %v802
  %1521 = vmatpush1.msra.mxu0 %v801
  %1522 = vmatprep.subr.mxu0 %v800
  %1523 = vmatpush1.msra.mxu0 %v799
  %1524 = vmatprep.subr.mxu0 %v798
  %1525 = vmatpush1.msra.mxu0 %v797
  %1526 = vmatprep.subr.mxu0 %v796
  %1527 = vmatpush1.msra.mxu0 %v795
  %1528 = vmatprep.subr.mxu0 %v794
  %1529 = vmatpush1.msra.mxu0 %v793
  %1530 = vmatprep.subr.mxu0 %v792
  %1531 = vmatpush1.msra.mxu0 %v791
  %1532 = vmatprep.subr.mxu0 %v790
  %1533 = vmatpush1.msra.mxu0 %v789
  %1534 = vmatprep.subr.mxu0 %v788
  %1535 = vmatpush1.msra.mxu0 %v787
  %1536 = vmatprep.subr.mxu0 %v786
  %1537 = vmatpush1.msra.mxu0 %v785
  %1538 = vmatprep.subr.mxu0 %v784
  %1539 = vmatpush1.msra.mxu0 %v783
  %1540 = vmatprep.subr.mxu0 %v782
  %1541 = vmatpush1.msra.mxu0 %v781
  %1542 = vmatprep.subr.mxu0 %v780
  %1543 = vmatpush1.msra.mxu0 %v779
  %1544 = vmatprep.subr.mxu0 %v778
  %1545 = vmatpush1.msra.mxu0 %v777
  %1546 = vmatprep.subr.mxu0 %v776
  %1547 = vmatpush1.msra.mxu0 %v775
  %1548 = vmatprep.subr.mxu0 0.0
  %1549 = vmatpush2.msra.mxu0 0.0
  %1550 = vmatprep.subr.mxu0 0.0
  %1551 = vmatpush2.msra.mxu0 0.0
  %1552 = vmatprep.subr.mxu0 0.0
  %1553 = vmatpush2.msra.mxu0 0.0
  %1554 = vmatprep.subr.mxu0 0.0
  %1555 = vmatpush2.msra.mxu0 0.0
  %1556 = vmatprep.subr.mxu0 0.0
  %1557 = vmatpush2.msra.mxu0 0.0
  %1558 = vmatprep.subr.mxu0 0.0
  %1559 = vmatpush2.msra.mxu0 0.0
  %1560 = vmatprep.subr.mxu0 0.0
  %1561 = vmatpush2.msra.mxu0 0.0
  %1562 = vmatprep.subr.mxu0 0.0
  %1563 = vmatpush2.msra.mxu0 0.0
  %1564 = vmatprep.subr.mxu0 0.0
  %1565 = vmatpush2.msra.mxu0 0.0
  %1566 = vmatprep.subr.mxu0 0.0
  %1567 = vmatpush2.msra.mxu0 0.0
  %1568 = vmatprep.subr.mxu0 0.0
  %1569 = vmatpush2.msra.mxu0 0.0
  %1570 = vmatprep.subr.mxu0 0.0
  %1571 = vmatpush2.msra.mxu0 0.0
  %1572 = vmatprep.subr.mxu0 0.0
  %1573 = vmatpush2.msra.mxu0 0.0
  %1574 = vmatprep.subr.mxu0 0.0
  %1575 = vmatpush2.msra.mxu0 0.0
  %1576 = vmatprep.subr.mxu0 0.0
  %1577 = vmatpush2.msra.mxu0 0.0
  %1578 = vmatprep.subr.mxu0 0.0
  %1579 = vmatpush2.msra.mxu0 0.0
  %1580 = vmatprep.mubr.f32.mxu0 0.0
  %1581 = vmatmul.mubr.f32.gmra.mxu0 %v1515
  %v1582 = vpop.f32.mrf.mxu0
  %v1583 = vadd.f32 %v812, %v1582
  %v1584 = vpop.f32.mrf.mxu0
  %v1585 = vadd.f32 %v816, %v1584
  %1586 = vdwg.mxu0
  %v1587 = vmul.f32 %v1583, %v238
  %v1588 = vmul.f32 %v1585, %v239
  %v1589 = vtanh.pop %v1587
  %v1590 = vtanh.pop %v1588
  %v1591 = vmul.f32 %v1589, 0.5
  %v1592 = vmul.f32 %v1590, 0.5
  %v1593 = vadd.f32 %v1591, 0.5
  %v1594 = vadd.f32 %v1592, 0.5
  %v1595 = vmul.f32 %v1593, %v1184
  %v1596 = vmul.f32 %v1593, %v1590
  %1598 = vrot.lane.b32.xlu0 %v1596, 64
  %v1599 = vpop.permute.xlu0 %1598
  %v1601 = vadd.f32 %v1595, %v1599
  %v1602 = vtanh.pop %v1601
  %v1603 = vmul.f32 %v1594, %v1602
  %1605 = vrot.lane.b32.xlu0 %v1186, 64
  %v1606 = vpop.permute.xlu0 %1605
  %v1608 = vsel %vm258, %v1606, %v1323
  %1609 = vmatprep.subr.mxu0 %v1223
  %1610 = vmatpush1.msra.mxu0 %v1222
  %1611 = vmatprep.subr.mxu0 %v1221
  %1612 = vmatpush1.msra.mxu0 %v1220
  %1613 = vmatprep.subr.mxu0 %v1219
  %1614 = vmatpush1.msra.mxu0 %v1218
  %1615 = vmatprep.subr.mxu0 %v1217
  %1616 = vmatpush1.msra.mxu0 %v1216
  %1617 = vmatprep.subr.mxu0 %v1215
  %1618 = vmatpush1.msra.mxu0 %v1214
  %1619 = vmatprep.subr.mxu0 %v1213
  %1620 = vmatpush1.msra.mxu0 %v1212
  %1621 = vmatprep.subr.mxu0 %v1211
  %1622 = vmatpush1.msra.mxu0 %v1210
  %1623 = vmatprep.subr.mxu0 %v1209
  %1624 = vmatpush1.msra.mxu0 %v1208
  %1625 = vmatprep.subr.mxu0 %v1207
  %1626 = vmatpush1.msra.mxu0 %v1206
  %1627 = vmatprep.subr.mxu0 %v1205
  %1628 = vmatpush1.msra.mxu0 %v1204
  %1629 = vmatprep.subr.mxu0 %v1203
  %1630 = vmatpush1.msra.mxu0 %v1202
  %1631 = vmatprep.subr.mxu0 %v1201
  %1632 = vmatpush1.msra.mxu0 %v1200
  %1633 = vmatprep.subr.mxu0 %v1199
  %1634 = vmatpush1.msra.mxu0 %v1198
  %1635 = vmatprep.subr.mxu0 %v1197
  %1636 = vmatpush1.msra.mxu0 %v1196
  %1637 = vmatprep.subr.mxu0 %v1195
  %1638 = vmatpush1.msra.mxu0 %v1194
  %1639 = vmatprep.subr.mxu0 %v1193
  %1640 = vmatpush1.msra.mxu0 %v1192
  %1641 = vmatprep.subr.mxu0 0.0
  %1642 = vmatpush2.msra.mxu0 0.0
  %1643 = vmatprep.subr.mxu0 0.0
  %1644 = vmatpush2.msra.mxu0 0.0
  %1645 = vmatprep.subr.mxu0 0.0
  %1646 = vmatpush2.msra.mxu0 0.0
  %1647 = vmatprep.subr.mxu0 0.0
  %1648 = vmatpush2.msra.mxu0 0.0
  %1649 = vmatprep.subr.mxu0 0.0
  %1650 = vmatpush2.msra.mxu0 0.0
  %1651 = vmatprep.subr.mxu0 0.0
  %1652 = vmatpush2.msra.mxu0 0.0
  %1653 = vmatprep.subr.mxu0 0.0
  %1654 = vmatpush2.msra.mxu0 0.0
  %1655 = vmatprep.subr.mxu0 0.0
  %1656 = vmatpush2.msra.mxu0 0.0
  %1657 = vmatprep.subr.mxu0 0.0
  %1658 = vmatpush2.msra.mxu0 0.0
  %1659 = vmatprep.subr.mxu0 0.0
  %1660 = vmatpush2.msra.mxu0 0.0
  %1661 = vmatprep.subr.mxu0 0.0
  %1662 = vmatpush2.msra.mxu0 0.0
  %1663 = vmatprep.subr.mxu0 0.0
  %1664 = vmatpush2.msra.mxu0 0.0
  %1665 = vmatprep.subr.mxu0 0.0
  %1666 = vmatpush2.msra.mxu0 0.0
  %1667 = vmatprep.subr.mxu0 0.0
  %1668 = vmatpush2.msra.mxu0 0.0
  %1669 = vmatprep.subr.mxu0 0.0
  %1670 = vmatpush2.msra.mxu0 0.0
  %1671 = vmatprep.subr.mxu0 0.0
  %1672 = vmatpush2.msra.mxu0 0.0
  %1673 = vmatprep.mubr.f32.mxu0 0.0
  %1674 = vmatmul.mubr.f32.gmra.mxu0 %v1608
  %v1675 = vpop.f32.mrf.mxu0
  %v1676 = vadd.f32 %v1229, %v1675
  %v1677 = vpop.f32.mrf.mxu0
  %v1678 = vadd.f32 %v1233, %v1677
  %1679 = vdwg.mxu0
  %v1680 = vmul.f32 %v1676, %v238
  %v1681 = vmul.f32 %v1678, %v239
  %v1682 = vtanh.pop %v1680
  %v1683 = vtanh.pop %v1681
  %v1684 = vmul.f32 %v1682, 0.5
  %v1685 = vmul.f32 %v1683, 0.5
  %v1686 = vadd.f32 %v1684, 0.5
  %v1687 = vadd.f32 %v1685, 0.5
  %v1688 = vmul.f32 %v1686, %v1321
  %v1689 = vmul.f32 %v1686, %v1683
  %1691 = vrot.lane.b32.xlu0 %v1689, 64
  %v1692 = vpop.permute.xlu0 %1691
  %v1694 = vadd.f32 %v1688, %v1692
  %v1695 = vtanh.pop %v1694
  %v1696 = vmul.f32 %v1687, %v1695
  %1698 = vrot.lane.b32.xlu0 %v1323, 64
  %v1699 = vpop.permute.xlu0 %1698
  %v1701 = vsel %vm258, %v1699, 0.0
  %v1702 = vld [vmem:[%s10] sm:$0xff]
  %v1703 = vld [vmem:[%s10 + $0x8] sm:$0xff]
  %v1704 = vld [vmem:[%s10 + $0x10] sm:$0xff]
  %v1705 = vld [vmem:[%s10 + $0x18] sm:$0xff]
  %v1706 = vld [vmem:[%s10 + $0x20] sm:$0xff]
  %v1707 = vld [vmem:[%s10 + $0x28] sm:$0xff]
  %v1708 = vld [vmem:[%s10 + $0x30] sm:$0xff]
  %v1709 = vld [vmem:[%s10 + $0x38] sm:$0xff]
  %v1710 = vld [vmem:[%s10 + $0x40] sm:$0xff]
  %v1711 = vld [vmem:[%s10 + $0x48] sm:$0xff]
  %v1712 = vld [vmem:[%s10 + $0x50] sm:$0xff]
  %v1713 = vld [vmem:[%s10 + $0x58] sm:$0xff]
  %v1714 = vld [vmem:[%s10 + $0x60] sm:$0xff]
  %v1715 = vld [vmem:[%s10 + $0x68] sm:$0xff]
  %v1716 = vld [vmem:[%s10 + $0x70] sm:$0xff]
  %v1717 = vld [vmem:[%s10 + $0x78] sm:$0xff]
  %v1718 = vld [vmem:[%s10 + $0x80] sm:$0xff]
  %v1719 = vld [vmem:[%s10 + $0x88] sm:$0xff]
  %v1720 = vld [vmem:[%s10 + $0x90] sm:$0xff]
  %v1721 = vld [vmem:[%s10 + $0x98] sm:$0xff]
  %v1722 = vld [vmem:[%s10 + $0xa0] sm:$0xff]
  %v1723 = vld [vmem:[%s10 + $0xa8] sm:$0xff]
  %v1724 = vld [vmem:[%s10 + $0xb0] sm:$0xff]
  %v1725 = vld [vmem:[%s10 + $0xb8] sm:$0xff]
  %v1726 = vld [vmem:[%s10 + $0xc0] sm:$0xff]
  %v1727 = vld [vmem:[%s10 + $0xc8] sm:$0xff]
  %v1728 = vld [vmem:[%s10 + $0xd0] sm:$0xff]
  %v1729 = vld [vmem:[%s10 + $0xd8] sm:$0xff]
  %v1730 = vld [vmem:[%s10 + $0xe0] sm:$0xff]
  %v1731 = vld [vmem:[%s10 + $0xe8] sm:$0xff]
  %v1732 = vld [vmem:[%s10 + $0xf0] sm:$0xff]
  %v1733 = vld [vmem:[%s10 + $0xf8] sm:$0xff]
  %v1734 = vld [vmem:[%s11] sm:$0x3]
  %v1736 = vlaneseq
  %v1737 = vshrl.u32 %v1736, 7
  %v1738 = vsub.s32 0, %v1737
  %v1739 = vrot.slane %v1734, %v1738
  %v1740 = vlaneseq
  %v1741 = vshrl.u32 %v1740, 7
  %v1742 = vsub.s32 1, %v1741
  %v1743 = vrot.slane %v1734, %v1742
  %1746 = vmatprep.subr.mxu0 %v1733
  %1747 = vmatpush1.msra.mxu0 %v1732
  %1748 = vmatprep.subr.mxu0 %v1731
  %1749 = vmatpush1.msra.mxu0 %v1730
  %1750 = vmatprep.subr.mxu0 %v1729
  %1751 = vmatpush1.msra.mxu0 %v1728
  %1752 = vmatprep.subr.mxu0 %v1727
  %1753 = vmatpush1.msra.mxu0 %v1726
  %1754 = vmatprep.subr.mxu0 %v1725
  %1755 = vmatpush1.msra.mxu0 %v1724
  %1756 = vmatprep.subr.mxu0 %v1723
  %1757 = vmatpush1.msra.mxu0 %v1722
  %1758 = vmatprep.subr.mxu0 %v1721
  %1759 = vmatpush1.msra.mxu0 %v1720
  %1760 = vmatprep.subr.mxu0 %v1719
  %1761 = vmatpush1.msra.mxu0 %v1718
  %1762 = vmatprep.subr.mxu0 %v1717
  %1763 = vmatpush1.msra.mxu0 %v1716
  %1764 = vmatprep.subr.mxu0 %v1715
  %1765 = vmatpush1.msra.mxu0 %v1714
  %1766 = vmatprep.subr.mxu0 %v1713
  %1767 = vmatpush1.msra.mxu0 %v1712
  %1768 = vmatprep.subr.mxu0 %v1711
  %1769 = vmatpush1.msra.mxu0 %v1710
  %1770 = vmatprep.subr.mxu0 %v1709
  %1771 = vmatpush1.msra.mxu0 %v1708
  %1772 = vmatprep.subr.mxu0 %v1707
  %1773 = vmatpush1.msra.mxu0 %v1706
  %1774 = vmatprep.subr.mxu0 %v1705
  %1775 = vmatpush1.msra.mxu0 %v1704
  %1776 = vmatprep.subr.mxu0 %v1703
  %1777 = vmatpush1.msra.mxu0 %v1702
  %1778 = vmatprep.subr.mxu0 0.0
  %1779 = vmatpush2.msra.mxu0 0.0
  %1780 = vmatprep.subr.mxu0 0.0
  %1781 = vmatpush2.msra.mxu0 0.0
  %1782 = vmatprep.subr.mxu0 0.0
  %1783 = vmatpush2.msra.mxu0 0.0
  %1784 = vmatprep.subr.mxu0 0.0
  %1785 = vmatpush2.msra.mxu0 0.0
  %1786 = vmatprep.subr.mxu0 0.0
  %1787 = vmatpush2.msra.mxu0 0.0
  %1788 = vmatprep.subr.mxu0 0.0
  %1789 = vmatpush2.msra.mxu0 0.0
  %1790 = vmatprep.subr.mxu0 0.0
  %1791 = vmatpush2.msra.mxu0 0.0
  %1792 = vmatprep.subr.mxu0 0.0
  %1793 = vmatpush2.msra.mxu0 0.0
  %1794 = vmatprep.subr.mxu0 0.0
  %1795 = vmatpush2.msra.mxu0 0.0
  %1796 = vmatprep.subr.mxu0 0.0
  %1797 = vmatpush2.msra.mxu0 0.0
  %1798 = vmatprep.subr.mxu0 0.0
  %1799 = vmatpush2.msra.mxu0 0.0
  %1800 = vmatprep.subr.mxu0 0.0
  %1801 = vmatpush2.msra.mxu0 0.0
  %1802 = vmatprep.subr.mxu0 0.0
  %1803 = vmatpush2.msra.mxu0 0.0
  %1804 = vmatprep.subr.mxu0 0.0
  %1805 = vmatpush2.msra.mxu0 0.0
  %1806 = vmatprep.subr.mxu0 0.0
  %1807 = vmatpush2.msra.mxu0 0.0
  %1808 = vmatprep.subr.mxu0 0.0
  %1809 = vmatpush2.msra.mxu0 0.0
  %1810 = vmatprep.mubr.f32.mxu0 0.0
  %1811 = vmatmul.mubr.f32.gmra.mxu0 %v1701
  %v1812 = vpop.f32.mrf.mxu0
  %v1813 = vadd.f32 %v1739, %v1812
  %v1814 = vpop.f32.mrf.mxu0
  %v1815 = vadd.f32 %v1743, %v1814
  %1816 = vdwg.mxu0
  %v1817 = vmul.f32 %v1813, %v238
  %v1818 = vmul.f32 %v1815, %v239
  %v1819 = vtanh.pop %v1817
  %v1820 = vtanh.pop %v1818
  %v1821 = vmul.f32 %v1819, 0.5
  %v1822 = vmul.f32 %v1820, 0.5
  %v1823 = vadd.f32 %v1821, 0.5
  %v1824 = vadd.f32 %v1822, 0.5
  %v1825 = vmul.f32 %v1823, 0.0
  %v1826 = vmul.f32 %v1823, %v1820
  %1828 = vrot.lane.b32.xlu0 %v1826, 64
  %v1829 = vpop.permute.xlu0 %1828
  %v1831 = vadd.f32 %v1825, %v1829
  %v1832 = vtanh.pop %v1831
  %v1833 = vmul.f32 %v1824, %v1832
  %v1834 = vld [vmem:[#allocation2 + $0x50] sm:$0xff]
  %v1835 = vld [vmem:[#allocation2 + $0x58] sm:$0xff]
  %1837 = vrot.lane.b32.xlu0 %v1420, 64
  %v1838 = vpop.permute.xlu0 %1837
  %v1839 = vsel %vm258, %v1838, 0
  %1841 = vmatprep.subr.mxu0 0.0
  %1842 = vmatpush1.msra.mxu0 0.0
  %1843 = vmatprep.subr.mxu0 0.0
  %1844 = vmatpush1.msra.mxu0 0.0
  %1845 = vmatprep.subr.mxu0 0.0
  %1846 = vmatpush1.msra.mxu0 0.0
  %1847 = vmatprep.subr.mxu0 0.0
  %1848 = vmatpush1.msra.mxu0 0.0
  %1849 = vmatprep.subr.mxu0 0.0
  %1850 = vmatpush1.msra.mxu0 0.0
  %1851 = vmatprep.subr.mxu0 0.0
  %1852 = vmatpush1.msra.mxu0 0.0
  %1853 = vmatprep.subr.mxu0 0.0
  %1854 = vmatpush1.msra.mxu0 0.0
  %1855 = vmatprep.subr.mxu0 0.0
  %1856 = vmatpush1.msra.mxu0 0.0
  %1857 = vmatprep.subr.mxu0 %v257
  %1858 = vmatpush1.msra.mxu0 %v256
  %1859 = vmatprep.subr.mxu0 %v255
  %1860 = vmatpush1.msra.mxu0 %v254
  %1861 = vmatprep.subr.mxu0 %v253
  %1862 = vmatpush1.msra.mxu0 %v252
  %1863 = vmatprep.subr.mxu0 %v251
  %1864 = vmatpush1.msra.mxu0 %v250
  %1865 = vmatprep.subr.mxu0 %v249
  %1866 = vmatpush1.msra.mxu0 %v248
  %1867 = vmatprep.subr.mxu0 %v247
  %1868 = vmatpush1.msra.mxu0 %v246
  %1869 = vmatprep.subr.mxu0 %v245
  %1870 = vmatpush1.msra.mxu0 %v244
  %1871 = vmatprep.subr.mxu0 %v243
  %1872 = vmatpush1.msra.mxu0 %v242
  %1873 = vmatprep.subr.mxu0 0.0
  %1874 = vmatpush2.msra.mxu0 0.0
  %1875 = vmatprep.subr.mxu0 0.0
  %1876 = vmatpush2.msra.mxu0 0.0
  %1877 = vmatprep.subr.mxu0 0.0
  %1878 = vmatpush2.msra.mxu0 0.0
  %1879 = vmatprep.subr.mxu0 0.0
  %1880 = vmatpush2.msra.mxu0 0.0
  %1881 = vmatprep.subr.mxu0 0.0
  %1882 = vmatpush2.msra.mxu0 0.0
  %1883 = vmatprep.subr.mxu0 0.0
  %1884 = vmatpush2.msra.mxu0 0.0
  %1885 = vmatprep.subr.mxu0 0.0
  %1886 = vmatpush2.msra.mxu0 0.0
  %1887 = vmatprep.subr.mxu0 0.0
  %1888 = vmatpush2.msra.mxu0 0.0
  %1889 = vmatprep.subr.mxu0 0.0
  %1890 = vmatpush2.msra.mxu0 0.0
  %1891 = vmatprep.subr.mxu0 0.0
  %1892 = vmatpush2.msra.mxu0 0.0
  %1893 = vmatprep.subr.mxu0 0.0
  %1894 = vmatpush2.msra.mxu0 0.0
  %1895 = vmatprep.subr.mxu0 0.0
  %1896 = vmatpush2.msra.mxu0 0.0
  %1897 = vmatprep.subr.mxu0 0.0
  %1898 = vmatpush2.msra.mxu0 0.0
  %1899 = vmatprep.subr.mxu0 0.0
  %1900 = vmatpush2.msra.mxu0 0.0
  %1901 = vmatprep.subr.mxu0 0.0
  %1902 = vmatpush2.msra.mxu0 0.0
  %1903 = vmatprep.subr.mxu0 0.0
  %1904 = vmatpush2.msra.mxu0 0.0
  %1905 = vmatprep.mubr.f32.mxu0 0.0
  %1906 = vmatmul.mubr.f32.gmra.mxu0 %v1839
  %v1907 = vpop.f32.mrf.mxu0
  %v1908 = vadd.f32 0.0, %v1907
  %v1909 = vpop.f32.mrf.mxu0
  %v1910 = vadd.f32 0.0, %v1909
  %1911 = vdwg.mxu0
  %v1912 = vadd.f32 %v1834, %v1908
  %v1913 = vadd.f32 %v1835, %v1910
  %v1914 = vmul.f32 %v1912, %v238
  %v1915 = vmul.f32 %v1913, %v239
  %v1916 = vtanh.pop %v1914
  %v1917 = vtanh.pop %v1915
  %v1918 = vmul.f32 %v1916, 0.5
  %v1919 = vmul.f32 %v1917, 0.5
  %v1920 = vadd.f32 %v1918, 0.5
  %v1921 = vadd.f32 %v1919, 0.5
  %v1922 = vmul.f32 %v1920, %v1418
  %v1923 = vmul.f32 %v1920, %v1917
  %1925 = vrot.lane.b32.xlu0 %v1923, 64
  %v1926 = vpop.permute.xlu0 %1925
  %v1928 = vadd.f32 %v1922, %v1926
  %v1929 = vtanh.pop %v1928
  %v1930 = vmul.f32 %v1921, %v1929
  %v1932 = vsel %vm258, %v1838, %v1510
  %1933 = vmatprep.subr.mxu0 %v482
  %1934 = vmatpush1.msra.mxu0 %v481
  %1935 = vmatprep.subr.mxu0 %v480
  %1936 = vmatpush1.msra.mxu0 %v479
  %1937 = vmatprep.subr.mxu0 %v478
  %1938 = vmatpush1.msra.mxu0 %v477
  %1939 = vmatprep.subr.mxu0 %v476
  %1940 = vmatpush1.msra.mxu0 %v475
  %1941 = vmatprep.subr.mxu0 %v474
  %1942 = vmatpush1.msra.mxu0 %v473
  %1943 = vmatprep.subr.mxu0 %v472
  %1944 = vmatpush1.msra.mxu0 %v471
  %1945 = vmatprep.subr.mxu0 %v470
  %1946 = vmatpush1.msra.mxu0 %v469
  %1947 = vmatprep.subr.mxu0 %v468
  %1948 = vmatpush1.msra.mxu0 %v467
  %1949 = vmatprep.subr.mxu0 %v466
  %1950 = vmatpush1.msra.mxu0 %v465
  %1951 = vmatprep.subr.mxu0 %v464
  %1952 = vmatpush1.msra.mxu0 %v463
  %1953 = vmatprep.subr.mxu0 %v462
  %1954 = vmatpush1.msra.mxu0 %v461
  %1955 = vmatprep.subr.mxu0 %v460
  %1956 = vmatpush1.msra.mxu0 %v459
  %1957 = vmatprep.subr.mxu0 %v458
  %1958 = vmatpush1.msra.mxu0 %v457
  %1959 = vmatprep.subr.mxu0 %v456
  %1960 = vmatpush1.msra.mxu0 %v455
  %1961 = vmatprep.subr.mxu0 %v454
  %1962 = vmatpush1.msra.mxu0 %v453
  %1963 = vmatprep.subr.mxu0 %v452
  %1964 = vmatpush1.msra.mxu0 %v451
  %1965 = vmatprep.subr.mxu0 0.0
  %1966 = vmatpush2.msra.mxu0 0.0
  %1967 = vmatprep.subr.mxu0 0.0
  %1968 = vmatpush2.msra.mxu0 0.0
  %1969 = vmatprep.subr.mxu0 0.0
  %1970 = vmatpush2.msra.mxu0 0.0
  %1971 = vmatprep.subr.mxu0 0.0
  %1972 = vmatpush2.msra.mxu0 0.0
  %1973 = vmatprep.subr.mxu0 0.0
  %1974 = vmatpush2.msra.mxu0 0.0
  %1975 = vmatprep.subr.mxu0 0.0
  %1976 = vmatpush2.msra.mxu0 0.0
  %1977 = vmatprep.subr.mxu0 0.0
  %1978 = vmatpush2.msra.mxu0 0.0
  %1979 = vmatprep.subr.mxu0 0.0
  %1980 = vmatpush2.msra.mxu0 0.0
  %1981 = vmatprep.subr.mxu0 0.0
  %1982 = vmatpush2.msra.mxu0 0.0
  %1983 = vmatprep.subr.mxu0 0.0
  %1984 = vmatpush2.msra.mxu0 0.0
  %1985 = vmatprep.subr.mxu0 0.0
  %1986 = vmatpush2.msra.mxu0 0.0
  %1987 = vmatprep.subr.mxu0 0.0
  %1988 = vmatpush2.msra.mxu0 0.0
  %1989 = vmatprep.subr.mxu0 0.0
  %1990 = vmatpush2.msra.mxu0 0.0
  %1991 = vmatprep.subr.mxu0 0.0
  %1992 = vmatpush2.msra.mxu0 0.0
  %1993 = vmatprep.subr.mxu0 0.0
  %1994 = vmatpush2.msra.mxu0 0.0
  %1995 = vmatprep.subr.mxu0 0.0
  %1996 = vmatpush2.msra.mxu0 0.0
  %1997 = vmatprep.mubr.f32.mxu0 0.0
  %1998 = vmatmul.mubr.f32.gmra.mxu0 %v1932
  %v1999 = vpop.f32.mrf.mxu0
  %v2000 = vadd.f32 %v488, %v1999
  %v2001 = vpop.f32.mrf.mxu0
  %v2002 = vadd.f32 %v492, %v2001
  %2003 = vdwg.mxu0
  %v2004 = vmul.f32 %v2000, %v238
  %v2005 = vmul.f32 %v2002, %v239
  %v2006 = vtanh.pop %v2004
  %v2007 = vtanh.pop %v2005
  %v2008 = vmul.f32 %v2006, 0.5
  %v2009 = vmul.f32 %v2007, 0.5
  %v2010 = vadd.f32 %v2008, 0.5
  %v2011 = vadd.f32 %v2009, 0.5
  %v2012 = vmul.f32 %v2010, %v1508
  %v2013 = vmul.f32 %v2010, %v2007
  %2015 = vrot.lane.b32.xlu0 %v2013, 64
  %v2016 = vpop.permute.xlu0 %2015
  %v2018 = vadd.f32 %v2012, %v2016
  %v2019 = vtanh.pop %v2018
  %v2020 = vmul.f32 %v2011, %v2019
  %2022 = vrot.lane.b32.xlu0 %v1510, 64
  %v2023 = vpop.permute.xlu0 %2022
  %v2025 = vsel %vm258, %v2023, %v1603
  %2026 = vmatprep.subr.mxu0 %v806
  %2027 = vmatpush1.msra.mxu0 %v805
  %2028 = vmatprep.subr.mxu0 %v804
  %2029 = vmatpush1.msra.mxu0 %v803
  %2030 = vmatprep.subr.mxu0 %v802
  %2031 = vmatpush1.msra.mxu0 %v801
  %2032 = vmatprep.subr.mxu0 %v800
  %2033 = vmatpush1.msra.mxu0 %v799
  %2034 = vmatprep.subr.mxu0 %v798
  %2035 = vmatpush1.msra.mxu0 %v797
  %2036 = vmatprep.subr.mxu0 %v796
  %2037 = vmatpush1.msra.mxu0 %v795
  %2038 = vmatprep.subr.mxu0 %v794
  %2039 = vmatpush1.msra.mxu0 %v793
  %2040 = vmatprep.subr.mxu0 %v792
  %2041 = vmatpush1.msra.mxu0 %v791
  %2042 = vmatprep.subr.mxu0 %v790
  %2043 = vmatpush1.msra.mxu0 %v789
  %2044 = vmatprep.subr.mxu0 %v788
  %2045 = vmatpush1.msra.mxu0 %v787
  %2046 = vmatprep.subr.mxu0 %v786
  %2047 = vmatpush1.msra.mxu0 %v785
  %2048 = vmatprep.subr.mxu0 %v784
  %2049 = vmatpush1.msra.mxu0 %v783
  %2050 = vmatprep.subr.mxu0 %v782
  %2051 = vmatpush1.msra.mxu0 %v781
  %2052 = vmatprep.subr.mxu0 %v780
  %2053 = vmatpush1.msra.mxu0 %v779
  %2054 = vmatprep.subr.mxu0 %v778
  %2055 = vmatpush1.msra.mxu0 %v777
  %2056 = vmatprep.subr.mxu0 %v776
  %2057 = vmatpush1.msra.mxu0 %v775
  %2058 = vmatprep.subr.mxu0 0.0
  %2059 = vmatpush2.msra.mxu0 0.0
  %2060 = vmatprep.subr.mxu0 0.0
  %2061 = vmatpush2.msra.mxu0 0.0
  %2062 = vmatprep.subr.mxu0 0.0
  %2063 = vmatpush2.msra.mxu0 0.0
  %2064 = vmatprep.subr.mxu0 0.0
  %2065 = vmatpush2.msra.mxu0 0.0
  %2066 = vmatprep.subr.mxu0 0.0
  %2067 = vmatpush2.msra.mxu0 0.0
  %2068 = vmatprep.subr.mxu0 0.0
  %2069 = vmatpush2.msra.mxu0 0.0
  %2070 = vmatprep.subr.mxu0 0.0
  %2071 = vmatpush2.msra.mxu0 0.0
  %2072 = vmatprep.subr.mxu0 0.0
  %2073 = vmatpush2.msra.mxu0 0.0
  %2074 = vmatprep.subr.mxu0 0.0
  %2075 = vmatpush2.msra.mxu0 0.0
  %2076 = vmatprep.subr.mxu0 0.0
  %2077 = vmatpush2.msra.mxu0 0.0
  %2078 = vmatprep.subr.mxu0 0.0
  %2079 = vmatpush2.msra.mxu0 0.0
  %2080 = vmatprep.subr.mxu0 0.0
  %2081 = vmatpush2.msra.mxu0 0.0
  %2082 = vmatprep.subr.mxu0 0.0
  %2083 = vmatpush2.msra.mxu0 0.0
  %2084 = vmatprep.subr.mxu0 0.0
  %2085 = vmatpush2.msra.mxu0 0.0
  %2086 = vmatprep.subr.mxu0 0.0
  %2087 = vmatpush2.msra.mxu0 0.0
  %2088 = vmatprep.subr.mxu0 0.0
  %2089 = vmatpush2.msra.mxu0 0.0
  %2090 = vmatprep.mubr.f32.mxu0 0.0
  %2091 = vmatmul.mubr.f32.gmra.mxu0 %v2025
  %v2092 = vpop.f32.mrf.mxu0
  %v2093 = vadd.f32 %v812, %v2092
  %v2094 = vpop.f32.mrf.mxu0
  %v2095 = vadd.f32 %v816, %v2094
  %2096 = vdwg.mxu0
  %v2097 = vmul.f32 %v2093, %v238
  %v2098 = vmul.f32 %v2095, %v239
  %v2099 = vtanh.pop %v2097
  %v2100 = vtanh.pop %v2098
  %v2101 = vmul.f32 %v2099, 0.5
  %v2102 = vmul.f32 %v2100, 0.5
  %v2103 = vadd.f32 %v2101, 0.5
  %v2104 = vadd.f32 %v2102, 0.5
  %v2105 = vmul.f32 %v2103, %v1601
  %v2106 = vmul.f32 %v2103, %v2100
  %2108 = vrot.lane.b32.xlu0 %v2106, 64
  %v2109 = vpop.permute.xlu0 %2108
  %v2111 = vadd.f32 %v2105, %v2109
  %v2112 = vtanh.pop %v2111
  %v2113 = vmul.f32 %v2104, %v2112
  %2115 = vrot.lane.b32.xlu0 %v1603, 64
  %v2116 = vpop.permute.xlu0 %2115
  %v2118 = vsel %vm258, %v2116, %v1696
  %2119 = vmatprep.subr.mxu0 %v1223
  %2120 = vmatpush1.msra.mxu0 %v1222
  %2121 = vmatprep.subr.mxu0 %v1221
  %2122 = vmatpush1.msra.mxu0 %v1220
  %2123 = vmatprep.subr.mxu0 %v1219
  %2124 = vmatpush1.msra.mxu0 %v1218
  %2125 = vmatprep.subr.mxu0 %v1217
  %2126 = vmatpush1.msra.mxu0 %v1216
  %2127 = vmatprep.subr.mxu0 %v1215
  %2128 = vmatpush1.msra.mxu0 %v1214
  %2129 = vmatprep.subr.mxu0 %v1213
  %2130 = vmatpush1.msra.mxu0 %v1212
  %2131 = vmatprep.subr.mxu0 %v1211
  %2132 = vmatpush1.msra.mxu0 %v1210
  %2133 = vmatprep.subr.mxu0 %v1209
  %2134 = vmatpush1.msra.mxu0 %v1208
  %2135 = vmatprep.subr.mxu0 %v1207
  %2136 = vmatpush1.msra.mxu0 %v1206
  %2137 = vmatprep.subr.mxu0 %v1205
  %2138 = vmatpush1.msra.mxu0 %v1204
  %2139 = vmatprep.subr.mxu0 %v1203
  %2140 = vmatpush1.msra.mxu0 %v1202
  %2141 = vmatprep.subr.mxu0 %v1201
  %2142 = vmatpush1.msra.mxu0 %v1200
  %2143 = vmatprep.subr.mxu0 %v1199
  %2144 = vmatpush1.msra.mxu0 %v1198
  %2145 = vmatprep.subr.mxu0 %v1197
  %2146 = vmatpush1.msra.mxu0 %v1196
  %2147 = vmatprep.subr.mxu0 %v1195
  %2148 = vmatpush1.msra.mxu0 %v1194
  %2149 = vmatprep.subr.mxu0 %v1193
  %2150 = vmatpush1.msra.mxu0 %v1192
  %2151 = vmatprep.subr.mxu0 0.0
  %2152 = vmatpush2.msra.mxu0 0.0
  %2153 = vmatprep.subr.mxu0 0.0
  %2154 = vmatpush2.msra.mxu0 0.0
  %2155 = vmatprep.subr.mxu0 0.0
  %2156 = vmatpush2.msra.mxu0 0.0
  %2157 = vmatprep.subr.mxu0 0.0
  %2158 = vmatpush2.msra.mxu0 0.0
  %2159 = vmatprep.subr.mxu0 0.0
  %2160 = vmatpush2.msra.mxu0 0.0
  %2161 = vmatprep.subr.mxu0 0.0
  %2162 = vmatpush2.msra.mxu0 0.0
  %2163 = vmatprep.subr.mxu0 0.0
  %2164 = vmatpush2.msra.mxu0 0.0
  %2165 = vmatprep.subr.mxu0 0.0
  %2166 = vmatpush2.msra.mxu0 0.0
  %2167 = vmatprep.subr.mxu0 0.0
  %2168 = vmatpush2.msra.mxu0 0.0
  %2169 = vmatprep.subr.mxu0 0.0
  %2170 = vmatpush2.msra.mxu0 0.0
  %2171 = vmatprep.subr.mxu0 0.0
  %2172 = vmatpush2.msra.mxu0 0.0
  %2173 = vmatprep.subr.mxu0 0.0
  %2174 = vmatpush2.msra.mxu0 0.0
  %2175 = vmatprep.subr.mxu0 0.0
  %2176 = vmatpush2.msra.mxu0 0.0
  %2177 = vmatprep.subr.mxu0 0.0
  %2178 = vmatpush2.msra.mxu0 0.0
  %2179 = vmatprep.subr.mxu0 0.0
  %2180 = vmatpush2.msra.mxu0 0.0
  %2181 = vmatprep.subr.mxu0 0.0
  %2182 = vmatpush2.msra.mxu0 0.0
  %2183 = vmatprep.mubr.f32.mxu0 0.0
  %2184 = vmatmul.mubr.f32.gmra.mxu0 %v2118
  %v2185 = vpop.f32.mrf.mxu0
  %v2186 = vadd.f32 %v1229, %v2185
  %v2187 = vpop.f32.mrf.mxu0
  %v2188 = vadd.f32 %v1233, %v2187
  %2189 = vdwg.mxu0
  %v2190 = vmul.f32 %v2186, %v238
  %v2191 = vmul.f32 %v2188, %v239
  %v2192 = vtanh.pop %v2190
  %v2193 = vtanh.pop %v2191
  %v2194 = vmul.f32 %v2192, 0.5
  %v2195 = vmul.f32 %v2193, 0.5
  %v2196 = vadd.f32 %v2194, 0.5
  %v2197 = vadd.f32 %v2195, 0.5
  %v2198 = vmul.f32 %v2196, %v1694
  %v2199 = vmul.f32 %v2196, %v2193
  %2201 = vrot.lane.b32.xlu0 %v2199, 64
  %v2202 = vpop.permute.xlu0 %2201
  %v2204 = vadd.f32 %v2198, %v2202
  %v2205 = vtanh.pop %v2204
  %v2206 = vmul.f32 %v2197, %v2205
  %2208 = vrot.lane.b32.xlu0 %v1696, 64
  %v2209 = vpop.permute.xlu0 %2208
  %v2211 = vsel %vm258, %v2209, %v1833
  %2212 = vmatprep.subr.mxu0 %v1733
  %2213 = vmatpush1.msra.mxu0 %v1732
  %2214 = vmatprep.subr.mxu0 %v1731
  %2215 = vmatpush1.msra.mxu0 %v1730
  %2216 = vmatprep.subr.mxu0 %v1729
  %2217 = vmatpush1.msra.mxu0 %v1728
  %2218 = vmatprep.subr.mxu0 %v1727
  %2219 = vmatpush1.msra.mxu0 %v1726
  %2220 = vmatprep.subr.mxu0 %v1725
  %2221 = vmatpush1.msra.mxu0 %v1724
  %2222 = vmatprep.subr.mxu0 %v1723
  %2223 = vmatpush1.msra.mxu0 %v1722
  %2224 = vmatprep.subr.mxu0 %v1721
  %2225 = vmatpush1.msra.mxu0 %v1720
  %2226 = vmatprep.subr.mxu0 %v1719
  %2227 = vmatpush1.msra.mxu0 %v1718
  %2228 = vmatprep.subr.mxu0 %v1717
  %2229 = vmatpush1.msra.mxu0 %v1716
  %2230 = vmatprep.subr.mxu0 %v1715
  %2231 = vmatpush1.msra.mxu0 %v1714
  %2232 = vmatprep.subr.mxu0 %v1713
  %2233 = vmatpush1.msra.mxu0 %v1712
  %2234 = vmatprep.subr.mxu0 %v1711
  %2235 = vmatpush1.msra.mxu0 %v1710
  %2236 = vmatprep.subr.mxu0 %v1709
  %2237 = vmatpush1.msra.mxu0 %v1708
  %2238 = vmatprep.subr.mxu0 %v1707
  %2239 = vmatpush1.msra.mxu0 %v1706
  %2240 = vmatprep.subr.mxu0 %v1705
  %2241 = vmatpush1.msra.mxu0 %v1704
  %2242 = vmatprep.subr.mxu0 %v1703
  %2243 = vmatpush1.msra.mxu0 %v1702
  %2244 = vmatprep.subr.mxu0 0.0
  %2245 = vmatpush2.msra.mxu0 0.0
  %2246 = vmatprep.subr.mxu0 0.0
  %2247 = vmatpush2.msra.mxu0 0.0
  %2248 = vmatprep.subr.mxu0 0.0
  %2249 = vmatpush2.msra.mxu0 0.0
  %2250 = vmatprep.subr.mxu0 0.0
  %2251 = vmatpush2.msra.mxu0 0.0
  %2252 = vmatprep.subr.mxu0 0.0
  %2253 = vmatpush2.msra.mxu0 0.0
  %2254 = vmatprep.subr.mxu0 0.0
  %2255 = vmatpush2.msra.mxu0 0.0
  %2256 = vmatprep.subr.mxu0 0.0
  %2257 = vmatpush2.msra.mxu0 0.0
  %2258 = vmatprep.subr.mxu0 0.0
  %2259 = vmatpush2.msra.mxu0 0.0
  %2260 = vmatprep.subr.mxu0 0.0
  %2261 = vmatpush2.msra.mxu0 0.0
  %2262 = vmatprep.subr.mxu0 0.0
  %2263 = vmatpush2.msra.mxu0 0.0
  %2264 = vmatprep.subr.mxu0 0.0
  %2265 = vmatpush2.msra.mxu0 0.0
  %2266 = vmatprep.subr.mxu0 0.0
  %2267 = vmatpush2.msra.mxu0 0.0
  %2268 = vmatprep.subr.mxu0 0.0
  %2269 = vmatpush2.msra.mxu0 0.0
  %2270 = vmatprep.subr.mxu0 0.0
  %2271 = vmatpush2.msra.mxu0 0.0
  %2272 = vmatprep.subr.mxu0 0.0
  %2273 = vmatpush2.msra.mxu0 0.0
  %2274 = vmatprep.subr.mxu0 0.0
  %2275 = vmatpush2.msra.mxu0 0.0
  %2276 = vmatprep.mubr.f32.mxu0 0.0
  %2277 = vmatmul.mubr.f32.gmra.mxu0 %v2211
  %v2278 = vpop.f32.mrf.mxu0
  %v2279 = vadd.f32 %v1739, %v2278
  %v2280 = vpop.f32.mrf.mxu0
  %v2281 = vadd.f32 %v1743, %v2280
  %2282 = vdwg.mxu0
  %v2283 = vmul.f32 %v2279, %v238
  %v2284 = vmul.f32 %v2281, %v239
  %v2285 = vtanh.pop %v2283
  %v2286 = vtanh.pop %v2284
  %v2287 = vmul.f32 %v2285, 0.5
  %v2288 = vmul.f32 %v2286, 0.5
  %v2289 = vadd.f32 %v2287, 0.5
  %v2290 = vadd.f32 %v2288, 0.5
  %v2291 = vmul.f32 %v2289, %v1831
  %v2292 = vmul.f32 %v2289, %v2286
  %2294 = vrot.lane.b32.xlu0 %v2292, 64
  %v2295 = vpop.permute.xlu0 %2294
  %v2297 = vadd.f32 %v2291, %v2295
  %v2298 = vtanh.pop %v2297
  %v2299 = vmul.f32 %v2290, %v2298
  %v2300 = vld [vmem:[#allocation2 + $0x60] sm:$0xff]
  %v2301 = vld [vmem:[#allocation2 + $0x68] sm:$0xff]
  %2303 = vrot.lane.b32.xlu0 %v1930, 64
  %v2304 = vpop.permute.xlu0 %2303
  %v2305 = vsel %vm258, %v2304, 0
  %2307 = vmatprep.subr.mxu0 0.0
  %2308 = vmatpush1.msra.mxu0 0.0
  %2309 = vmatprep.subr.mxu0 0.0
  %2310 = vmatpush1.msra.mxu0 0.0
  %2311 = vmatprep.subr.mxu0 0.0
  %2312 = vmatpush1.msra.mxu0 0.0
  %2313 = vmatprep.subr.mxu0 0.0
  %2314 = vmatpush1.msra.mxu0 0.0
  %2315 = vmatprep.subr.mxu0 0.0
  %2316 = vmatpush1.msra.mxu0 0.0
  %2317 = vmatprep.subr.mxu0 0.0
  %2318 = vmatpush1.msra.mxu0 0.0
  %2319 = vmatprep.subr.mxu0 0.0
  %2320 = vmatpush1.msra.mxu0 0.0
  %2321 = vmatprep.subr.mxu0 0.0
  %2322 = vmatpush1.msra.mxu0 0.0
  %2323 = vmatprep.subr.mxu0 %v257
  %2324 = vmatpush1.msra.mxu0 %v256
  %2325 = vmatprep.subr.mxu0 %v255
  %2326 = vmatpush1.msra.mxu0 %v254
  %2327 = vmatprep.subr.mxu0 %v253
  %2328 = vmatpush1.msra.mxu0 %v252
  %2329 = vmatprep.subr.mxu0 %v251
  %2330 = vmatpush1.msra.mxu0 %v250
  %2331 = vmatprep.subr.mxu0 %v249
  %2332 = vmatpush1.msra.mxu0 %v248
  %2333 = vmatprep.subr.mxu0 %v247
  %2334 = vmatpush1.msra.mxu0 %v246
  %2335 = vmatprep.subr.mxu0 %v245
  %2336 = vmatpush1.msra.mxu0 %v244
  %2337 = vmatprep.subr.mxu0 %v243
  %2338 = vmatpush1.msra.mxu0 %v242
  %2339 = vmatprep.subr.mxu0 0.0
  %2340 = vmatpush2.msra.mxu0 0.0
  %2341 = vmatprep.subr.mxu0 0.0
  %2342 = vmatpush2.msra.mxu0 0.0
  %2343 = vmatprep.subr.mxu0 0.0
  %2344 = vmatpush2.msra.mxu0 0.0
  %2345 = vmatprep.subr.mxu0 0.0
  %2346 = vmatpush2.msra.mxu0 0.0
  %2347 = vmatprep.subr.mxu0 0.0
  %2348 = vmatpush2.msra.mxu0 0.0
  %2349 = vmatprep.subr.mxu0 0.0
  %2350 = vmatpush2.msra.mxu0 0.0
  %2351 = vmatprep.subr.mxu0 0.0
  %2352 = vmatpush2.msra.mxu0 0.0
  %2353 = vmatprep.subr.mxu0 0.0
  %2354 = vmatpush2.msra.mxu0 0.0
  %2355 = vmatprep.subr.mxu0 0.0
  %2356 = vmatpush2.msra.mxu0 0.0
  %2357 = vmatprep.subr.mxu0 0.0
  %2358 = vmatpush2.msra.mxu0 0.0
  %2359 = vmatprep.subr.mxu0 0.0
  %2360 = vmatpush2.msra.mxu0 0.0
  %2361 = vmatprep.subr.mxu0 0.0
  %2362 = vmatpush2.msra.mxu0 0.0
  %2363 = vmatprep.subr.mxu0 0.0
  %2364 = vmatpush2.msra.mxu0 0.0
  %2365 = vmatprep.subr.mxu0 0.0
  %2366 = vmatpush2.msra.mxu0 0.0
  %2367 = vmatprep.subr.mxu0 0.0
  %2368 = vmatpush2.msra.mxu0 0.0
  %2369 = vmatprep.subr.mxu0 0.0
  %2370 = vmatpush2.msra.mxu0 0.0
  %2371 = vmatprep.mubr.f32.mxu0 0.0
  %2372 = vmatmul.mubr.f32.gmra.mxu0 %v2305
  %v2373 = vpop.f32.mrf.mxu0
  %v2374 = vadd.f32 0.0, %v2373
  %v2375 = vpop.f32.mrf.mxu0
  %v2376 = vadd.f32 0.0, %v2375
  %2377 = vdwg.mxu0
  %v2378 = vadd.f32 %v2300, %v2374
  %v2379 = vadd.f32 %v2301, %v2376
  %v2380 = vmul.f32 %v2378, %v238
  %v2381 = vmul.f32 %v2379, %v239
  %v2382 = vtanh.pop %v2380
  %v2383 = vtanh.pop %v2381
  %v2384 = vmul.f32 %v2382, 0.5
  %v2385 = vmul.f32 %v2383, 0.5
  %v2386 = vadd.f32 %v2384, 0.5
  %v2387 = vadd.f32 %v2385, 0.5
  %v2388 = vmul.f32 %v2386, %v1928
  %v2389 = vmul.f32 %v2386, %v2383
  %2391 = vrot.lane.b32.xlu0 %v2389, 64
  %v2392 = vpop.permute.xlu0 %2391
  %v2394 = vadd.f32 %v2388, %v2392
  %v2395 = vtanh.pop %v2394
  %v2396 = vmul.f32 %v2387, %v2395
  %v2398 = vsel %vm258, %v2304, %v2020
  %2399 = vmatprep.subr.mxu0 %v482
  %2400 = vmatpush1.msra.mxu0 %v481
  %2401 = vmatprep.subr.mxu0 %v480
  %2402 = vmatpush1.msra.mxu0 %v479
  %2403 = vmatprep.subr.mxu0 %v478
  %2404 = vmatpush1.msra.mxu0 %v477
  %2405 = vmatprep.subr.mxu0 %v476
  %2406 = vmatpush1.msra.mxu0 %v475
  %2407 = vmatprep.subr.mxu0 %v474
  %2408 = vmatpush1.msra.mxu0 %v473
  %2409 = vmatprep.subr.mxu0 %v472
  %2410 = vmatpush1.msra.mxu0 %v471
  %2411 = vmatprep.subr.mxu0 %v470
  %2412 = vmatpush1.msra.mxu0 %v469
  %2413 = vmatprep.subr.mxu0 %v468
  %2414 = vmatpush1.msra.mxu0 %v467
  %2415 = vmatprep.subr.mxu0 %v466
  %2416 = vmatpush1.msra.mxu0 %v465
  %2417 = vmatprep.subr.mxu0 %v464
  %2418 = vmatpush1.msra.mxu0 %v463
  %2419 = vmatprep.subr.mxu0 %v462
  %2420 = vmatpush1.msra.mxu0 %v461
  %2421 = vmatprep.subr.mxu0 %v460
  %2422 = vmatpush1.msra.mxu0 %v459
  %2423 = vmatprep.subr.mxu0 %v458
  %2424 = vmatpush1.msra.mxu0 %v457
  %2425 = vmatprep.subr.mxu0 %v456
  %2426 = vmatpush1.msra.mxu0 %v455
  %2427 = vmatprep.subr.mxu0 %v454
  %2428 = vmatpush1.msra.mxu0 %v453
  %2429 = vmatprep.subr.mxu0 %v452
  %2430 = vmatpush1.msra.mxu0 %v451
  %2431 = vmatprep.subr.mxu0 0.0
  %2432 = vmatpush2.msra.mxu0 0.0
  %2433 = vmatprep.subr.mxu0 0.0
  %2434 = vmatpush2.msra.mxu0 0.0
  %2435 = vmatprep.subr.mxu0 0.0
  %2436 = vmatpush2.msra.mxu0 0.0
  %2437 = vmatprep.subr.mxu0 0.0
  %2438 = vmatpush2.msra.mxu0 0.0
  %2439 = vmatprep.subr.mxu0 0.0
  %2440 = vmatpush2.msra.mxu0 0.0
  %2441 = vmatprep.subr.mxu0 0.0
  %2442 = vmatpush2.msra.mxu0 0.0
  %2443 = vmatprep.subr.mxu0 0.0
  %2444 = vmatpush2.msra.mxu0 0.0
  %2445 = vmatprep.subr.mxu0 0.0
  %2446 = vmatpush2.msra.mxu0 0.0
  %2447 = vmatprep.subr.mxu0 0.0
  %2448 = vmatpush2.msra.mxu0 0.0
  %2449 = vmatprep.subr.mxu0 0.0
  %2450 = vmatpush2.msra.mxu0 0.0
  %2451 = vmatprep.subr.mxu0 0.0
  %2452 = vmatpush2.msra.mxu0 0.0
  %2453 = vmatprep.subr.mxu0 0.0
  %2454 = vmatpush2.msra.mxu0 0.0
  %2455 = vmatprep.subr.mxu0 0.0
  %2456 = vmatpush2.msra.mxu0 0.0
  %2457 = vmatprep.subr.mxu0 0.0
  %2458 = vmatpush2.msra.mxu0 0.0
  %2459 = vmatprep.subr.mxu0 0.0
  %2460 = vmatpush2.msra.mxu0 0.0
  %2461 = vmatprep.subr.mxu0 0.0
  %2462 = vmatpush2.msra.mxu0 0.0
  %2463 = vmatprep.mubr.f32.mxu0 0.0
  %2464 = vmatmul.mubr.f32.gmra.mxu0 %v2398
  %v2465 = vpop.f32.mrf.mxu0
  %v2466 = vadd.f32 %v488, %v2465
  %v2467 = vpop.f32.mrf.mxu0
  %v2468 = vadd.f32 %v492, %v2467
  %2469 = vdwg.mxu0
  %v2470 = vmul.f32 %v2466, %v238
  %v2471 = vmul.f32 %v2468, %v239
  %v2472 = vtanh.pop %v2470
  %v2473 = vtanh.pop %v2471
  %v2474 = vmul.f32 %v2472, 0.5
  %v2475 = vmul.f32 %v2473, 0.5
  %v2476 = vadd.f32 %v2474, 0.5
  %v2477 = vadd.f32 %v2475, 0.5
  %v2478 = vmul.f32 %v2476, %v2018
  %v2479 = vmul.f32 %v2476, %v2473
  %2481 = vrot.lane.b32.xlu0 %v2479, 64
  %v2482 = vpop.permute.xlu0 %2481
  %v2484 = vadd.f32 %v2478, %v2482
  %v2485 = vtanh.pop %v2484
  %v2486 = vmul.f32 %v2477, %v2485
  %2488 = vrot.lane.b32.xlu0 %v2020, 64
  %v2489 = vpop.permute.xlu0 %2488
  %v2491 = vsel %vm258, %v2489, %v2113
  %2492 = vmatprep.subr.mxu0 %v806
  %2493 = vmatpush1.msra.mxu0 %v805
  %2494 = vmatprep.subr.mxu0 %v804
  %2495 = vmatpush1.msra.mxu0 %v803
  %2496 = vmatprep.subr.mxu0 %v802
  %2497 = vmatpush1.msra.mxu0 %v801
  %2498 = vmatprep.subr.mxu0 %v800
  %2499 = vmatpush1.msra.mxu0 %v799
  %2500 = vmatprep.subr.mxu0 %v798
  %2501 = vmatpush1.msra.mxu0 %v797
  %2502 = vmatprep.subr.mxu0 %v796
  %2503 = vmatpush1.msra.mxu0 %v795
  %2504 = vmatprep.subr.mxu0 %v794
  %2505 = vmatpush1.msra.mxu0 %v793
  %2506 = vmatprep.subr.mxu0 %v792
  %2507 = vmatpush1.msra.mxu0 %v791
  %2508 = vmatprep.subr.mxu0 %v790
  %2509 = vmatpush1.msra.mxu0 %v789
  %2510 = vmatprep.subr.mxu0 %v788
  %2511 = vmatpush1.msra.mxu0 %v787
  %2512 = vmatprep.subr.mxu0 %v786
  %2513 = vmatpush1.msra.mxu0 %v785
  %2514 = vmatprep.subr.mxu0 %v784
  %2515 = vmatpush1.msra.mxu0 %v783
  %2516 = vmatprep.subr.mxu0 %v782
  %2517 = vmatpush1.msra.mxu0 %v781
  %2518 = vmatprep.subr.mxu0 %v780
  %2519 = vmatpush1.msra.mxu0 %v779
  %2520 = vmatprep.subr.mxu0 %v778
  %2521 = vmatpush1.msra.mxu0 %v777
  %2522 = vmatprep.subr.mxu0 %v776
  %2523 = vmatpush1.msra.mxu0 %v775
  %2524 = vmatprep.subr.mxu0 0.0
  %2525 = vmatpush2.msra.mxu0 0.0
  %2526 = vmatprep.subr.mxu0 0.0
  %2527 = vmatpush2.msra.mxu0 0.0
  %2528 = vmatprep.subr.mxu0 0.0
  %2529 = vmatpush2.msra.mxu0 0.0
  %2530 = vmatprep.subr.mxu0 0.0
  %2531 = vmatpush2.msra.mxu0 0.0
  %2532 = vmatprep.subr.mxu0 0.0
  %2533 = vmatpush2.msra.mxu0 0.0
  %2534 = vmatprep.subr.mxu0 0.0
  %2535 = vmatpush2.msra.mxu0 0.0
  %2536 = vmatprep.subr.mxu0 0.0
  %2537 = vmatpush2.msra.mxu0 0.0
  %2538 = vmatprep.subr.mxu0 0.0
  %2539 = vmatpush2.msra.mxu0 0.0
  %2540 = vmatprep.subr.mxu0 0.0
  %2541 = vmatpush2.msra.mxu0 0.0
  %2542 = vmatprep.subr.mxu0 0.0
  %2543 = vmatpush2.msra.mxu0 0.0
  %2544 = vmatprep.subr.mxu0 0.0
  %2545 = vmatpush2.msra.mxu0 0.0
  %2546 = vmatprep.subr.mxu0 0.0
  %2547 = vmatpush2.msra.mxu0 0.0
  %2548 = vmatprep.subr.mxu0 0.0
  %2549 = vmatpush2.msra.mxu0 0.0
  %2550 = vmatprep.subr.mxu0 0.0
  %2551 = vmatpush2.msra.mxu0 0.0
  %2552 = vmatprep.subr.mxu0 0.0
  %2553 = vmatpush2.msra.mxu0 0.0
  %2554 = vmatprep.subr.mxu0 0.0
  %2555 = vmatpush2.msra.mxu0 0.0
  %2556 = vmatprep.mubr.f32.mxu0 0.0
  %2557 = vmatmul.mubr.f32.gmra.mxu0 %v2491
  %v2558 = vpop.f32.mrf.mxu0
  %v2559 = vadd.f32 %v812, %v2558
  %v2560 = vpop.f32.mrf.mxu0
  %v2561 = vadd.f32 %v816, %v2560
  %2562 = vdwg.mxu0
  %v2563 = vmul.f32 %v2559, %v238
  %v2564 = vmul.f32 %v2561, %v239
  %v2565 = vtanh.pop %v2563
  %v2566 = vtanh.pop %v2564
  %v2567 = vmul.f32 %v2565, 0.5
  %v2568 = vmul.f32 %v2566, 0.5
  %v2569 = vadd.f32 %v2567, 0.5
  %v2570 = vadd.f32 %v2568, 0.5
  %v2571 = vmul.f32 %v2569, %v2111
  %v2572 = vmul.f32 %v2569, %v2566
  %2574 = vrot.lane.b32.xlu0 %v2572, 64
  %v2575 = vpop.permute.xlu0 %2574
  %v2577 = vadd.f32 %v2571, %v2575
  %v2578 = vtanh.pop %v2577
  %v2579 = vmul.f32 %v2570, %v2578
  %2581 = vrot.lane.b32.xlu0 %v2113, 64
  %v2582 = vpop.permute.xlu0 %2581
  %v2584 = vsel %vm258, %v2582, %v2206
  %2585 = vmatprep.subr.mxu0 %v1223
  %2586 = vmatpush1.msra.mxu0 %v1222
  %2587 = vmatprep.subr.mxu0 %v1221
  %2588 = vmatpush1.msra.mxu0 %v1220
  %2589 = vmatprep.subr.mxu0 %v1219
  %2590 = vmatpush1.msra.mxu0 %v1218
  %2591 = vmatprep.subr.mxu0 %v1217
  %2592 = vmatpush1.msra.mxu0 %v1216
  %2593 = vmatprep.subr.mxu0 %v1215
  %2594 = vmatpush1.msra.mxu0 %v1214
  %2595 = vmatprep.subr.mxu0 %v1213
  %2596 = vmatpush1.msra.mxu0 %v1212
  %2597 = vmatprep.subr.mxu0 %v1211
  %2598 = vmatpush1.msra.mxu0 %v1210
  %2599 = vmatprep.subr.mxu0 %v1209
  %2600 = vmatpush1.msra.mxu0 %v1208
  %2601 = vmatprep.subr.mxu0 %v1207
  %2602 = vmatpush1.msra.mxu0 %v1206
  %2603 = vmatprep.subr.mxu0 %v1205
  %2604 = vmatpush1.msra.mxu0 %v1204
  %2605 = vmatprep.subr.mxu0 %v1203
  %2606 = vmatpush1.msra.mxu0 %v1202
  %2607 = vmatprep.subr.mxu0 %v1201
  %2608 = vmatpush1.msra.mxu0 %v1200
  %2609 = vmatprep.subr.mxu0 %v1199
  %2610 = vmatpush1.msra.mxu0 %v1198
  %2611 = vmatprep.subr.mxu0 %v1197
  %2612 = vmatpush1.msra.mxu0 %v1196
  %2613 = vmatprep.subr.mxu0 %v1195
  %2614 = vmatpush1.msra.mxu0 %v1194
  %2615 = vmatprep.subr.mxu0 %v1193
  %2616 = vmatpush1.msra.mxu0 %v1192
  %2617 = vmatprep.subr.mxu0 0.0
  %2618 = vmatpush2.msra.mxu0 0.0
  %2619 = vmatprep.subr.mxu0 0.0
  %2620 = vmatpush2.msra.mxu0 0.0
  %2621 = vmatprep.subr.mxu0 0.0
  %2622 = vmatpush2.msra.mxu0 0.0
  %2623 = vmatprep.subr.mxu0 0.0
  %2624 = vmatpush2.msra.mxu0 0.0
  %2625 = vmatprep.subr.mxu0 0.0
  %2626 = vmatpush2.msra.mxu0 0.0
  %2627 = vmatprep.subr.mxu0 0.0
  %2628 = vmatpush2.msra.mxu0 0.0
  %2629 = vmatprep.subr.mxu0 0.0
  %2630 = vmatpush2.msra.mxu0 0.0
  %2631 = vmatprep.subr.mxu0 0.0
  %2632 = vmatpush2.msra.mxu0 0.0
  %2633 = vmatprep.subr.mxu0 0.0
  %2634 = vmatpush2.msra.mxu0 0.0
  %2635 = vmatprep.subr.mxu0 0.0
  %2636 = vmatpush2.msra.mxu0 0.0
  %2637 = vmatprep.subr.mxu0 0.0
  %2638 = vmatpush2.msra.mxu0 0.0
  %2639 = vmatprep.subr.mxu0 0.0
  %2640 = vmatpush2.msra.mxu0 0.0
  %2641 = vmatprep.subr.mxu0 0.0
  %2642 = vmatpush2.msra.mxu0 0.0
  %2643 = vmatprep.subr.mxu0 0.0
  %2644 = vmatpush2.msra.mxu0 0.0
  %2645 = vmatprep.subr.mxu0 0.0
  %2646 = vmatpush2.msra.mxu0 0.0
  %2647 = vmatprep.subr.mxu0 0.0
  %2648 = vmatpush2.msra.mxu0 0.0
  %2649 = vmatprep.mubr.f32.mxu0 0.0
  %2650 = vmatmul.mubr.f32.gmra.mxu0 %v2584
  %v2651 = vpop.f32.mrf.mxu0
  %v2652 = vadd.f32 %v1229, %v2651
  %v2653 = vpop.f32.mrf.mxu0
  %v2654 = vadd.f32 %v1233, %v2653
  %2655 = vdwg.mxu0
  %v2656 = vmul.f32 %v2652, %v238
  %v2657 = vmul.f32 %v2654, %v239
  %v2658 = vtanh.pop %v2656
  %v2659 = vtanh.pop %v2657
  %v2660 = vmul.f32 %v2658, 0.5
  %v2661 = vmul.f32 %v2659, 0.5
  %v2662 = vadd.f32 %v2660, 0.5
  %v2663 = vadd.f32 %v2661, 0.5
  %v2664 = vmul.f32 %v2662, %v2204
  %v2665 = vmul.f32 %v2662, %v2659
  %2667 = vrot.lane.b32.xlu0 %v2665, 64
  %v2668 = vpop.permute.xlu0 %2667
  %v2670 = vadd.f32 %v2664, %v2668
  %v2671 = vtanh.pop %v2670
  %v2672 = vmul.f32 %v2663, %v2671
  %2674 = vrot.lane.b32.xlu0 %v2206, 64
  %v2675 = vpop.permute.xlu0 %2674
  %v2677 = vsel %vm258, %v2675, %v2299
  %2678 = vmatprep.subr.mxu0 %v1733
  %2679 = vmatpush1.msra.mxu0 %v1732
  %2680 = vmatprep.subr.mxu0 %v1731
  %2681 = vmatpush1.msra.mxu0 %v1730
  %2682 = vmatprep.subr.mxu0 %v1729
  %2683 = vmatpush1.msra.mxu0 %v1728
  %2684 = vmatprep.subr.mxu0 %v1727
  %2685 = vmatpush1.msra.mxu0 %v1726
  %2686 = vmatprep.subr.mxu0 %v1725
  %2687 = vmatpush1.msra.mxu0 %v1724
  %2688 = vmatprep.subr.mxu0 %v1723
  %2689 = vmatpush1.msra.mxu0 %v1722
  %2690 = vmatprep.subr.mxu0 %v1721
  %2691 = vmatpush1.msra.mxu0 %v1720
  %2692 = vmatprep.subr.mxu0 %v1719
  %2693 = vmatpush1.msra.mxu0 %v1718
  %2694 = vmatprep.subr.mxu0 %v1717
  %2695 = vmatpush1.msra.mxu0 %v1716
  %2696 = vmatprep.subr.mxu0 %v1715
  %2697 = vmatpush1.msra.mxu0 %v1714
  %2698 = vmatprep.subr.mxu0 %v1713
  %2699 = vmatpush1.msra.mxu0 %v1712
  %2700 = vmatprep.subr.mxu0 %v1711
  %2701 = vmatpush1.msra.mxu0 %v1710
  %2702 = vmatprep.subr.mxu0 %v1709
  %2703 = vmatpush1.msra.mxu0 %v1708
  %2704 = vmatprep.subr.mxu0 %v1707
  %2705 = vmatpush1.msra.mxu0 %v1706
  %2706 = vmatprep.subr.mxu0 %v1705
  %2707 = vmatpush1.msra.mxu0 %v1704
  %2708 = vmatprep.subr.mxu0 %v1703
  %2709 = vmatpush1.msra.mxu0 %v1702
  %2710 = vmatprep.subr.mxu0 0.0
  %2711 = vmatpush2.msra.mxu0 0.0
  %2712 = vmatprep.subr.mxu0 0.0
  %2713 = vmatpush2.msra.mxu0 0.0
  %2714 = vmatprep.subr.mxu0 0.0
  %2715 = vmatpush2.msra.mxu0 0.0
  %2716 = vmatprep.subr.mxu0 0.0
  %2717 = vmatpush2.msra.mxu0 0.0
  %2718 = vmatprep.subr.mxu0 0.0
  %2719 = vmatpush2.msra.mxu0 0.0
  %2720 = vmatprep.subr.mxu0 0.0
  %2721 = vmatpush2.msra.mxu0 0.0
  %2722 = vmatprep.subr.mxu0 0.0
  %2723 = vmatpush2.msra.mxu0 0.0
  %2724 = vmatprep.subr.mxu0 0.0
  %2725 = vmatpush2.msra.mxu0 0.0
  %2726 = vmatprep.subr.mxu0 0.0
  %2727 = vmatpush2.msra.mxu0 0.0
  %2728 = vmatprep.subr.mxu0 0.0
  %2729 = vmatpush2.msra.mxu0 0.0
  %2730 = vmatprep.subr.mxu0 0.0
  %2731 = vmatpush2.msra.mxu0 0.0
  %2732 = vmatprep.subr.mxu0 0.0
  %2733 = vmatpush2.msra.mxu0 0.0
  %2734 = vmatprep.subr.mxu0 0.0
  %2735 = vmatpush2.msra.mxu0 0.0
  %2736 = vmatprep.subr.mxu0 0.0
  %2737 = vmatpush2.msra.mxu0 0.0
  %2738 = vmatprep.subr.mxu0 0.0
  %2739 = vmatpush2.msra.mxu0 0.0
  %2740 = vmatprep.subr.mxu0 0.0
  %2741 = vmatpush2.msra.mxu0 0.0
  %2742 = vmatprep.mubr.f32.mxu0 0.0
  %2743 = vmatmul.mubr.f32.gmra.mxu0 %v2677
  %v2744 = vpop.f32.mrf.mxu0
  %v2745 = vadd.f32 %v1739, %v2744
  %v2746 = vpop.f32.mrf.mxu0
  %v2747 = vadd.f32 %v1743, %v2746
  %2748 = vdwg.mxu0
  %v2749 = vmul.f32 %v2745, %v238
  %v2750 = vmul.f32 %v2747, %v239
  %v2751 = vtanh.pop %v2749
  %v2752 = vtanh.pop %v2750
  %v2753 = vmul.f32 %v2751, 0.5
  %v2754 = vmul.f32 %v2752, 0.5
  %v2755 = vadd.f32 %v2753, 0.5
  %v2756 = vadd.f32 %v2754, 0.5
  %v2757 = vmul.f32 %v2755, %v2297
  %v2758 = vmul.f32 %v2755, %v2752
  %2760 = vrot.lane.b32.xlu0 %v2758, 64
  %v2761 = vpop.permute.xlu0 %2760
  %v2763 = vadd.f32 %v2757, %v2761
  %v2764 = vtanh.pop %v2763
  %v2765 = vmul.f32 %v2756, %v2764
  %v2766 = vld [vmem:[#allocation2 + $0x70] sm:$0xff]
  %v2767 = vld [vmem:[#allocation2 + $0x78] sm:$0xff]
  %2769 = vrot.lane.b32.xlu0 %v2396, 64
  %v2770 = vpop.permute.xlu0 %2769
  %v2771 = vsel %vm258, %v2770, 0
  %2773 = vmatprep.subr.mxu0 0.0
  %2774 = vmatpush1.msra.mxu0 0.0
  %2775 = vmatprep.subr.mxu0 0.0
  %2776 = vmatpush1.msra.mxu0 0.0
  %2777 = vmatprep.subr.mxu0 0.0
  %2778 = vmatpush1.msra.mxu0 0.0
  %2779 = vmatprep.subr.mxu0 0.0
  %2780 = vmatpush1.msra.mxu0 0.0
  %2781 = vmatprep.subr.mxu0 0.0
  %2782 = vmatpush1.msra.mxu0 0.0
  %2783 = vmatprep.subr.mxu0 0.0
  %2784 = vmatpush1.msra.mxu0 0.0
  %2785 = vmatprep.subr.mxu0 0.0
  %2786 = vmatpush1.msra.mxu0 0.0
  %2787 = vmatprep.subr.mxu0 0.0
  %2788 = vmatpush1.msra.mxu0 0.0
  %2789 = vmatprep.subr.mxu0 %v257
  %2790 = vmatpush1.msra.mxu0 %v256
  %2791 = vmatprep.subr.mxu0 %v255
  %2792 = vmatpush1.msra.mxu0 %v254
  %2793 = vmatprep.subr.mxu0 %v253
  %2794 = vmatpush1.msra.mxu0 %v252
  %2795 = vmatprep.subr.mxu0 %v251
  %2796 = vmatpush1.msra.mxu0 %v250
  %2797 = vmatprep.subr.mxu0 %v249
  %2798 = vmatpush1.msra.mxu0 %v248
  %2799 = vmatprep.subr.mxu0 %v247
  %2800 = vmatpush1.msra.mxu0 %v246
  %2801 = vmatprep.subr.mxu0 %v245
  %2802 = vmatpush1.msra.mxu0 %v244
  %2803 = vmatprep.subr.mxu0 %v243
  %2804 = vmatpush1.msra.mxu0 %v242
  %2805 = vmatprep.subr.mxu0 0.0
  %2806 = vmatpush2.msra.mxu0 0.0
  %2807 = vmatprep.subr.mxu0 0.0
  %2808 = vmatpush2.msra.mxu0 0.0
  %2809 = vmatprep.subr.mxu0 0.0
  %2810 = vmatpush2.msra.mxu0 0.0
  %2811 = vmatprep.subr.mxu0 0.0
  %2812 = vmatpush2.msra.mxu0 0.0
  %2813 = vmatprep.subr.mxu0 0.0
  %2814 = vmatpush2.msra.mxu0 0.0
  %2815 = vmatprep.subr.mxu0 0.0
  %2816 = vmatpush2.msra.mxu0 0.0
  %2817 = vmatprep.subr.mxu0 0.0
  %2818 = vmatpush2.msra.mxu0 0.0
  %2819 = vmatprep.subr.mxu0 0.0
  %2820 = vmatpush2.msra.mxu0 0.0
  %2821 = vmatprep.subr.mxu0 0.0
  %2822 = vmatpush2.msra.mxu0 0.0
  %2823 = vmatprep.subr.mxu0 0.0
  %2824 = vmatpush2.msra.mxu0 0.0
  %2825 = vmatprep.subr.mxu0 0.0
  %2826 = vmatpush2.msra.mxu0 0.0
  %2827 = vmatprep.subr.mxu0 0.0
  %2828 = vmatpush2.msra.mxu0 0.0
  %2829 = vmatprep.subr.mxu0 0.0
  %2830 = vmatpush2.msra.mxu0 0.0
  %2831 = vmatprep.subr.mxu0 0.0
  %2832 = vmatpush2.msra.mxu0 0.0
  %2833 = vmatprep.subr.mxu0 0.0
  %2834 = vmatpush2.msra.mxu0 0.0
  %2835 = vmatprep.subr.mxu0 0.0
  %2836 = vmatpush2.msra.mxu0 0.0
  %2837 = vmatprep.mubr.f32.mxu0 0.0
  %2838 = vmatmul.mubr.f32.gmra.mxu0 %v2771
  %v2839 = vpop.f32.mrf.mxu0
  %v2840 = vadd.f32 0.0, %v2839
  %v2841 = vpop.f32.mrf.mxu0
  %v2842 = vadd.f32 0.0, %v2841
  %2843 = vdwg.mxu0
  %v2844 = vadd.f32 %v2766, %v2840
  %v2845 = vadd.f32 %v2767, %v2842
  %v2846 = vmul.f32 %v2844, %v238
  %v2847 = vmul.f32 %v2845, %v239
  %v2848 = vtanh.pop %v2846
  %v2849 = vtanh.pop %v2847
  %v2850 = vmul.f32 %v2848, 0.5
  %v2851 = vmul.f32 %v2849, 0.5
  %v2852 = vadd.f32 %v2850, 0.5
  %v2853 = vadd.f32 %v2851, 0.5
  %v2854 = vmul.f32 %v2852, %v2394
  %v2855 = vmul.f32 %v2852, %v2849
  %2857 = vrot.lane.b32.xlu0 %v2855, 64
  %v2858 = vpop.permute.xlu0 %2857
  %v2860 = vadd.f32 %v2854, %v2858
  %v2861 = vtanh.pop %v2860
  %v2862 = vmul.f32 %v2853, %v2861
  %v2864 = vsel %vm258, %v2770, %v2486
  %2865 = vmatprep.subr.mxu0 %v482
  %2866 = vmatpush1.msra.mxu0 %v481
  %2867 = vmatprep.subr.mxu0 %v480
  %2868 = vmatpush1.msra.mxu0 %v479
  %2869 = vmatprep.subr.mxu0 %v478
  %2870 = vmatpush1.msra.mxu0 %v477
  %2871 = vmatprep.subr.mxu0 %v476
  %2872 = vmatpush1.msra.mxu0 %v475
  %2873 = vmatprep.subr.mxu0 %v474
  %2874 = vmatpush1.msra.mxu0 %v473
  %2875 = vmatprep.subr.mxu0 %v472
  %2876 = vmatpush1.msra.mxu0 %v471
  %2877 = vmatprep.subr.mxu0 %v470
  %2878 = vmatpush1.msra.mxu0 %v469
  %2879 = vmatprep.subr.mxu0 %v468
  %2880 = vmatpush1.msra.mxu0 %v467
  %2881 = vmatprep.subr.mxu0 %v466
  %2882 = vmatpush1.msra.mxu0 %v465
  %2883 = vmatprep.subr.mxu0 %v464
  %2884 = vmatpush1.msra.mxu0 %v463
  %2885 = vmatprep.subr.mxu0 %v462
  %2886 = vmatpush1.msra.mxu0 %v461
  %2887 = vmatprep.subr.mxu0 %v460
  %2888 = vmatpush1.msra.mxu0 %v459
  %2889 = vmatprep.subr.mxu0 %v458
  %2890 = vmatpush1.msra.mxu0 %v457
  %2891 = vmatprep.subr.mxu0 %v456
  %2892 = vmatpush1.msra.mxu0 %v455
  %2893 = vmatprep.subr.mxu0 %v454
  %2894 = vmatpush1.msra.mxu0 %v453
  %2895 = vmatprep.subr.mxu0 %v452
  %2896 = vmatpush1.msra.mxu0 %v451
  %2897 = vmatprep.subr.mxu0 0.0
  %2898 = vmatpush2.msra.mxu0 0.0
  %2899 = vmatprep.subr.mxu0 0.0
  %2900 = vmatpush2.msra.mxu0 0.0
  %2901 = vmatprep.subr.mxu0 0.0
  %2902 = vmatpush2.msra.mxu0 0.0
  %2903 = vmatprep.subr.mxu0 0.0
  %2904 = vmatpush2.msra.mxu0 0.0
  %2905 = vmatprep.subr.mxu0 0.0
  %2906 = vmatpush2.msra.mxu0 0.0
  %2907 = vmatprep.subr.mxu0 0.0
  %2908 = vmatpush2.msra.mxu0 0.0
  %2909 = vmatprep.subr.mxu0 0.0
  %2910 = vmatpush2.msra.mxu0 0.0
  %2911 = vmatprep.subr.mxu0 0.0
  %2912 = vmatpush2.msra.mxu0 0.0
  %2913 = vmatprep.subr.mxu0 0.0
  %2914 = vmatpush2.msra.mxu0 0.0
  %2915 = vmatprep.subr.mxu0 0.0
  %2916 = vmatpush2.msra.mxu0 0.0
  %2917 = vmatprep.subr.mxu0 0.0
  %2918 = vmatpush2.msra.mxu0 0.0
  %2919 = vmatprep.subr.mxu0 0.0
  %2920 = vmatpush2.msra.mxu0 0.0
  %2921 = vmatprep.subr.mxu0 0.0
  %2922 = vmatpush2.msra.mxu0 0.0
  %2923 = vmatprep.subr.mxu0 0.0
  %2924 = vmatpush2.msra.mxu0 0.0
  %2925 = vmatprep.subr.mxu0 0.0
  %2926 = vmatpush2.msra.mxu0 0.0
  %2927 = vmatprep.subr.mxu0 0.0
  %2928 = vmatpush2.msra.mxu0 0.0
  %2929 = vmatprep.mubr.f32.mxu0 0.0
  %2930 = vmatmul.mubr.f32.gmra.mxu0 %v2864
  %v2931 = vpop.f32.mrf.mxu0
  %v2932 = vadd.f32 %v488, %v2931
  %v2933 = vpop.f32.mrf.mxu0
  %v2934 = vadd.f32 %v492, %v2933
  %2935 = vdwg.mxu0
  %v2936 = vmul.f32 %v2932, %v238
  %v2937 = vmul.f32 %v2934, %v239
  %v2938 = vtanh.pop %v2936
  %v2939 = vtanh.pop %v2937
  %v2940 = vmul.f32 %v2938, 0.5
  %v2941 = vmul.f32 %v2939, 0.5
  %v2942 = vadd.f32 %v2940, 0.5
  %v2943 = vadd.f32 %v2941, 0.5
  %v2944 = vmul.f32 %v2942, %v2484
  %v2945 = vmul.f32 %v2942, %v2939
  %2947 = vrot.lane.b32.xlu0 %v2945, 64
  %v2948 = vpop.permute.xlu0 %2947
  %v2950 = vadd.f32 %v2944, %v2948
  %v2951 = vtanh.pop %v2950
  %v2952 = vmul.f32 %v2943, %v2951
  %2954 = vrot.lane.b32.xlu0 %v2486, 64
  %v2955 = vpop.permute.xlu0 %2954
  %v2957 = vsel %vm258, %v2955, %v2579
  %2958 = vmatprep.subr.mxu0 %v806
  %2959 = vmatpush1.msra.mxu0 %v805
  %2960 = vmatprep.subr.mxu0 %v804
  %2961 = vmatpush1.msra.mxu0 %v803
  %2962 = vmatprep.subr.mxu0 %v802
  %2963 = vmatpush1.msra.mxu0 %v801
  %2964 = vmatprep.subr.mxu0 %v800
  %2965 = vmatpush1.msra.mxu0 %v799
  %2966 = vmatprep.subr.mxu0 %v798
  %2967 = vmatpush1.msra.mxu0 %v797
  %2968 = vmatprep.subr.mxu0 %v796
  %2969 = vmatpush1.msra.mxu0 %v795
  %2970 = vmatprep.subr.mxu0 %v794
  %2971 = vmatpush1.msra.mxu0 %v793
  %2972 = vmatprep.subr.mxu0 %v792
  %2973 = vmatpush1.msra.mxu0 %v791
  %2974 = vmatprep.subr.mxu0 %v790
  %2975 = vmatpush1.msra.mxu0 %v789
  %2976 = vmatprep.subr.mxu0 %v788
  %2977 = vmatpush1.msra.mxu0 %v787
  %2978 = vmatprep.subr.mxu0 %v786
  %2979 = vmatpush1.msra.mxu0 %v785
  %2980 = vmatprep.subr.mxu0 %v784
  %2981 = vmatpush1.msra.mxu0 %v783
  %2982 = vmatprep.subr.mxu0 %v782
  %2983 = vmatpush1.msra.mxu0 %v781
  %2984 = vmatprep.subr.mxu0 %v780
  %2985 = vmatpush1.msra.mxu0 %v779
  %2986 = vmatprep.subr.mxu0 %v778
  %2987 = vmatpush1.msra.mxu0 %v777
  %2988 = vmatprep.subr.mxu0 %v776
  %2989 = vmatpush1.msra.mxu0 %v775
  %2990 = vmatprep.subr.mxu0 0.0
  %2991 = vmatpush2.msra.mxu0 0.0
  %2992 = vmatprep.subr.mxu0 0.0
  %2993 = vmatpush2.msra.mxu0 0.0
  %2994 = vmatprep.subr.mxu0 0.0
  %2995 = vmatpush2.msra.mxu0 0.0
  %2996 = vmatprep.subr.mxu0 0.0
  %2997 = vmatpush2.msra.mxu0 0.0
  %2998 = vmatprep.subr.mxu0 0.0
  %2999 = vmatpush2.msra.mxu0 0.0
  %3000 = vmatprep.subr.mxu0 0.0
  %3001 = vmatpush2.msra.mxu0 0.0
  %3002 = vmatprep.subr.mxu0 0.0
  %3003 = vmatpush2.msra.mxu0 0.0
  %3004 = vmatprep.subr.mxu0 0.0
  %3005 = vmatpush2.msra.mxu0 0.0
  %3006 = vmatprep.subr.mxu0 0.0
  %3007 = vmatpush2.msra.mxu0 0.0
  %3008 = vmatprep.subr.mxu0 0.0
  %3009 = vmatpush2.msra.mxu0 0.0
  %3010 = vmatprep.subr.mxu0 0.0
  %3011 = vmatpush2.msra.mxu0 0.0
  %3012 = vmatprep.subr.mxu0 0.0
  %3013 = vmatpush2.msra.mxu0 0.0
  %3014 = vmatprep.subr.mxu0 0.0
  %3015 = vmatpush2.msra.mxu0 0.0
  %3016 = vmatprep.subr.mxu0 0.0
  %3017 = vmatpush2.msra.mxu0 0.0
  %3018 = vmatprep.subr.mxu0 0.0
  %3019 = vmatpush2.msra.mxu0 0.0
  %3020 = vmatprep.subr.mxu0 0.0
  %3021 = vmatpush2.msra.mxu0 0.0
  %3022 = vmatprep.mubr.f32.mxu0 0.0
  %3023 = vmatmul.mubr.f32.gmra.mxu0 %v2957
  %v3024 = vpop.f32.mrf.mxu0
  %v3025 = vadd.f32 %v812, %v3024
  %v3026 = vpop.f32.mrf.mxu0
  %v3027 = vadd.f32 %v816, %v3026
  %3028 = vdwg.mxu0
  %v3029 = vmul.f32 %v3025, %v238
  %v3030 = vmul.f32 %v3027, %v239
  %v3031 = vtanh.pop %v3029
  %v3032 = vtanh.pop %v3030
  %v3033 = vmul.f32 %v3031, 0.5
  %v3034 = vmul.f32 %v3032, 0.5
  %v3035 = vadd.f32 %v3033, 0.5
  %v3036 = vadd.f32 %v3034, 0.5
  %v3037 = vmul.f32 %v3035, %v2577
  %v3038 = vmul.f32 %v3035, %v3032
  %3040 = vrot.lane.b32.xlu0 %v3038, 64
  %v3041 = vpop.permute.xlu0 %3040
  %v3043 = vadd.f32 %v3037, %v3041
  %v3044 = vtanh.pop %v3043
  %v3045 = vmul.f32 %v3036, %v3044
  %3047 = vrot.lane.b32.xlu0 %v2579, 64
  %v3048 = vpop.permute.xlu0 %3047
  %v3050 = vsel %vm258, %v3048, %v2672
  %3051 = vmatprep.subr.mxu0 %v1223
  %3052 = vmatpush1.msra.mxu0 %v1222
  %3053 = vmatprep.subr.mxu0 %v1221
  %3054 = vmatpush1.msra.mxu0 %v1220
  %3055 = vmatprep.subr.mxu0 %v1219
  %3056 = vmatpush1.msra.mxu0 %v1218
  %3057 = vmatprep.subr.mxu0 %v1217
  %3058 = vmatpush1.msra.mxu0 %v1216
  %3059 = vmatprep.subr.mxu0 %v1215
  %3060 = vmatpush1.msra.mxu0 %v1214
  %3061 = vmatprep.subr.mxu0 %v1213
  %3062 = vmatpush1.msra.mxu0 %v1212
  %3063 = vmatprep.subr.mxu0 %v1211
  %3064 = vmatpush1.msra.mxu0 %v1210
  %3065 = vmatprep.subr.mxu0 %v1209
  %3066 = vmatpush1.msra.mxu0 %v1208
  %3067 = vmatprep.subr.mxu0 %v1207
  %3068 = vmatpush1.msra.mxu0 %v1206
  %3069 = vmatprep.subr.mxu0 %v1205
  %3070 = vmatpush1.msra.mxu0 %v1204
  %3071 = vmatprep.subr.mxu0 %v1203
  %3072 = vmatpush1.msra.mxu0 %v1202
  %3073 = vmatprep.subr.mxu0 %v1201
  %3074 = vmatpush1.msra.mxu0 %v1200
  %3075 = vmatprep.subr.mxu0 %v1199
  %3076 = vmatpush1.msra.mxu0 %v1198
  %3077 = vmatprep.subr.mxu0 %v1197
  %3078 = vmatpush1.msra.mxu0 %v1196
  %3079 = vmatprep.subr.mxu0 %v1195
  %3080 = vmatpush1.msra.mxu0 %v1194
  %3081 = vmatprep.subr.mxu0 %v1193
  %3082 = vmatpush1.msra.mxu0 %v1192
  %3083 = vmatprep.subr.mxu0 0.0
  %3084 = vmatpush2.msra.mxu0 0.0
  %3085 = vmatprep.subr.mxu0 0.0
  %3086 = vmatpush2.msra.mxu0 0.0
  %3087 = vmatprep.subr.mxu0 0.0
  %3088 = vmatpush2.msra.mxu0 0.0
  %3089 = vmatprep.subr.mxu0 0.0
  %3090 = vmatpush2.msra.mxu0 0.0
  %3091 = vmatprep.subr.mxu0 0.0
  %3092 = vmatpush2.msra.mxu0 0.0
  %3093 = vmatprep.subr.mxu0 0.0
  %3094 = vmatpush2.msra.mxu0 0.0
  %3095 = vmatprep.subr.mxu0 0.0
  %3096 = vmatpush2.msra.mxu0 0.0
  %3097 = vmatprep.subr.mxu0 0.0
  %3098 = vmatpush2.msra.mxu0 0.0
  %3099 = vmatprep.subr.mxu0 0.0
  %3100 = vmatpush2.msra.mxu0 0.0
  %3101 = vmatprep.subr.mxu0 0.0
  %3102 = vmatpush2.msra.mxu0 0.0
  %3103 = vmatprep.subr.mxu0 0.0
  %3104 = vmatpush2.msra.mxu0 0.0
  %3105 = vmatprep.subr.mxu0 0.0
  %3106 = vmatpush2.msra.mxu0 0.0
  %3107 = vmatprep.subr.mxu0 0.0
  %3108 = vmatpush2.msra.mxu0 0.0
  %3109 = vmatprep.subr.mxu0 0.0
  %3110 = vmatpush2.msra.mxu0 0.0
  %3111 = vmatprep.subr.mxu0 0.0
  %3112 = vmatpush2.msra.mxu0 0.0
  %3113 = vmatprep.subr.mxu0 0.0
  %3114 = vmatpush2.msra.mxu0 0.0
  %3115 = vmatprep.mubr.f32.mxu0 0.0
  %3116 = vmatmul.mubr.f32.gmra.mxu0 %v3050
  %v3117 = vpop.f32.mrf.mxu0
  %v3118 = vadd.f32 %v1229, %v3117
  %v3119 = vpop.f32.mrf.mxu0
  %v3120 = vadd.f32 %v1233, %v3119
  %3121 = vdwg.mxu0
  %v3122 = vmul.f32 %v3118, %v238
  %v3123 = vmul.f32 %v3120, %v239
  %v3124 = vtanh.pop %v3122
  %v3125 = vtanh.pop %v3123
  %v3126 = vmul.f32 %v3124, 0.5
  %v3127 = vmul.f32 %v3125, 0.5
  %v3128 = vadd.f32 %v3126, 0.5
  %v3129 = vadd.f32 %v3127, 0.5
  %v3130 = vmul.f32 %v3128, %v2670
  %v3131 = vmul.f32 %v3128, %v3125
  %3133 = vrot.lane.b32.xlu0 %v3131, 64
  %v3134 = vpop.permute.xlu0 %3133
  %v3136 = vadd.f32 %v3130, %v3134
  %v3137 = vtanh.pop %v3136
  %v3138 = vmul.f32 %v3129, %v3137
  %3140 = vrot.lane.b32.xlu0 %v2672, 64
  %v3141 = vpop.permute.xlu0 %3140
  %v3143 = vsel %vm258, %v3141, %v2765
  %3144 = vmatprep.subr.mxu0 %v1733
  %3145 = vmatpush1.msra.mxu0 %v1732
  %3146 = vmatprep.subr.mxu0 %v1731
  %3147 = vmatpush1.msra.mxu0 %v1730
  %3148 = vmatprep.subr.mxu0 %v1729
  %3149 = vmatpush1.msra.mxu0 %v1728
  %3150 = vmatprep.subr.mxu0 %v1727
  %3151 = vmatpush1.msra.mxu0 %v1726
  %3152 = vmatprep.subr.mxu0 %v1725
  %3153 = vmatpush1.msra.mxu0 %v1724
  %3154 = vmatprep.subr.mxu0 %v1723
  %3155 = vmatpush1.msra.mxu0 %v1722
  %3156 = vmatprep.subr.mxu0 %v1721
  %3157 = vmatpush1.msra.mxu0 %v1720
  %3158 = vmatprep.subr.mxu0 %v1719
  %3159 = vmatpush1.msra.mxu0 %v1718
  %3160 = vmatprep.subr.mxu0 %v1717
  %3161 = vmatpush1.msra.mxu0 %v1716
  %3162 = vmatprep.subr.mxu0 %v1715
  %3163 = vmatpush1.msra.mxu0 %v1714
  %3164 = vmatprep.subr.mxu0 %v1713
  %3165 = vmatpush1.msra.mxu0 %v1712
  %3166 = vmatprep.subr.mxu0 %v1711
  %3167 = vmatpush1.msra.mxu0 %v1710
  %3168 = vmatprep.subr.mxu0 %v1709
  %3169 = vmatpush1.msra.mxu0 %v1708
  %3170 = vmatprep.subr.mxu0 %v1707
  %3171 = vmatpush1.msra.mxu0 %v1706
  %3172 = vmatprep.subr.mxu0 %v1705
  %3173 = vmatpush1.msra.mxu0 %v1704
  %3174 = vmatprep.subr.mxu0 %v1703
  %3175 = vmatpush1.msra.mxu0 %v1702
  %3176 = vmatprep.subr.mxu0 0.0
  %3177 = vmatpush2.msra.mxu0 0.0
  %3178 = vmatprep.subr.mxu0 0.0
  %3179 = vmatpush2.msra.mxu0 0.0
  %3180 = vmatprep.subr.mxu0 0.0
  %3181 = vmatpush2.msra.mxu0 0.0
  %3182 = vmatprep.subr.mxu0 0.0
  %3183 = vmatpush2.msra.mxu0 0.0
  %3184 = vmatprep.subr.mxu0 0.0
  %3185 = vmatpush2.msra.mxu0 0.0
  %3186 = vmatprep.subr.mxu0 0.0
  %3187 = vmatpush2.msra.mxu0 0.0
  %3188 = vmatprep.subr.mxu0 0.0
  %3189 = vmatpush2.msra.mxu0 0.0
  %3190 = vmatprep.subr.mxu0 0.0
  %3191 = vmatpush2.msra.mxu0 0.0
  %3192 = vmatprep.subr.mxu0 0.0
  %3193 = vmatpush2.msra.mxu0 0.0
  %3194 = vmatprep.subr.mxu0 0.0
  %3195 = vmatpush2.msra.mxu0 0.0
  %3196 = vmatprep.subr.mxu0 0.0
  %3197 = vmatpush2.msra.mxu0 0.0
  %3198 = vmatprep.subr.mxu0 0.0
  %3199 = vmatpush2.msra.mxu0 0.0
  %3200 = vmatprep.subr.mxu0 0.0
  %3201 = vmatpush2.msra.mxu0 0.0
  %3202 = vmatprep.subr.mxu0 0.0
  %3203 = vmatpush2.msra.mxu0 0.0
  %3204 = vmatprep.subr.mxu0 0.0
  %3205 = vmatpush2.msra.mxu0 0.0
  %3206 = vmatprep.subr.mxu0 0.0
  %3207 = vmatpush2.msra.mxu0 0.0
  %3208 = vmatprep.mubr.f32.mxu0 0.0
  %3209 = vmatmul.mubr.f32.gmra.mxu0 %v3143
  %v3210 = vpop.f32.mrf.mxu0
  %v3211 = vadd.f32 %v1739, %v3210
  %v3212 = vpop.f32.mrf.mxu0
  %v3213 = vadd.f32 %v1743, %v3212
  %3214 = vdwg.mxu0
  %v3215 = vmul.f32 %v3211, %v238
  %v3216 = vmul.f32 %v3213, %v239
  %v3217 = vtanh.pop %v3215
  %v3218 = vtanh.pop %v3216
  %v3219 = vmul.f32 %v3217, 0.5
  %v3220 = vmul.f32 %v3218, 0.5
  %v3221 = vadd.f32 %v3219, 0.5
  %v3222 = vadd.f32 %v3220, 0.5
  %v3223 = vmul.f32 %v3221, %v2763
  %v3224 = vmul.f32 %v3221, %v3218
  %3226 = vrot.lane.b32.xlu0 %v3224, 64
  %v3227 = vpop.permute.xlu0 %3226
  %v3229 = vadd.f32 %v3223, %v3227
  %v3230 = vtanh.pop %v3229
  %v3231 = vmul.f32 %v3222, %v3230
  %3233 = vrot.lane.b32.xlu0 %v2862, 64
  %v3234 = vpop.permute.xlu0 %3233
  %v3236 = vsel %vm258, %v3234, %v2952
  %3237 = vmatprep.subr.mxu0 %v482
  %3238 = vmatpush1.msra.mxu0 %v481
  %3239 = vmatprep.subr.mxu0 %v480
  %3240 = vmatpush1.msra.mxu0 %v479
  %3241 = vmatprep.subr.mxu0 %v478
  %3242 = vmatpush1.msra.mxu0 %v477
  %3243 = vmatprep.subr.mxu0 %v476
  %3244 = vmatpush1.msra.mxu0 %v475
  %3245 = vmatprep.subr.mxu0 %v474
  %3246 = vmatpush1.msra.mxu0 %v473
  %3247 = vmatprep.subr.mxu0 %v472
  %3248 = vmatpush1.msra.mxu0 %v471
  %3249 = vmatprep.subr.mxu0 %v470
  %3250 = vmatpush1.msra.mxu0 %v469
  %3251 = vmatprep.subr.mxu0 %v468
  %3252 = vmatpush1.msra.mxu0 %v467
  %3253 = vmatprep.subr.mxu0 %v466
  %3254 = vmatpush1.msra.mxu0 %v465
  %3255 = vmatprep.subr.mxu0 %v464
  %3256 = vmatpush1.msra.mxu0 %v463
  %3257 = vmatprep.subr.mxu0 %v462
  %3258 = vmatpush1.msra.mxu0 %v461
  %3259 = vmatprep.subr.mxu0 %v460
  %3260 = vmatpush1.msra.mxu0 %v459
  %3261 = vmatprep.subr.mxu0 %v458
  %3262 = vmatpush1.msra.mxu0 %v457
  %3263 = vmatprep.subr.mxu0 %v456
  %3264 = vmatpush1.msra.mxu0 %v455
  %3265 = vmatprep.subr.mxu0 %v454
  %3266 = vmatpush1.msra.mxu0 %v453
  %3267 = vmatprep.subr.mxu0 %v452
  %3268 = vmatpush1.msra.mxu0 %v451
  %3269 = vmatprep.subr.mxu0 0.0
  %3270 = vmatpush2.msra.mxu0 0.0
  %3271 = vmatprep.subr.mxu0 0.0
  %3272 = vmatpush2.msra.mxu0 0.0
  %3273 = vmatprep.subr.mxu0 0.0
  %3274 = vmatpush2.msra.mxu0 0.0
  %3275 = vmatprep.subr.mxu0 0.0
  %3276 = vmatpush2.msra.mxu0 0.0
  %3277 = vmatprep.subr.mxu0 0.0
  %3278 = vmatpush2.msra.mxu0 0.0
  %3279 = vmatprep.subr.mxu0 0.0
  %3280 = vmatpush2.msra.mxu0 0.0
  %3281 = vmatprep.subr.mxu0 0.0
  %3282 = vmatpush2.msra.mxu0 0.0
  %3283 = vmatprep.subr.mxu0 0.0
  %3284 = vmatpush2.msra.mxu0 0.0
  %3285 = vmatprep.subr.mxu0 0.0
  %3286 = vmatpush2.msra.mxu0 0.0
  %3287 = vmatprep.subr.mxu0 0.0
  %3288 = vmatpush2.msra.mxu0 0.0
  %3289 = vmatprep.subr.mxu0 0.0
  %3290 = vmatpush2.msra.mxu0 0.0
  %3291 = vmatprep.subr.mxu0 0.0
  %3292 = vmatpush2.msra.mxu0 0.0
  %3293 = vmatprep.subr.mxu0 0.0
  %3294 = vmatpush2.msra.mxu0 0.0
  %3295 = vmatprep.subr.mxu0 0.0
  %3296 = vmatpush2.msra.mxu0 0.0
  %3297 = vmatprep.subr.mxu0 0.0
  %3298 = vmatpush2.msra.mxu0 0.0
  %3299 = vmatprep.subr.mxu0 0.0
  %3300 = vmatpush2.msra.mxu0 0.0
  %3301 = vmatprep.mubr.f32.mxu0 0.0
  %3302 = vmatmul.mubr.f32.gmra.mxu0 %v3236
  %v3303 = vpop.f32.mrf.mxu0
  %v3304 = vadd.f32 %v488, %v3303
  %v3305 = vpop.f32.mrf.mxu0
  %v3306 = vadd.f32 %v492, %v3305
  %3307 = vdwg.mxu0
  %v3308 = vmul.f32 %v3304, %v238
  %v3309 = vmul.f32 %v3306, %v239
  %v3310 = vtanh.pop %v3308
  %v3311 = vtanh.pop %v3309
  %v3312 = vmul.f32 %v3310, 0.5
  %v3313 = vmul.f32 %v3311, 0.5
  %v3314 = vadd.f32 %v3312, 0.5
  %v3315 = vadd.f32 %v3313, 0.5
  %v3316 = vmul.f32 %v3314, %v2950
  %v3317 = vmul.f32 %v3314, %v3311
  %3319 = vrot.lane.b32.xlu0 %v3317, 64
  %v3320 = vpop.permute.xlu0 %3319
  %v3322 = vadd.f32 %v3316, %v3320
  %v3323 = vtanh.pop %v3322
  %v3324 = vmul.f32 %v3315, %v3323
  %3326 = vrot.lane.b32.xlu0 %v2952, 64
  %v3327 = vpop.permute.xlu0 %3326
  %v3329 = vsel %vm258, %v3327, %v3045
  %3330 = vmatprep.subr.mxu0 %v806
  %3331 = vmatpush1.msra.mxu0 %v805
  %3332 = vmatprep.subr.mxu0 %v804
  %3333 = vmatpush1.msra.mxu0 %v803
  %3334 = vmatprep.subr.mxu0 %v802
  %3335 = vmatpush1.msra.mxu0 %v801
  %3336 = vmatprep.subr.mxu0 %v800
  %3337 = vmatpush1.msra.mxu0 %v799
  %3338 = vmatprep.subr.mxu0 %v798
  %3339 = vmatpush1.msra.mxu0 %v797
  %3340 = vmatprep.subr.mxu0 %v796
  %3341 = vmatpush1.msra.mxu0 %v795
  %3342 = vmatprep.subr.mxu0 %v794
  %3343 = vmatpush1.msra.mxu0 %v793
  %3344 = vmatprep.subr.mxu0 %v792
  %3345 = vmatpush1.msra.mxu0 %v791
  %3346 = vmatprep.subr.mxu0 %v790
  %3347 = vmatpush1.msra.mxu0 %v789
  %3348 = vmatprep.subr.mxu0 %v788
  %3349 = vmatpush1.msra.mxu0 %v787
  %3350 = vmatprep.subr.mxu0 %v786
  %3351 = vmatpush1.msra.mxu0 %v785
  %3352 = vmatprep.subr.mxu0 %v784
  %3353 = vmatpush1.msra.mxu0 %v783
  %3354 = vmatprep.subr.mxu0 %v782
  %3355 = vmatpush1.msra.mxu0 %v781
  %3356 = vmatprep.subr.mxu0 %v780
  %3357 = vmatpush1.msra.mxu0 %v779
  %3358 = vmatprep.subr.mxu0 %v778
  %3359 = vmatpush1.msra.mxu0 %v777
  %3360 = vmatprep.subr.mxu0 %v776
  %3361 = vmatpush1.msra.mxu0 %v775
  %3362 = vmatprep.subr.mxu0 0.0
  %3363 = vmatpush2.msra.mxu0 0.0
  %3364 = vmatprep.subr.mxu0 0.0
  %3365 = vmatpush2.msra.mxu0 0.0
  %3366 = vmatprep.subr.mxu0 0.0
  %3367 = vmatpush2.msra.mxu0 0.0
  %3368 = vmatprep.subr.mxu0 0.0
  %3369 = vmatpush2.msra.mxu0 0.0
  %3370 = vmatprep.subr.mxu0 0.0
  %3371 = vmatpush2.msra.mxu0 0.0
  %3372 = vmatprep.subr.mxu0 0.0
  %3373 = vmatpush2.msra.mxu0 0.0
  %3374 = vmatprep.subr.mxu0 0.0
  %3375 = vmatpush2.msra.mxu0 0.0
  %3376 = vmatprep.subr.mxu0 0.0
  %3377 = vmatpush2.msra.mxu0 0.0
  %3378 = vmatprep.subr.mxu0 0.0
  %3379 = vmatpush2.msra.mxu0 0.0
  %3380 = vmatprep.subr.mxu0 0.0
  %3381 = vmatpush2.msra.mxu0 0.0
  %3382 = vmatprep.subr.mxu0 0.0
  %3383 = vmatpush2.msra.mxu0 0.0
  %3384 = vmatprep.subr.mxu0 0.0
  %3385 = vmatpush2.msra.mxu0 0.0
  %3386 = vmatprep.subr.mxu0 0.0
  %3387 = vmatpush2.msra.mxu0 0.0
  %3388 = vmatprep.subr.mxu0 0.0
  %3389 = vmatpush2.msra.mxu0 0.0
  %3390 = vmatprep.subr.mxu0 0.0
  %3391 = vmatpush2.msra.mxu0 0.0
  %3392 = vmatprep.subr.mxu0 0.0
  %3393 = vmatpush2.msra.mxu0 0.0
  %3394 = vmatprep.mubr.f32.mxu0 0.0
  %3395 = vmatmul.mubr.f32.gmra.mxu0 %v3329
  %v3396 = vpop.f32.mrf.mxu0
  %v3397 = vadd.f32 %v812, %v3396
  %v3398 = vpop.f32.mrf.mxu0
  %v3399 = vadd.f32 %v816, %v3398
  %3400 = vdwg.mxu0
  %v3401 = vmul.f32 %v3397, %v238
  %v3402 = vmul.f32 %v3399, %v239
  %v3403 = vtanh.pop %v3401
  %v3404 = vtanh.pop %v3402
  %v3405 = vmul.f32 %v3403, 0.5
  %v3406 = vmul.f32 %v3404, 0.5
  %v3407 = vadd.f32 %v3405, 0.5
  %v3408 = vadd.f32 %v3406, 0.5
  %v3409 = vmul.f32 %v3407, %v3043
  %v3410 = vmul.f32 %v3407, %v3404
  %3412 = vrot.lane.b32.xlu0 %v3410, 64
  %v3413 = vpop.permute.xlu0 %3412
  %v3415 = vadd.f32 %v3409, %v3413
  %v3416 = vtanh.pop %v3415
  %v3417 = vmul.f32 %v3408, %v3416
  %3419 = vrot.lane.b32.xlu0 %v3045, 64
  %v3420 = vpop.permute.xlu0 %3419
  %v3422 = vsel %vm258, %v3420, %v3138
  %3423 = vmatprep.subr.mxu0 %v1223
  %3424 = vmatpush1.msra.mxu0 %v1222
  %3425 = vmatprep.subr.mxu0 %v1221
  %3426 = vmatpush1.msra.mxu0 %v1220
  %3427 = vmatprep.subr.mxu0 %v1219
  %3428 = vmatpush1.msra.mxu0 %v1218
  %3429 = vmatprep.subr.mxu0 %v1217
  %3430 = vmatpush1.msra.mxu0 %v1216
  %3431 = vmatprep.subr.mxu0 %v1215
  %3432 = vmatpush1.msra.mxu0 %v1214
  %3433 = vmatprep.subr.mxu0 %v1213
  %3434 = vmatpush1.msra.mxu0 %v1212
  %3435 = vmatprep.subr.mxu0 %v1211
  %3436 = vmatpush1.msra.mxu0 %v1210
  %3437 = vmatprep.subr.mxu0 %v1209
  %3438 = vmatpush1.msra.mxu0 %v1208
  %3439 = vmatprep.subr.mxu0 %v1207
  %3440 = vmatpush1.msra.mxu0 %v1206
  %3441 = vmatprep.subr.mxu0 %v1205
  %3442 = vmatpush1.msra.mxu0 %v1204
  %3443 = vmatprep.subr.mxu0 %v1203
  %3444 = vmatpush1.msra.mxu0 %v1202
  %3445 = vmatprep.subr.mxu0 %v1201
  %3446 = vmatpush1.msra.mxu0 %v1200
  %3447 = vmatprep.subr.mxu0 %v1199
  %3448 = vmatpush1.msra.mxu0 %v1198
  %3449 = vmatprep.subr.mxu0 %v1197
  %3450 = vmatpush1.msra.mxu0 %v1196
  %3451 = vmatprep.subr.mxu0 %v1195
  %3452 = vmatpush1.msra.mxu0 %v1194
  %3453 = vmatprep.subr.mxu0 %v1193
  %3454 = vmatpush1.msra.mxu0 %v1192
  %3455 = vmatprep.subr.mxu0 0.0
  %3456 = vmatpush2.msra.mxu0 0.0
  %3457 = vmatprep.subr.mxu0 0.0
  %3458 = vmatpush2.msra.mxu0 0.0
  %3459 = vmatprep.subr.mxu0 0.0
  %3460 = vmatpush2.msra.mxu0 0.0
  %3461 = vmatprep.subr.mxu0 0.0
  %3462 = vmatpush2.msra.mxu0 0.0
  %3463 = vmatprep.subr.mxu0 0.0
  %3464 = vmatpush2.msra.mxu0 0.0
  %3465 = vmatprep.subr.mxu0 0.0
  %3466 = vmatpush2.msra.mxu0 0.0
  %3467 = vmatprep.subr.mxu0 0.0
  %3468 = vmatpush2.msra.mxu0 0.0
  %3469 = vmatprep.subr.mxu0 0.0
  %3470 = vmatpush2.msra.mxu0 0.0
  %3471 = vmatprep.subr.mxu0 0.0
  %3472 = vmatpush2.msra.mxu0 0.0
  %3473 = vmatprep.subr.mxu0 0.0
  %3474 = vmatpush2.msra.mxu0 0.0
  %3475 = vmatprep.subr.mxu0 0.0
  %3476 = vmatpush2.msra.mxu0 0.0
  %3477 = vmatprep.subr.mxu0 0.0
  %3478 = vmatpush2.msra.mxu0 0.0
  %3479 = vmatprep.subr.mxu0 0.0
  %3480 = vmatpush2.msra.mxu0 0.0
  %3481 = vmatprep.subr.mxu0 0.0
  %3482 = vmatpush2.msra.mxu0 0.0
  %3483 = vmatprep.subr.mxu0 0.0
  %3484 = vmatpush2.msra.mxu0 0.0
  %3485 = vmatprep.subr.mxu0 0.0
  %3486 = vmatpush2.msra.mxu0 0.0
  %3487 = vmatprep.mubr.f32.mxu0 0.0
  %3488 = vmatmul.mubr.f32.gmra.mxu0 %v3422
  %v3489 = vpop.f32.mrf.mxu0
  %v3490 = vadd.f32 %v1229, %v3489
  %v3491 = vpop.f32.mrf.mxu0
  %v3492 = vadd.f32 %v1233, %v3491
  %3493 = vdwg.mxu0
  %v3494 = vmul.f32 %v3490, %v238
  %v3495 = vmul.f32 %v3492, %v239
  %v3496 = vtanh.pop %v3494
  %v3497 = vtanh.pop %v3495
  %v3498 = vmul.f32 %v3496, 0.5
  %v3499 = vmul.f32 %v3497, 0.5
  %v3500 = vadd.f32 %v3498, 0.5
  %v3501 = vadd.f32 %v3499, 0.5
  %v3502 = vmul.f32 %v3500, %v3136
  %v3503 = vmul.f32 %v3500, %v3497
  %3505 = vrot.lane.b32.xlu0 %v3503, 64
  %v3506 = vpop.permute.xlu0 %3505
  %v3508 = vadd.f32 %v3502, %v3506
  %v3509 = vtanh.pop %v3508
  %v3510 = vmul.f32 %v3501, %v3509
  %3512 = vrot.lane.b32.xlu0 %v3138, 64
  %v3513 = vpop.permute.xlu0 %3512
  %v3515 = vsel %vm258, %v3513, %v3231
  %3516 = vmatprep.subr.mxu0 %v1733
  %3517 = vmatpush1.msra.mxu0 %v1732
  %3518 = vmatprep.subr.mxu0 %v1731
  %3519 = vmatpush1.msra.mxu0 %v1730
  %3520 = vmatprep.subr.mxu0 %v1729
  %3521 = vmatpush1.msra.mxu0 %v1728
  %3522 = vmatprep.subr.mxu0 %v1727
  %3523 = vmatpush1.msra.mxu0 %v1726
  %3524 = vmatprep.subr.mxu0 %v1725
  %3525 = vmatpush1.msra.mxu0 %v1724
  %3526 = vmatprep.subr.mxu0 %v1723
  %3527 = vmatpush1.msra.mxu0 %v1722
  %3528 = vmatprep.subr.mxu0 %v1721
  %3529 = vmatpush1.msra.mxu0 %v1720
  %3530 = vmatprep.subr.mxu0 %v1719
  %3531 = vmatpush1.msra.mxu0 %v1718
  %3532 = vmatprep.subr.mxu0 %v1717
  %3533 = vmatpush1.msra.mxu0 %v1716
  %3534 = vmatprep.subr.mxu0 %v1715
  %3535 = vmatpush1.msra.mxu0 %v1714
  %3536 = vmatprep.subr.mxu0 %v1713
  %3537 = vmatpush1.msra.mxu0 %v1712
  %3538 = vmatprep.subr.mxu0 %v1711
  %3539 = vmatpush1.msra.mxu0 %v1710
  %3540 = vmatprep.subr.mxu0 %v1709
  %3541 = vmatpush1.msra.mxu0 %v1708
  %3542 = vmatprep.subr.mxu0 %v1707
  %3543 = vmatpush1.msra.mxu0 %v1706
  %3544 = vmatprep.subr.mxu0 %v1705
  %3545 = vmatpush1.msra.mxu0 %v1704
  %3546 = vmatprep.subr.mxu0 %v1703
  %3547 = vmatpush1.msra.mxu0 %v1702
  %3548 = vmatprep.subr.mxu0 0.0
  %3549 = vmatpush2.msra.mxu0 0.0
  %3550 = vmatprep.subr.mxu0 0.0
  %3551 = vmatpush2.msra.mxu0 0.0
  %3552 = vmatprep.subr.mxu0 0.0
  %3553 = vmatpush2.msra.mxu0 0.0
  %3554 = vmatprep.subr.mxu0 0.0
  %3555 = vmatpush2.msra.mxu0 0.0
  %3556 = vmatprep.subr.mxu0 0.0
  %3557 = vmatpush2.msra.mxu0 0.0
  %3558 = vmatprep.subr.mxu0 0.0
  %3559 = vmatpush2.msra.mxu0 0.0
  %3560 = vmatprep.subr.mxu0 0.0
  %3561 = vmatpush2.msra.mxu0 0.0
  %3562 = vmatprep.subr.mxu0 0.0
  %3563 = vmatpush2.msra.mxu0 0.0
  %3564 = vmatprep.subr.mxu0 0.0
  %3565 = vmatpush2.msra.mxu0 0.0
  %3566 = vmatprep.subr.mxu0 0.0
  %3567 = vmatpush2.msra.mxu0 0.0
  %3568 = vmatprep.subr.mxu0 0.0
  %3569 = vmatpush2.msra.mxu0 0.0
  %3570 = vmatprep.subr.mxu0 0.0
  %3571 = vmatpush2.msra.mxu0 0.0
  %3572 = vmatprep.subr.mxu0 0.0
  %3573 = vmatpush2.msra.mxu0 0.0
  %3574 = vmatprep.subr.mxu0 0.0
  %3575 = vmatpush2.msra.mxu0 0.0
  %3576 = vmatprep.subr.mxu0 0.0
  %3577 = vmatpush2.msra.mxu0 0.0
  %3578 = vmatprep.subr.mxu0 0.0
  %3579 = vmatpush2.msra.mxu0 0.0
  %3580 = vmatprep.mubr.f32.mxu0 0.0
  %3581 = vmatmul.mubr.f32.gmra.mxu0 %v3515
  %v3582 = vpop.f32.mrf.mxu0
  %v3583 = vadd.f32 %v1739, %v3582
  %v3584 = vpop.f32.mrf.mxu0
  %v3585 = vadd.f32 %v1743, %v3584
  %3586 = vdwg.mxu0
  %v3587 = vmul.f32 %v3583, %v238
  %v3588 = vmul.f32 %v3585, %v239
  %v3589 = vtanh.pop %v3587
  %v3590 = vtanh.pop %v3588
  %v3591 = vmul.f32 %v3589, 0.5
  %v3592 = vmul.f32 %v3590, 0.5
  %v3593 = vadd.f32 %v3591, 0.5
  %v3594 = vadd.f32 %v3592, 0.5
  %v3595 = vmul.f32 %v3593, %v3229
  %v3596 = vmul.f32 %v3593, %v3590
  %3598 = vrot.lane.b32.xlu0 %v3596, 64
  %v3599 = vpop.permute.xlu0 %3598
  %v3601 = vadd.f32 %v3595, %v3599
  %v3602 = vtanh.pop %v3601
  %v3603 = vmul.f32 %v3594, %v3602
  %3605 = vrot.lane.b32.xlu0 %v3324, 64
  %v3606 = vpop.permute.xlu0 %3605
  %v3608 = vsel %vm258, %v3606, %v3417
  %3609 = vmatprep.subr.mxu0 %v806
  %3610 = vmatpush1.msra.mxu0 %v805
  %3611 = vmatprep.subr.mxu0 %v804
  %3612 = vmatpush1.msra.mxu0 %v803
  %3613 = vmatprep.subr.mxu0 %v802
  %3614 = vmatpush1.msra.mxu0 %v801
  %3615 = vmatprep.subr.mxu0 %v800
  %3616 = vmatpush1.msra.mxu0 %v799
  %3617 = vmatprep.subr.mxu0 %v798
  %3618 = vmatpush1.msra.mxu0 %v797
  %3619 = vmatprep.subr.mxu0 %v796
  %3620 = vmatpush1.msra.mxu0 %v795
  %3621 = vmatprep.subr.mxu0 %v794
  %3622 = vmatpush1.msra.mxu0 %v793
  %3623 = vmatprep.subr.mxu0 %v792
  %3624 = vmatpush1.msra.mxu0 %v791
  %3625 = vmatprep.subr.mxu0 %v790
  %3626 = vmatpush1.msra.mxu0 %v789
  %3627 = vmatprep.subr.mxu0 %v788
  %3628 = vmatpush1.msra.mxu0 %v787
  %3629 = vmatprep.subr.mxu0 %v786
  %3630 = vmatpush1.msra.mxu0 %v785
  %3631 = vmatprep.subr.mxu0 %v784
  %3632 = vmatpush1.msra.mxu0 %v783
  %3633 = vmatprep.subr.mxu0 %v782
  %3634 = vmatpush1.msra.mxu0 %v781
  %3635 = vmatprep.subr.mxu0 %v780
  %3636 = vmatpush1.msra.mxu0 %v779
  %3637 = vmatprep.subr.mxu0 %v778
  %3638 = vmatpush1.msra.mxu0 %v777
  %3639 = vmatprep.subr.mxu0 %v776
  %3640 = vmatpush1.msra.mxu0 %v775
  %3641 = vmatprep.subr.mxu0 0.0
  %3642 = vmatpush2.msra.mxu0 0.0
  %3643 = vmatprep.subr.mxu0 0.0
  %3644 = vmatpush2.msra.mxu0 0.0
  %3645 = vmatprep.subr.mxu0 0.0
  %3646 = vmatpush2.msra.mxu0 0.0
  %3647 = vmatprep.subr.mxu0 0.0
  %3648 = vmatpush2.msra.mxu0 0.0
  %3649 = vmatprep.subr.mxu0 0.0
  %3650 = vmatpush2.msra.mxu0 0.0
  %3651 = vmatprep.subr.mxu0 0.0
  %3652 = vmatpush2.msra.mxu0 0.0
  %3653 = vmatprep.subr.mxu0 0.0
  %3654 = vmatpush2.msra.mxu0 0.0
  %3655 = vmatprep.subr.mxu0 0.0
  %3656 = vmatpush2.msra.mxu0 0.0
  %3657 = vmatprep.subr.mxu0 0.0
  %3658 = vmatpush2.msra.mxu0 0.0
  %3659 = vmatprep.subr.mxu0 0.0
  %3660 = vmatpush2.msra.mxu0 0.0
  %3661 = vmatprep.subr.mxu0 0.0
  %3662 = vmatpush2.msra.mxu0 0.0
  %3663 = vmatprep.subr.mxu0 0.0
  %3664 = vmatpush2.msra.mxu0 0.0
  %3665 = vmatprep.subr.mxu0 0.0
  %3666 = vmatpush2.msra.mxu0 0.0
  %3667 = vmatprep.subr.mxu0 0.0
  %3668 = vmatpush2.msra.mxu0 0.0
  %3669 = vmatprep.subr.mxu0 0.0
  %3670 = vmatpush2.msra.mxu0 0.0
  %3671 = vmatprep.subr.mxu0 0.0
  %3672 = vmatpush2.msra.mxu0 0.0
  %3673 = vmatprep.mubr.f32.mxu0 0.0
  %3674 = vmatmul.mubr.f32.gmra.mxu0 %v3608
  %v3675 = vpop.f32.mrf.mxu0
  %v3676 = vadd.f32 %v812, %v3675
  %v3677 = vpop.f32.mrf.mxu0
  %v3678 = vadd.f32 %v816, %v3677
  %3679 = vdwg.mxu0
  %v3680 = vmul.f32 %v3676, %v238
  %v3681 = vmul.f32 %v3678, %v239
  %v3682 = vtanh.pop %v3680
  %v3683 = vtanh.pop %v3681
  %v3684 = vmul.f32 %v3682, 0.5
  %v3685 = vmul.f32 %v3683, 0.5
  %v3686 = vadd.f32 %v3684, 0.5
  %v3687 = vadd.f32 %v3685, 0.5
  %v3688 = vmul.f32 %v3686, %v3415
  %v3689 = vmul.f32 %v3686, %v3683
  %3691 = vrot.lane.b32.xlu0 %v3689, 64
  %v3692 = vpop.permute.xlu0 %3691
  %v3694 = vadd.f32 %v3688, %v3692
  %v3695 = vtanh.pop %v3694
  %v3696 = vmul.f32 %v3687, %v3695
  %3698 = vrot.lane.b32.xlu0 %v3417, 64
  %v3699 = vpop.permute.xlu0 %3698
  %v3701 = vsel %vm258, %v3699, %v3510
  %3702 = vmatprep.subr.mxu0 %v1223
  %3703 = vmatpush1.msra.mxu0 %v1222
  %3704 = vmatprep.subr.mxu0 %v1221
  %3705 = vmatpush1.msra.mxu0 %v1220
  %3706 = vmatprep.subr.mxu0 %v1219
  %3707 = vmatpush1.msra.mxu0 %v1218
  %3708 = vmatprep.subr.mxu0 %v1217
  %3709 = vmatpush1.msra.mxu0 %v1216
  %3710 = vmatprep.subr.mxu0 %v1215
  %3711 = vmatpush1.msra.mxu0 %v1214
  %3712 = vmatprep.subr.mxu0 %v1213
  %3713 = vmatpush1.msra.mxu0 %v1212
  %3714 = vmatprep.subr.mxu0 %v1211
  %3715 = vmatpush1.msra.mxu0 %v1210
  %3716 = vmatprep.subr.mxu0 %v1209
  %3717 = vmatpush1.msra.mxu0 %v1208
  %3718 = vmatprep.subr.mxu0 %v1207
  %3719 = vmatpush1.msra.mxu0 %v1206
  %3720 = vmatprep.subr.mxu0 %v1205
  %3721 = vmatpush1.msra.mxu0 %v1204
  %3722 = vmatprep.subr.mxu0 %v1203
  %3723 = vmatpush1.msra.mxu0 %v1202
  %3724 = vmatprep.subr.mxu0 %v1201
  %3725 = vmatpush1.msra.mxu0 %v1200
  %3726 = vmatprep.subr.mxu0 %v1199
  %3727 = vmatpush1.msra.mxu0 %v1198
  %3728 = vmatprep.subr.mxu0 %v1197
  %3729 = vmatpush1.msra.mxu0 %v1196
  %3730 = vmatprep.subr.mxu0 %v1195
  %3731 = vmatpush1.msra.mxu0 %v1194
  %3732 = vmatprep.subr.mxu0 %v1193
  %3733 = vmatpush1.msra.mxu0 %v1192
  %3734 = vmatprep.subr.mxu0 0.0
  %3735 = vmatpush2.msra.mxu0 0.0
  %3736 = vmatprep.subr.mxu0 0.0
  %3737 = vmatpush2.msra.mxu0 0.0
  %3738 = vmatprep.subr.mxu0 0.0
  %3739 = vmatpush2.msra.mxu0 0.0
  %3740 = vmatprep.subr.mxu0 0.0
  %3741 = vmatpush2.msra.mxu0 0.0
  %3742 = vmatprep.subr.mxu0 0.0
  %3743 = vmatpush2.msra.mxu0 0.0
  %3744 = vmatprep.subr.mxu0 0.0
  %3745 = vmatpush2.msra.mxu0 0.0
  %3746 = vmatprep.subr.mxu0 0.0
  %3747 = vmatpush2.msra.mxu0 0.0
  %3748 = vmatprep.subr.mxu0 0.0
  %3749 = vmatpush2.msra.mxu0 0.0
  %3750 = vmatprep.subr.mxu0 0.0
  %3751 = vmatpush2.msra.mxu0 0.0
  %3752 = vmatprep.subr.mxu0 0.0
  %3753 = vmatpush2.msra.mxu0 0.0
  %3754 = vmatprep.subr.mxu0 0.0
  %3755 = vmatpush2.msra.mxu0 0.0
  %3756 = vmatprep.subr.mxu0 0.0
  %3757 = vmatpush2.msra.mxu0 0.0
  %3758 = vmatprep.subr.mxu0 0.0
  %3759 = vmatpush2.msra.mxu0 0.0
  %3760 = vmatprep.subr.mxu0 0.0
  %3761 = vmatpush2.msra.mxu0 0.0
  %3762 = vmatprep.subr.mxu0 0.0
  %3763 = vmatpush2.msra.mxu0 0.0
  %3764 = vmatprep.subr.mxu0 0.0
  %3765 = vmatpush2.msra.mxu0 0.0
  %3766 = vmatprep.mubr.f32.mxu0 0.0
  %3767 = vmatmul.mubr.f32.gmra.mxu0 %v3701
  %v3768 = vpop.f32.mrf.mxu0
  %v3769 = vadd.f32 %v1229, %v3768
  %v3770 = vpop.f32.mrf.mxu0
  %v3771 = vadd.f32 %v1233, %v3770
  %3772 = vdwg.mxu0
  %v3773 = vmul.f32 %v3769, %v238
  %v3774 = vmul.f32 %v3771, %v239
  %v3775 = vtanh.pop %v3773
  %v3776 = vtanh.pop %v3774
  %v3777 = vmul.f32 %v3775, 0.5
  %v3778 = vmul.f32 %v3776, 0.5
  %v3779 = vadd.f32 %v3777, 0.5
  %v3780 = vadd.f32 %v3778, 0.5
  %v3781 = vmul.f32 %v3779, %v3508
  %v3782 = vmul.f32 %v3779, %v3776
  %3784 = vrot.lane.b32.xlu0 %v3782, 64
  %v3785 = vpop.permute.xlu0 %3784
  %v3787 = vadd.f32 %v3781, %v3785
  %v3788 = vtanh.pop %v3787
  %v3789 = vmul.f32 %v3780, %v3788
  %3791 = vrot.lane.b32.xlu0 %v3510, 64
  %v3792 = vpop.permute.xlu0 %3791
  %v3794 = vsel %vm258, %v3792, %v3603
  %3795 = vmatprep.subr.mxu0 %v1733
  %3796 = vmatpush1.msra.mxu0 %v1732
  %3797 = vmatprep.subr.mxu0 %v1731
  %3798 = vmatpush1.msra.mxu0 %v1730
  %3799 = vmatprep.subr.mxu0 %v1729
  %3800 = vmatpush1.msra.mxu0 %v1728
  %3801 = vmatprep.subr.mxu0 %v1727
  %3802 = vmatpush1.msra.mxu0 %v1726
  %3803 = vmatprep.subr.mxu0 %v1725
  %3804 = vmatpush1.msra.mxu0 %v1724
  %3805 = vmatprep.subr.mxu0 %v1723
  %3806 = vmatpush1.msra.mxu0 %v1722
  %3807 = vmatprep.subr.mxu0 %v1721
  %3808 = vmatpush1.msra.mxu0 %v1720
  %3809 = vmatprep.subr.mxu0 %v1719
  %3810 = vmatpush1.msra.mxu0 %v1718
  %3811 = vmatprep.subr.mxu0 %v1717
  %3812 = vmatpush1.msra.mxu0 %v1716
  %3813 = vmatprep.subr.mxu0 %v1715
  %3814 = vmatpush1.msra.mxu0 %v1714
  %3815 = vmatprep.subr.mxu0 %v1713
  %3816 = vmatpush1.msra.mxu0 %v1712
  %3817 = vmatprep.subr.mxu0 %v1711
  %3818 = vmatpush1.msra.mxu0 %v1710
  %3819 = vmatprep.subr.mxu0 %v1709
  %3820 = vmatpush1.msra.mxu0 %v1708
  %3821 = vmatprep.subr.mxu0 %v1707
  %3822 = vmatpush1.msra.mxu0 %v1706
  %3823 = vmatprep.subr.mxu0 %v1705
  %3824 = vmatpush1.msra.mxu0 %v1704
  %3825 = vmatprep.subr.mxu0 %v1703
  %3826 = vmatpush1.msra.mxu0 %v1702
  %3827 = vmatprep.subr.mxu0 0.0
  %3828 = vmatpush2.msra.mxu0 0.0
  %3829 = vmatprep.subr.mxu0 0.0
  %3830 = vmatpush2.msra.mxu0 0.0
  %3831 = vmatprep.subr.mxu0 0.0
  %3832 = vmatpush2.msra.mxu0 0.0
  %3833 = vmatprep.subr.mxu0 0.0
  %3834 = vmatpush2.msra.mxu0 0.0
  %3835 = vmatprep.subr.mxu0 0.0
  %3836 = vmatpush2.msra.mxu0 0.0
  %3837 = vmatprep.subr.mxu0 0.0
  %3838 = vmatpush2.msra.mxu0 0.0
  %3839 = vmatprep.subr.mxu0 0.0
  %3840 = vmatpush2.msra.mxu0 0.0
  %3841 = vmatprep.subr.mxu0 0.0
  %3842 = vmatpush2.msra.mxu0 0.0
  %3843 = vmatprep.subr.mxu0 0.0
  %3844 = vmatpush2.msra.mxu0 0.0
  %3845 = vmatprep.subr.mxu0 0.0
  %3846 = vmatpush2.msra.mxu0 0.0
  %3847 = vmatprep.subr.mxu0 0.0
  %3848 = vmatpush2.msra.mxu0 0.0
  %3849 = vmatprep.subr.mxu0 0.0
  %3850 = vmatpush2.msra.mxu0 0.0
  %3851 = vmatprep.subr.mxu0 0.0
  %3852 = vmatpush2.msra.mxu0 0.0
  %3853 = vmatprep.subr.mxu0 0.0
  %3854 = vmatpush2.msra.mxu0 0.0
  %3855 = vmatprep.subr.mxu0 0.0
  %3856 = vmatpush2.msra.mxu0 0.0
  %3857 = vmatprep.subr.mxu0 0.0
  %3858 = vmatpush2.msra.mxu0 0.0
  %3859 = vmatprep.mubr.f32.mxu0 0.0
  %3860 = vmatmul.mubr.f32.gmra.mxu0 %v3794
  %v3861 = vpop.f32.mrf.mxu0
  %v3862 = vadd.f32 %v1739, %v3861
  %v3863 = vpop.f32.mrf.mxu0
  %v3864 = vadd.f32 %v1743, %v3863
  %3865 = vdwg.mxu0
  %v3866 = vmul.f32 %v3862, %v238
  %v3867 = vmul.f32 %v3864, %v239
  %v3868 = vtanh.pop %v3866
  %v3869 = vtanh.pop %v3867
  %v3870 = vmul.f32 %v3868, 0.5
  %v3871 = vmul.f32 %v3869, 0.5
  %v3872 = vadd.f32 %v3870, 0.5
  %v3873 = vadd.f32 %v3871, 0.5
  %v3874 = vmul.f32 %v3872, %v3601
  %v3875 = vmul.f32 %v3872, %v3869
  %3877 = vrot.lane.b32.xlu0 %v3875, 64
  %v3878 = vpop.permute.xlu0 %3877
  %v3880 = vadd.f32 %v3874, %v3878
  %v3881 = vtanh.pop %v3880
  %v3882 = vmul.f32 %v3873, %v3881
  %3884 = vrot.lane.b32.xlu0 %v3696, 64
  %v3885 = vpop.permute.xlu0 %3884
  %v3887 = vsel %vm258, %v3885, %v3789
  %3888 = vmatprep.subr.mxu0 %v1223
  %3889 = vmatpush1.msra.mxu0 %v1222
  %3890 = vmatprep.subr.mxu0 %v1221
  %3891 = vmatpush1.msra.mxu0 %v1220
  %3892 = vmatprep.subr.mxu0 %v1219
  %3893 = vmatpush1.msra.mxu0 %v1218
  %3894 = vmatprep.subr.mxu0 %v1217
  %3895 = vmatpush1.msra.mxu0 %v1216
  %3896 = vmatprep.subr.mxu0 %v1215
  %3897 = vmatpush1.msra.mxu0 %v1214
  %3898 = vmatprep.subr.mxu0 %v1213
  %3899 = vmatpush1.msra.mxu0 %v1212
  %3900 = vmatprep.subr.mxu0 %v1211
  %3901 = vmatpush1.msra.mxu0 %v1210
  %3902 = vmatprep.subr.mxu0 %v1209
  %3903 = vmatpush1.msra.mxu0 %v1208
  %3904 = vmatprep.subr.mxu0 %v1207
  %3905 = vmatpush1.msra.mxu0 %v1206
  %3906 = vmatprep.subr.mxu0 %v1205
  %3907 = vmatpush1.msra.mxu0 %v1204
  %3908 = vmatprep.subr.mxu0 %v1203
  %3909 = vmatpush1.msra.mxu0 %v1202
  %3910 = vmatprep.subr.mxu0 %v1201
  %3911 = vmatpush1.msra.mxu0 %v1200
  %3912 = vmatprep.subr.mxu0 %v1199
  %3913 = vmatpush1.msra.mxu0 %v1198
  %3914 = vmatprep.subr.mxu0 %v1197
  %3915 = vmatpush1.msra.mxu0 %v1196
  %3916 = vmatprep.subr.mxu0 %v1195
  %3917 = vmatpush1.msra.mxu0 %v1194
  %3918 = vmatprep.subr.mxu0 %v1193
  %3919 = vmatpush1.msra.mxu0 %v1192
  %3920 = vmatprep.subr.mxu0 0.0
  %3921 = vmatpush2.msra.mxu0 0.0
  %3922 = vmatprep.subr.mxu0 0.0
  %3923 = vmatpush2.msra.mxu0 0.0
  %3924 = vmatprep.subr.mxu0 0.0
  %3925 = vmatpush2.msra.mxu0 0.0
  %3926 = vmatprep.subr.mxu0 0.0
  %3927 = vmatpush2.msra.mxu0 0.0
  %3928 = vmatprep.subr.mxu0 0.0
  %3929 = vmatpush2.msra.mxu0 0.0
  %3930 = vmatprep.subr.mxu0 0.0
  %3931 = vmatpush2.msra.mxu0 0.0
  %3932 = vmatprep.subr.mxu0 0.0
  %3933 = vmatpush2.msra.mxu0 0.0
  %3934 = vmatprep.subr.mxu0 0.0
  %3935 = vmatpush2.msra.mxu0 0.0
  %3936 = vmatprep.subr.mxu0 0.0
  %3937 = vmatpush2.msra.mxu0 0.0
  %3938 = vmatprep.subr.mxu0 0.0
  %3939 = vmatpush2.msra.mxu0 0.0
  %3940 = vmatprep.subr.mxu0 0.0
  %3941 = vmatpush2.msra.mxu0 0.0
  %3942 = vmatprep.subr.mxu0 0.0
  %3943 = vmatpush2.msra.mxu0 0.0
  %3944 = vmatprep.subr.mxu0 0.0
  %3945 = vmatpush2.msra.mxu0 0.0
  %3946 = vmatprep.subr.mxu0 0.0
  %3947 = vmatpush2.msra.mxu0 0.0
  %3948 = vmatprep.subr.mxu0 0.0
  %3949 = vmatpush2.msra.mxu0 0.0
  %3950 = vmatprep.subr.mxu0 0.0
  %3951 = vmatpush2.msra.mxu0 0.0
  %3952 = vmatprep.mubr.f32.mxu0 0.0
  %3953 = vmatmul.mubr.f32.gmra.mxu0 %v3887
  %v3954 = vpop.f32.mrf.mxu0
  %v3955 = vadd.f32 %v1229, %v3954
  %v3956 = vpop.f32.mrf.mxu0
  %v3957 = vadd.f32 %v1233, %v3956
  %3958 = vdwg.mxu0
  %v3959 = vmul.f32 %v3955, %v238
  %v3960 = vmul.f32 %v3957, %v239
  %v3961 = vtanh.pop %v3959
  %v3962 = vtanh.pop %v3960
  %v3963 = vmul.f32 %v3961, 0.5
  %v3964 = vmul.f32 %v3962, 0.5
  %v3965 = vadd.f32 %v3963, 0.5
  %v3966 = vadd.f32 %v3964, 0.5
  %v3967 = vmul.f32 %v3965, %v3787
  %v3968 = vmul.f32 %v3965, %v3962
  %3970 = vrot.lane.b32.xlu0 %v3968, 64
  %v3971 = vpop.permute.xlu0 %3970
  %v3973 = vadd.f32 %v3967, %v3971
  %v3974 = vtanh.pop %v3973
  %v3975 = vmul.f32 %v3966, %v3974
  %3977 = vrot.lane.b32.xlu0 %v3789, 64
  %v3978 = vpop.permute.xlu0 %3977
  %v3980 = vsel %vm258, %v3978, %v3882
  %3981 = vmatprep.subr.mxu0 %v1733
  %3982 = vmatpush1.msra.mxu0 %v1732
  %3983 = vmatprep.subr.mxu0 %v1731
  %3984 = vmatpush1.msra.mxu0 %v1730
  %3985 = vmatprep.subr.mxu0 %v1729
  %3986 = vmatpush1.msra.mxu0 %v1728
  %3987 = vmatprep.subr.mxu0 %v1727
  %3988 = vmatpush1.msra.mxu0 %v1726
  %3989 = vmatprep.subr.mxu0 %v1725
  %3990 = vmatpush1.msra.mxu0 %v1724
  %3991 = vmatprep.subr.mxu0 %v1723
  %3992 = vmatpush1.msra.mxu0 %v1722
  %3993 = vmatprep.subr.mxu0 %v1721
  %3994 = vmatpush1.msra.mxu0 %v1720
  %3995 = vmatprep.subr.mxu0 %v1719
  %3996 = vmatpush1.msra.mxu0 %v1718
  %3997 = vmatprep.subr.mxu0 %v1717
  %3998 = vmatpush1.msra.mxu0 %v1716
  %3999 = vmatprep.subr.mxu0 %v1715
  %4000 = vmatpush1.msra.mxu0 %v1714
  %4001 = vmatprep.subr.mxu0 %v1713
  %4002 = vmatpush1.msra.mxu0 %v1712
  %4003 = vmatprep.subr.mxu0 %v1711
  %4004 = vmatpush1.msra.mxu0 %v1710
  %4005 = vmatprep.subr.mxu0 %v1709
  %4006 = vmatpush1.msra.mxu0 %v1708
  %4007 = vmatprep.subr.mxu0 %v1707
  %4008 = vmatpush1.msra.mxu0 %v1706
  %4009 = vmatprep.subr.mxu0 %v1705
  %4010 = vmatpush1.msra.mxu0 %v1704
  %4011 = vmatprep.subr.mxu0 %v1703
  %4012 = vmatpush1.msra.mxu0 %v1702
  %4013 = vmatprep.subr.mxu0 0.0
  %4014 = vmatpush2.msra.mxu0 0.0
  %4015 = vmatprep.subr.mxu0 0.0
  %4016 = vmatpush2.msra.mxu0 0.0
  %4017 = vmatprep.subr.mxu0 0.0
  %4018 = vmatpush2.msra.mxu0 0.0
  %4019 = vmatprep.subr.mxu0 0.0
  %4020 = vmatpush2.msra.mxu0 0.0
  %4021 = vmatprep.subr.mxu0 0.0
  %4022 = vmatpush2.msra.mxu0 0.0
  %4023 = vmatprep.subr.mxu0 0.0
  %4024 = vmatpush2.msra.mxu0 0.0
  %4025 = vmatprep.subr.mxu0 0.0
  %4026 = vmatpush2.msra.mxu0 0.0
  %4027 = vmatprep.subr.mxu0 0.0
  %4028 = vmatpush2.msra.mxu0 0.0
  %4029 = vmatprep.subr.mxu0 0.0
  %4030 = vmatpush2.msra.mxu0 0.0
  %4031 = vmatprep.subr.mxu0 0.0
  %4032 = vmatpush2.msra.mxu0 0.0
  %4033 = vmatprep.subr.mxu0 0.0
  %4034 = vmatpush2.msra.mxu0 0.0
  %4035 = vmatprep.subr.mxu0 0.0
  %4036 = vmatpush2.msra.mxu0 0.0
  %4037 = vmatprep.subr.mxu0 0.0
  %4038 = vmatpush2.msra.mxu0 0.0
  %4039 = vmatprep.subr.mxu0 0.0
  %4040 = vmatpush2.msra.mxu0 0.0
  %4041 = vmatprep.subr.mxu0 0.0
  %4042 = vmatpush2.msra.mxu0 0.0
  %4043 = vmatprep.subr.mxu0 0.0
  %4044 = vmatpush2.msra.mxu0 0.0
  %4045 = vmatprep.mubr.f32.mxu0 0.0
  %4046 = vmatmul.mubr.f32.gmra.mxu0 %v3980
  %v4047 = vpop.f32.mrf.mxu0
  %v4048 = vadd.f32 %v1739, %v4047
  %v4049 = vpop.f32.mrf.mxu0
  %v4050 = vadd.f32 %v1743, %v4049
  %4051 = vdwg.mxu0
  %v4052 = vmul.f32 %v4048, %v238
  %v4053 = vmul.f32 %v4050, %v239
  %v4054 = vtanh.pop %v4052
  %v4055 = vtanh.pop %v4053
  %v4056 = vmul.f32 %v4054, 0.5
  %v4057 = vmul.f32 %v4055, 0.5
  %v4058 = vadd.f32 %v4056, 0.5
  %v4059 = vadd.f32 %v4057, 0.5
  %v4060 = vmul.f32 %v4058, %v3880
  %v4061 = vmul.f32 %v4058, %v4055
  %4063 = vrot.lane.b32.xlu0 %v4061, 64
  %v4064 = vpop.permute.xlu0 %4063
  %v4066 = vadd.f32 %v4060, %v4064
  %v4067 = vtanh.pop %v4066
  %v4068 = vmul.f32 %v4059, %v4067
  %4070 = vrot.lane.b32.xlu0 %v3975, 64
  %v4071 = vpop.permute.xlu0 %4070
  %v4073 = vsel %vm258, %v4071, %v4068
  %4074 = vmatprep.subr.mxu0 %v1733
  %4075 = vmatpush1.msra.mxu0 %v1732
  %4076 = vmatprep.subr.mxu0 %v1731
  %4077 = vmatpush1.msra.mxu0 %v1730
  %4078 = vmatprep.subr.mxu0 %v1729
  %4079 = vmatpush1.msra.mxu0 %v1728
  %4080 = vmatprep.subr.mxu0 %v1727
  %4081 = vmatpush1.msra.mxu0 %v1726
  %4082 = vmatprep.subr.mxu0 %v1725
  %4083 = vmatpush1.msra.mxu0 %v1724
  %4084 = vmatprep.subr.mxu0 %v1723
  %4085 = vmatpush1.msra.mxu0 %v1722
  %4086 = vmatprep.subr.mxu0 %v1721
  %4087 = vmatpush1.msra.mxu0 %v1720
  %4088 = vmatprep.subr.mxu0 %v1719
  %4089 = vmatpush1.msra.mxu0 %v1718
  %4090 = vmatprep.subr.mxu0 %v1717
  %4091 = vmatpush1.msra.mxu0 %v1716
  %4092 = vmatprep.subr.mxu0 %v1715
  %4093 = vmatpush1.msra.mxu0 %v1714
  %4094 = vmatprep.subr.mxu0 %v1713
  %4095 = vmatpush1.msra.mxu0 %v1712
  %4096 = vmatprep.subr.mxu0 %v1711
  %4097 = vmatpush1.msra.mxu0 %v1710
  %4098 = vmatprep.subr.mxu0 %v1709
  %4099 = vmatpush1.msra.mxu0 %v1708
  %4100 = vmatprep.subr.mxu0 %v1707
  %4101 = vmatpush1.msra.mxu0 %v1706
  %4102 = vmatprep.subr.mxu0 %v1705
  %4103 = vmatpush1.msra.mxu0 %v1704
  %4104 = vmatprep.subr.mxu0 %v1703
  %4105 = vmatpush1.msra.mxu0 %v1702
  %4106 = vmatprep.subr.mxu0 0.0
  %4107 = vmatpush2.msra.mxu0 0.0
  %4108 = vmatprep.subr.mxu0 0.0
  %4109 = vmatpush2.msra.mxu0 0.0
  %4110 = vmatprep.subr.mxu0 0.0
  %4111 = vmatpush2.msra.mxu0 0.0
  %4112 = vmatprep.subr.mxu0 0.0
  %4113 = vmatpush2.msra.mxu0 0.0
  %4114 = vmatprep.subr.mxu0 0.0
  %4115 = vmatpush2.msra.mxu0 0.0
  %4116 = vmatprep.subr.mxu0 0.0
  %4117 = vmatpush2.msra.mxu0 0.0
  %4118 = vmatprep.subr.mxu0 0.0
  %4119 = vmatpush2.msra.mxu0 0.0
  %4120 = vmatprep.subr.mxu0 0.0
  %4121 = vmatpush2.msra.mxu0 0.0
  %4122 = vmatprep.subr.mxu0 0.0
  %4123 = vmatpush2.msra.mxu0 0.0
  %4124 = vmatprep.subr.mxu0 0.0
  %4125 = vmatpush2.msra.mxu0 0.0
  %4126 = vmatprep.subr.mxu0 0.0
  %4127 = vmatpush2.msra.mxu0 0.0
  %4128 = vmatprep.subr.mxu0 0.0
  %4129 = vmatpush2.msra.mxu0 0.0
  %4130 = vmatprep.subr.mxu0 0.0
  %4131 = vmatpush2.msra.mxu0 0.0
  %4132 = vmatprep.subr.mxu0 0.0
  %4133 = vmatpush2.msra.mxu0 0.0
  %4134 = vmatprep.subr.mxu0 0.0
  %4135 = vmatpush2.msra.mxu0 0.0
  %4136 = vmatprep.subr.mxu0 0.0
  %4137 = vmatpush2.msra.mxu0 0.0
  %4138 = vmatprep.mubr.f32.mxu0 0.0
  %4139 = vmatmul.mubr.f32.gmra.mxu0 %v4073
  %v4140 = vpop.f32.mrf.mxu0
  %v4141 = vadd.f32 %v1739, %v4140
  %v4142 = vpop.f32.mrf.mxu0
  %v4143 = vadd.f32 %v1743, %v4142
  %4144 = vdwg.mxu0
  %v4145 = vmul.f32 %v4141, %v238
  %v4146 = vmul.f32 %v4143, %v239
  %v4147 = vtanh.pop %v4145
  %v4148 = vtanh.pop %v4146
  %v4149 = vmul.f32 %v4147, 0.5
  %v4150 = vmul.f32 %v4148, 0.5
  %v4151 = vadd.f32 %v4149, 0.5
  %v4152 = vadd.f32 %v4150, 0.5
  %v4153 = vmul.f32 %v4151, %v4066
  %v4154 = vmul.f32 %v4151, %v4148
  %4156 = vrot.lane.b32.xlu0 %v4154, 64
  %v4157 = vpop.permute.xlu0 %4156
  %v4159 = vadd.f32 %v4153, %v4157
  %v4160 = vtanh.pop %v4159
  %v4161 = vmul.f32 %v4152, %v4160
  %v4162 = vld [vmem:[%s12] sm:$0xff]
  %v4163 = vld [vmem:[%s12 + $0x8] sm:$0xff]
  %v4164 = vld [vmem:[%s12 + $0x10] sm:$0xff]
  %v4165 = vld [vmem:[%s12 + $0x18] sm:$0xff]
  %v4166 = vld [vmem:[%s12 + $0x20] sm:$0xff]
  %v4167 = vld [vmem:[%s12 + $0x28] sm:$0xff]
  %v4168 = vld [vmem:[%s12 + $0x30] sm:$0xff]
  %v4169 = vld [vmem:[%s12 + $0x38] sm:$0xff]
  %v4170 = vld [vmem:[%s13] sm:$0x1]
  %v4172 = vlaneseq
  %v4173 = vshrl.u32 %v4172, 7
  %v4174 = vsub.s32 0, %v4173
  %v4175 = vrot.slane %v4170, %v4174
  %4178 = vrot.lane.b32.xlu0 %v4161, 64
  %v4179 = vpop.permute.xlu0 %4178
  %v4180 = vsel %vm258, %v4179, 0
  %4182 = vmatprep.subr.mxu0 0.0
  %4183 = vmatpush1.msra.mxu0 0.0
  %4184 = vmatprep.subr.mxu0 0.0
  %4185 = vmatpush1.msra.mxu0 0.0
  %4186 = vmatprep.subr.mxu0 0.0
  %4187 = vmatpush1.msra.mxu0 0.0
  %4188 = vmatprep.subr.mxu0 0.0
  %4189 = vmatpush1.msra.mxu0 0.0
  %4190 = vmatprep.subr.mxu0 0.0
  %4191 = vmatpush1.msra.mxu0 0.0
  %4192 = vmatprep.subr.mxu0 0.0
  %4193 = vmatpush1.msra.mxu0 0.0
  %4194 = vmatprep.subr.mxu0 0.0
  %4195 = vmatpush1.msra.mxu0 0.0
  %4196 = vmatprep.subr.mxu0 0.0
  %4197 = vmatpush1.msra.mxu0 0.0
  %4198 = vmatprep.subr.mxu0 0.0
  %4199 = vmatpush1.msra.mxu0 %v4169
  %4200 = vmatprep.subr.mxu0 0.0
  %4201 = vmatpush1.msra.mxu0 %v4168
  %4202 = vmatprep.subr.mxu0 0.0
  %4203 = vmatpush1.msra.mxu0 %v4167
  %4204 = vmatprep.subr.mxu0 0.0
  %4205 = vmatpush1.msra.mxu0 %v4166
  %4206 = vmatprep.subr.mxu0 0.0
  %4207 = vmatpush1.msra.mxu0 %v4165
  %4208 = vmatprep.subr.mxu0 0.0
  %4209 = vmatpush1.msra.mxu0 %v4164
  %4210 = vmatprep.subr.mxu0 0.0
  %4211 = vmatpush1.msra.mxu0 %v4163
  %4212 = vmatprep.subr.mxu0 0.0
  %4213 = vmatpush1.msra.mxu0 %v4162
  %4214 = vmatprep.subr.mxu0 0.0
  %4215 = vmatpush2.msra.mxu0 0.0
  %4216 = vmatprep.subr.mxu0 0.0
  %4217 = vmatpush2.msra.mxu0 0.0
  %4218 = vmatprep.subr.mxu0 0.0
  %4219 = vmatpush2.msra.mxu0 0.0
  %4220 = vmatprep.subr.mxu0 0.0
  %4221 = vmatpush2.msra.mxu0 0.0
  %4222 = vmatprep.subr.mxu0 0.0
  %4223 = vmatpush2.msra.mxu0 0.0
  %4224 = vmatprep.subr.mxu0 0.0
  %4225 = vmatpush2.msra.mxu0 0.0
  %4226 = vmatprep.subr.mxu0 0.0
  %4227 = vmatpush2.msra.mxu0 0.0
  %4228 = vmatprep.subr.mxu0 0.0
  %4229 = vmatpush2.msra.mxu0 0.0
  %4230 = vmatprep.subr.mxu0 0.0
  %4231 = vmatpush2.msra.mxu0 0.0
  %4232 = vmatprep.subr.mxu0 0.0
  %4233 = vmatpush2.msra.mxu0 0.0
  %4234 = vmatprep.subr.mxu0 0.0
  %4235 = vmatpush2.msra.mxu0 0.0
  %4236 = vmatprep.subr.mxu0 0.0
  %4237 = vmatpush2.msra.mxu0 0.0
  %4238 = vmatprep.subr.mxu0 0.0
  %4239 = vmatpush2.msra.mxu0 0.0
  %4240 = vmatprep.subr.mxu0 0.0
  %4241 = vmatpush2.msra.mxu0 0.0
  %4242 = vmatprep.subr.mxu0 0.0
  %4243 = vmatpush2.msra.mxu0 0.0
  %4244 = vmatprep.subr.mxu0 0.0
  %4245 = vmatpush2.msra.mxu0 0.0
  %4246 = vmatprep.mubr.f32.mxu0 0.0
  %4247 = vmatmul.mubr.f32.gmra.mxu0 %v4180
  %v4248 = vpop.f32.mrf.mxu0
  %v4249 = vadd.f32 %v4175, %v4248
  %v4250 = vpop.f32.mrf.mxu0
  %4251 = vdwg.mxu0
  %vm4252 = vcmask 23552
  %4253 = vst.msk [vmem:[%s14] sm:$0xff] %vm4252, %v4249
  // Predicated region
  $region58: #{lstm_model_forward.1} parent=0 // pred_check
    _
  $region59: #{lstm_model_forward.1} parent=0 // pred_check_branch
    %4255 = sbr.rel (0) target = $region61
  $region60: #{lstm_model_forward.1} parent=0 // pred_region
    _
  $region61: #{lstm_model_forward.1} parent=0 // pred_fallthru
    _
  // Predicated region
  $region62: #{lstm_model_forward.1} parent=0 // pred_check
    _
  $region63: #{lstm_model_forward.1} parent=0 // pred_check_branch
    %4257 = sbr.rel (0) target = $region65
  $region64: #{lstm_model_forward.1} parent=0 // pred_region
    _
  $region65: #{lstm_model_forward.1} parent=0 // pred_fallthru
    _

</llo_original>
